<compile_context>
chip_gen: v7x
topology: tpu7x:2x2x1
jax: 0.10.0
libtpu: 0.0.40
codegen_flags: <defaults>
</compile_context>

<pallas_src>
import functools

import jax
import jax.numpy as jnp
from jax.experimental import pallas as pl
from jax.experimental.pallas import tpu as pltpu


def _fused_cnn_kernel(x_ref, w1_ref, b1_ref, w2_ref, b2_ref, w3_ref, b3_ref,
                      o_ref, pad_ref, *, cin, cout, hh, ww):
    """One image: conv1+ReLU -> conv2+ReLU -> conv3, entirely in VMEM.

    x_ref  : (1, cin, hh, ww)             VMEM  input image block
    w*_ref : (cout*cin*9,)/(cout*cout*9,) SMEM  flattened OIHW weights
    b*_ref : (cout,)                      SMEM  biases
    o_ref  : (1, cout, hh, ww)            VMEM  output block
    pad_ref: (max(cin,cout), hh+2, ww+2)  VMEM  zero-padded activation scratch
    """
    # Zero the padded scratch: the 1-pixel border must be 0 for "padding=1";
    # interiors are always fully overwritten.  ~4 KB, negligible.
    pad_ref[...] = jnp.zeros_like(pad_ref)

    # Stage the input image into the interior of the padded buffer
    # (in-kernel padding; no host-side jnp.pad / extra HBM copy).
    for ci in range(cin):
        pad_ref[ci, 1:hh + 1, 1:ww + 1] = x_ref[0, ci].astype(jnp.float32)

    def conv3x3(n_in, n_out, w_ref, b_ref, relu):
        # Bias-initialized accumulators, one per output channel.
        accs = [jnp.full((hh, ww), b_ref[co], jnp.float32)
                for co in range(n_out)]
        for ci in range(n_in):
            xp = pad_ref[ci]  # (hh+2, ww+2): one VMEM load per input channel
            # The 9 shifted windows, computed ONCE and reused for every co
            # (hoisted out of the output-channel loop).
            taps = [xp[kh:kh + hh, kw:kw + ww]
                    for kh in range(3) for kw in range(3)]
            for co in range(n_out):
                base = (co * n_in + ci) * 9
                for t in range(9):
                    accs[co] = accs[co] + taps[t] * w_ref[base + t]
        if relu:
            accs = [jnp.maximum(a, 0.0) for a in accs]
        return accs

    def write_back(accs):
        # Store all planes into the scratch interior (borders stay zero),
        # after all compute for the layer has finished.
        for c in range(len(accs)):
            pad_ref[c, 1:hh + 1, 1:ww + 1] = accs[c]

    acts = conv3x3(cin, cout, w1_ref, b1_ref, relu=True)    # conv1 + ReLU
    write_back(acts)
    acts = conv3x3(cout, cout, w2_ref, b2_ref, relu=True)   # conv2 + ReLU
    write_back(acts)
    acts = conv3x3(cout, cout, w3_ref, b3_ref, relu=False)  # conv3

    # All output channels stored together at the very end of the kernel.
    for co in range(cout):
        o_ref[0, co] = acts[co].astype(o_ref.dtype)


def simple_cnn_forward(x, params):
    """Fused SimpleCNN forward.  x: (N, Cin, H, W) float32."""
    (w1, b1), (w2, b2), (w3, b3) = params
    n, cin, hh, ww = x.shape
    cout = w1.shape[0]

    flat = lambda w: w.reshape(-1).astype(jnp.float32)
    kernel = functools.partial(
        _fused_cnn_kernel, cin=cin, cout=cout, hh=hh, ww=ww)
    smem = pl.BlockSpec(memory_space=pltpu.MemorySpace.SMEM)

    return pl.pallas_call(
        kernel,
        out_shape=jax.ShapeDtypeStruct((n, cout, hh, ww), x.dtype),
        grid=(n,),
        in_specs=[
            pl.BlockSpec((1, cin, hh, ww), lambda i: (i, 0, 0, 0)),
            smem, smem,   # w1, b1
            smem, smem,   # w2, b2
            smem, smem,   # w3, b3
        ],
        out_specs=pl.BlockSpec((1, cout, hh, ww), lambda i: (i, 0, 0, 0)),
        scratch_shapes=[
            pltpu.VMEM((max(cin, cout), hh + 2, ww + 2), jnp.float32)],
        compiler_params=pltpu.CompilerParams(
            dimension_semantics=("parallel",)),
    )(x, flat(w1), b1.astype(jnp.float32),
      flat(w2), b2.astype(jnp.float32),
      flat(w3), b3.astype(jnp.float32))


def init_params(key, in_ch=1, out_ch=3):
    ks = jax.random.split(key, 6)

    def conv_init(kw, kb, cin, cout):
        # Kaiming-uniform-ish init (fan_in = cin*3*3), like torch Conv2d default.
        fan_in = cin * 9
        bound = 1.0 / jnp.sqrt(fan_in)
        w = jax.random.uniform(kw, (cout, cin, 3, 3), jnp.float32, -bound, bound)
        b = jax.random.uniform(kb, (cout,), jnp.float32, -bound, bound)
        return w, b

    return (
        conv_init(ks[0], ks[1], in_ch, out_ch),
        conv_init(ks[2], ks[3], out_ch, out_ch),
        conv_init(ks[4], ks[5], out_ch, out_ch),
    )


def _reference_forward(x, params):
    # Pure-JAX reference for correctness check.
    def conv(x, w, b, relu):
        y = jax.lax.conv_general_dilated(
            x, w, window_strides=(1, 1), padding=((1, 1), (1, 1)),
            dimension_numbers=("NCHW", "OIHW", "NCHW"))
        y = y + b[None, :, None, None]
        return jnp.maximum(y, 0.0) if relu else y

    (w1, b1), (w2, b2), (w3, b3) = params
    x = conv(x, w1, b1, True)
    x = conv(x, w2, b2, True)
    x = conv(x, w3, b3, False)
    return x


if __name__ == "__main__":
    key = jax.random.PRNGKey(0)
    k_x, k_p = jax.random.split(key)

    in_ch, out_ch = 1, 3
    x = jax.random.normal(k_x, (2, in_ch, 16, 16), jnp.float32)
    params = init_params(k_p, in_ch=in_ch, out_ch=out_ch)

    out = jax.block_until_ready(simple_cnn_forward(x, params))
    ref = jax.block_until_ready(_reference_forward(x, params))

    assert out.shape == (2, out_ch, 16, 16)
    assert jnp.allclose(out, ref, rtol=1e-4, atol=1e-4), "mismatch vs reference"

    print("KERNEL_OK")
</pallas_src>

<mosaic_0001>
module attributes {stable_mosaic.version = 11 : i64} {
  func.func @_fused_cnn_kernel(%arg0: i32, %arg1: memref<1x1x16x16xf32, #tpu.memory_space<vmem>>, %arg2: memref<27xf32, #tpu.memory_space<smem>>, %arg3: memref<3xf32, #tpu.memory_space<smem>>, %arg4: memref<81xf32, #tpu.memory_space<smem>>, %arg5: memref<3xf32, #tpu.memory_space<smem>>, %arg6: memref<81xf32, #tpu.memory_space<smem>>, %arg7: memref<3xf32, #tpu.memory_space<smem>>, %arg8: memref<1x3x16x16xf32, #tpu.memory_space<vmem>>, %arg9: memref<3x18x18xf32, #tpu.memory_space<vmem>>) attributes {dimension_semantics = [#tpu.dimension_semantics<parallel>], iteration_bounds = array<i64: 2>, scalar_prefetch = 0 : i64, scratch_operands = 1 : i64, tpu.core_type = #tpu.core_type<tc>, window_params = [{transform_indices = @transform_0, window_bounds = array<i64: 1, 1, 16, 16>}, {transform_indices = @transform_1, window_bounds = array<i64: 27>}, {transform_indices = @transform_2, window_bounds = array<i64: 3>}, {transform_indices = @transform_3, window_bounds = array<i64: 81>}, {transform_indices = @transform_4, window_bounds = array<i64: 3>}, {transform_indices = @transform_5, window_bounds = array<i64: 81>}, {transform_indices = @transform_6, window_bounds = array<i64: 3>}, {transform_indices = @transform_7, window_bounds = array<i64: 1, 3, 16, 16>}]} {
    %cst = arith.constant 0.000000e+00 : f32
    %0 = vector.broadcast %cst : f32 to vector<3x18x18xf32>
    %c0 = arith.constant 0 : index
    %c0_0 = arith.constant 0 : index
    %c0_1 = arith.constant 0 : index
    %1 = vector.load %arg9[%c0, %c0_0, %c0_1] : memref<3x18x18xf32, #tpu.memory_space<vmem>>, vector<3x18x18xf32>
    tpu.vector_store %arg9[%c0, %c0_0, %c0_1], %0 {strides = array<i32>} : memref<3x18x18xf32, #tpu.memory_space<vmem>>, vector<3x18x18xf32>,
    %c0_2 = arith.constant 0 : index
    %c0_3 = arith.constant 0 : index
    %c0_4 = arith.constant 0 : index
    %c0_5 = arith.constant 0 : index
    %2 = vector.load %arg1[%c0_2, %c0_3, %c0_4, %c0_5] : memref<1x1x16x16xf32, #tpu.memory_space<vmem>>, vector<1x1x16x16xf32>
    %3 = vector.shape_cast %2 : vector<1x1x16x16xf32> to vector<16x16xf32>
    %c0_6 = arith.constant 0 : index
    %c1 = arith.constant 1 : index
    %c1_7 = arith.constant 1 : index
    %4 = vector.load %arg9[%c0_6, %c1, %c1_7] : memref<3x18x18xf32, #tpu.memory_space<vmem>>, vector<1x16x16xf32>
    %5 = vector.shape_cast %4 : vector<1x16x16xf32> to vector<16x16xf32>
    %6 = vector.shape_cast %3 : vector<16x16xf32> to vector<1x16x16xf32>
    tpu.vector_store %arg9[%c0_6, %c1, %c1_7], %6 {strides = array<i32>} : memref<3x18x18xf32, #tpu.memory_space<vmem>>, vector<1x16x16xf32>,
    %c0_8 = arith.constant 0 : index
    %7 = memref.load %arg3[%c0_8] : memref<3xf32, #tpu.memory_space<smem>>
    %8 = vector.broadcast %7 : f32 to vector<16x16xf32>
    %c1_9 = arith.constant 1 : index
    %9 = memref.load %arg3[%c1_9] : memref<3xf32, #tpu.memory_space<smem>>
    %10 = vector.broadcast %9 : f32 to vector<16x16xf32>
    %c2 = arith.constant 2 : index
    %11 = memref.load %arg3[%c2] : memref<3xf32, #tpu.memory_space<smem>>
    %12 = vector.broadcast %11 : f32 to vector<16x16xf32>
    %c0_10 = arith.constant 0 : index
    %c0_11 = arith.constant 0 : index
    %c0_12 = arith.constant 0 : index
    %13 = vector.load %arg9[%c0_10, %c0_11, %c0_12] : memref<3x18x18xf32, #tpu.memory_space<vmem>>, vector<1x18x18xf32>
    %14 = vector.shape_cast %13 : vector<1x18x18xf32> to vector<18x18xf32>
    %15 = vector.extract_strided_slice %14 {offsets = [0, 0], sizes = [16, 16], strides = [1, 1]} : vector<18x18xf32> to vector<16x16xf32>
    %16 = vector.extract_strided_slice %14 {offsets = [0, 1], sizes = [16, 16], strides = [1, 1]} : vector<18x18xf32> to vector<16x16xf32>
    %17 = vector.extract_strided_slice %14 {offsets = [0, 2], sizes = [16, 16], strides = [1, 1]} : vector<18x18xf32> to vector<16x16xf32>
    %18 = vector.extract_strided_slice %14 {offsets = [1, 0], sizes = [16, 16], strides = [1, 1]} : vector<18x18xf32> to vector<16x16xf32>
    %19 = vector.extract_strided_slice %14 {offsets = [1, 1], sizes = [16, 16], strides = [1, 1]} : vector<18x18xf32> to vector<16x16xf32>
    %20 = vector.extract_strided_slice %14 {offsets = [1, 2], sizes = [16, 16], strides = [1, 1]} : vector<18x18xf32> to vector<16x16xf32>
    %21 = vector.extract_strided_slice %14 {offsets = [2, 0], sizes = [16, 16], strides = [1, 1]} : vector<18x18xf32> to vector<16x16xf32>
    %22 = vector.extract_strided_slice %14 {offsets = [2, 1], sizes = [16, 16], strides = [1, 1]} : vector<18x18xf32> to vector<16x16xf32>
    %23 = vector.extract_strided_slice %14 {offsets = [2, 2], sizes = [16, 16], strides = [1, 1]} : vector<18x18xf32> to vector<16x16xf32>
    %c0_13 = arith.constant 0 : index
    %24 = memref.load %arg2[%c0_13] : memref<27xf32, #tpu.memory_space<smem>>
    %25 = vector.broadcast %24 : f32 to vector<16x16xf32>
    %26 = arith.mulf %15, %25 : vector<16x16xf32>
    %27 = arith.addf %8, %26 : vector<16x16xf32>
    %c1_14 = arith.constant 1 : index
    %28 = memref.load %arg2[%c1_14] : memref<27xf32, #tpu.memory_space<smem>>
    %29 = vector.broadcast %28 : f32 to vector<16x16xf32>
    %30 = arith.mulf %16, %29 : vector<16x16xf32>
    %31 = arith.addf %27, %30 : vector<16x16xf32>
    %c2_15 = arith.constant 2 : index
    %32 = memref.load %arg2[%c2_15] : memref<27xf32, #tpu.memory_space<smem>>
    %33 = vector.broadcast %32 : f32 to vector<16x16xf32>
    %34 = arith.mulf %17, %33 : vector<16x16xf32>
    %35 = arith.addf %31, %34 : vector<16x16xf32>
    %c3 = arith.constant 3 : index
    %36 = memref.load %arg2[%c3] : memref<27xf32, #tpu.memory_space<smem>>
    %37 = vector.broadcast %36 : f32 to vector<16x16xf32>
    %38 = arith.mulf %18, %37 : vector<16x16xf32>
    %39 = arith.addf %35, %38 : vector<16x16xf32>
    %c4 = arith.constant 4 : index
    %40 = memref.load %arg2[%c4] : memref<27xf32, #tpu.memory_space<smem>>
    %41 = vector.broadcast %40 : f32 to vector<16x16xf32>
    %42 = arith.mulf %19, %41 : vector<16x16xf32>
    %43 = arith.addf %39, %42 : vector<16x16xf32>
    %c5 = arith.constant 5 : index
    %44 = memref.load %arg2[%c5] : memref<27xf32, #tpu.memory_space<smem>>
    %45 = vector.broadcast %44 : f32 to vector<16x16xf32>
    %46 = arith.mulf %20, %45 : vector<16x16xf32>
    %47 = arith.addf %43, %46 : vector<16x16xf32>
    %c6 = arith.constant 6 : index
    %48 = memref.load %arg2[%c6] : memref<27xf32, #tpu.memory_space<smem>>
    %49 = vector.broadcast %48 : f32 to vector<16x16xf32>
    %50 = arith.mulf %21, %49 : vector<16x16xf32>
    %51 = arith.addf %47, %50 : vector<16x16xf32>
    %c7 = arith.constant 7 : index
    %52 = memref.load %arg2[%c7] : memref<27xf32, #tpu.memory_space<smem>>
    %53 = vector.broadcast %52 : f32 to vector<16x16xf32>
    %54 = arith.mulf %22, %53 : vector<16x16xf32>
    %55 = arith.addf %51, %54 : vector<16x16xf32>
    %c8 = arith.constant 8 : index
    %56 = memref.load %arg2[%c8] : memref<27xf32, #tpu.memory_space<smem>>
    %57 = vector.broadcast %56 : f32 to vector<16x16xf32>
    %58 = arith.mulf %23, %57 : vector<16x16xf32>
    %59 = arith.addf %55, %58 : vector<16x16xf32>
    %c9 = arith.constant 9 : index
    %60 = memref.load %arg2[%c9] : memref<27xf32, #tpu.memory_space<smem>>
    %61 = vector.broadcast %60 : f32 to vector<16x16xf32>
    %62 = arith.mulf %15, %61 : vector<16x16xf32>
    %63 = arith.addf %10, %62 : vector<16x16xf32>
    %c10 = arith.constant 10 : index
    %64 = memref.load %arg2[%c10] : memref<27xf32, #tpu.memory_space<smem>>
    %65 = vector.broadcast %64 : f32 to vector<16x16xf32>
    %66 = arith.mulf %16, %65 : vector<16x16xf32>
    %67 = arith.addf %63, %66 : vector<16x16xf32>
    %c11 = arith.constant 11 : index
    %68 = memref.load %arg2[%c11] : memref<27xf32, #tpu.memory_space<smem>>
    %69 = vector.broadcast %68 : f32 to vector<16x16xf32>
    %70 = arith.mulf %17, %69 : vector<16x16xf32>
    %71 = arith.addf %67, %70 : vector<16x16xf32>
    %c12 = arith.constant 12 : index
    %72 = memref.load %arg2[%c12] : memref<27xf32, #tpu.memory_space<smem>>
    %73 = vector.broadcast %72 : f32 to vector<16x16xf32>
    %74 = arith.mulf %18, %73 : vector<16x16xf32>
    %75 = arith.addf %71, %74 : vector<16x16xf32>
    %c13 = arith.constant 13 : index
    %76 = memref.load %arg2[%c13] : memref<27xf32, #tpu.memory_space<smem>>
    %77 = vector.broadcast %76 : f32 to vector<16x16xf32>
    %78 = arith.mulf %19, %77 : vector<16x16xf32>
    %79 = arith.addf %75, %78 : vector<16x16xf32>
    %c14 = arith.constant 14 : index
    %80 = memref.load %arg2[%c14] : memref<27xf32, #tpu.memory_space<smem>>
    %81 = vector.broadcast %80 : f32 to vector<16x16xf32>
    %82 = arith.mulf %20, %81 : vector<16x16xf32>
    %83 = arith.addf %79, %82 : vector<16x16xf32>
    %c15 = arith.constant 15 : index
    %84 = memref.load %arg2[%c15] : memref<27xf32, #tpu.memory_space<smem>>
    %85 = vector.broadcast %84 : f32 to vector<16x16xf32>
    %86 = arith.mulf %21, %85 : vector<16x16xf32>
    %87 = arith.addf %83, %86 : vector<16x16xf32>
    %c16 = arith.constant 16 : index
    %88 = memref.load %arg2[%c16] : memref<27xf32, #tpu.memory_space<smem>>
    %89 = vector.broadcast %88 : f32 to vector<16x16xf32>
    %90 = arith.mulf %22, %89 : vector<16x16xf32>
    %91 = arith.addf %87, %90 : vector<16x16xf32>
    %c17 = arith.constant 17 : index
    %92 = memref.load %arg2[%c17] : memref<27xf32, #tpu.memory_space<smem>>
    %93 = vector.broadcast %92 : f32 to vector<16x16xf32>
    %94 = arith.mulf %23, %93 : vector<16x16xf32>
    %95 = arith.addf %91, %94 : vector<16x16xf32>
    %c18 = arith.constant 18 : index
    %96 = memref.load %arg2[%c18] : memref<27xf32, #tpu.memory_space<smem>>
    %97 = vector.broadcast %96 : f32 to vector<16x16xf32>
    %98 = arith.mulf %15, %97 : vector<16x16xf32>
    %99 = arith.addf %12, %98 : vector<16x16xf32>
    %c19 = arith.constant 19 : index
    %100 = memref.load %arg2[%c19] : memref<27xf32, #tpu.memory_space<smem>>
    %101 = vector.broadcast %100 : f32 to vector<16x16xf32>
    %102 = arith.mulf %16, %101 : vector<16x16xf32>
    %103 = arith.addf %99, %102 : vector<16x16xf32>
    %c20 = arith.constant 20 : index
    %104 = memref.load %arg2[%c20] : memref<27xf32, #tpu.memory_space<smem>>
    %105 = vector.broadcast %104 : f32 to vector<16x16xf32>
    %106 = arith.mulf %17, %105 : vector<16x16xf32>
    %107 = arith.addf %103, %106 : vector<16x16xf32>
    %c21 = arith.constant 21 : index
    %108 = memref.load %arg2[%c21] : memref<27xf32, #tpu.memory_space<smem>>
    %109 = vector.broadcast %108 : f32 to vector<16x16xf32>
    %110 = arith.mulf %18, %109 : vector<16x16xf32>
    %111 = arith.addf %107, %110 : vector<16x16xf32>
    %c22 = arith.constant 22 : index
    %112 = memref.load %arg2[%c22] : memref<27xf32, #tpu.memory_space<smem>>
    %113 = vector.broadcast %112 : f32 to vector<16x16xf32>
    %114 = arith.mulf %19, %113 : vector<16x16xf32>
    %115 = arith.addf %111, %114 : vector<16x16xf32>
    %c23 = arith.constant 23 : index
    %116 = memref.load %arg2[%c23] : memref<27xf32, #tpu.memory_space<smem>>
    %117 = vector.broadcast %116 : f32 to vector<16x16xf32>
    %118 = arith.mulf %20, %117 : vector<16x16xf32>
    %119 = arith.addf %115, %118 : vector<16x16xf32>
    %c24 = arith.constant 24 : index
    %120 = memref.load %arg2[%c24] : memref<27xf32, #tpu.memory_space<smem>>
    %121 = vector.broadcast %120 : f32 to vector<16x16xf32>
    %122 = arith.mulf %21, %121 : vector<16x16xf32>
    %123 = arith.addf %119, %122 : vector<16x16xf32>
    %c25 = arith.constant 25 : index
    %124 = memref.load %arg2[%c25] : memref<27xf32, #tpu.memory_space<smem>>
    %125 = vector.broadcast %124 : f32 to vector<16x16xf32>
    %126 = arith.mulf %22, %125 : vector<16x16xf32>
    %127 = arith.addf %123, %126 : vector<16x16xf32>
    %c26 = arith.constant 26 : index
    %128 = memref.load %arg2[%c26] : memref<27xf32, #tpu.memory_space<smem>>
    %129 = vector.broadcast %128 : f32 to vector<16x16xf32>
    %130 = arith.mulf %23, %129 : vector<16x16xf32>
    %131 = arith.addf %127, %130 : vector<16x16xf32>
    %cst_16 = arith.constant 0.000000e+00 : f32
    %132 = vector.broadcast %cst_16 : f32 to vector<16x16xf32>
    %133 = arith.maximumf %59, %132 : vector<16x16xf32>
    %cst_17 = arith.constant 0.000000e+00 : f32
    %134 = vector.broadcast %cst_17 : f32 to vector<16x16xf32>
    %135 = arith.maximumf %95, %134 : vector<16x16xf32>
    %cst_18 = arith.constant 0.000000e+00 : f32
    %136 = vector.broadcast %cst_18 : f32 to vector<16x16xf32>
    %137 = arith.maximumf %131, %136 : vector<16x16xf32>
    %c0_19 = arith.constant 0 : index
    %c1_20 = arith.constant 1 : index
    %c1_21 = arith.constant 1 : index
    %138 = vector.load %arg9[%c0_19, %c1_20, %c1_21] : memref<3x18x18xf32, #tpu.memory_space<vmem>>, vector<1x16x16xf32>
    %139 = vector.shape_cast %138 : vector<1x16x16xf32> to vector<16x16xf32>
    %140 = vector.shape_cast %133 : vector<16x16xf32> to vector<1x16x16xf32>
    tpu.vector_store %arg9[%c0_19, %c1_20, %c1_21], %140 {strides = array<i32>} : memref<3x18x18xf32, #tpu.memory_space<vmem>>, vector<1x16x16xf32>,
    %c1_22 = arith.constant 1 : index
    %c1_23 = arith.constant 1 : index
    %c1_24 = arith.constant 1 : index
    %141 = vector.load %arg9[%c1_22, %c1_23, %c1_24] : memref<3x18x18xf32, #tpu.memory_space<vmem>>, vector<1x16x16xf32>
    %142 = vector.shape_cast %141 : vector<1x16x16xf32> to vector<16x16xf32>
    %143 = vector.shape_cast %135 : vector<16x16xf32> to vector<1x16x16xf32>
    tpu.vector_store %arg9[%c1_22, %c1_23, %c1_24], %143 {strides = array<i32>} : memref<3x18x18xf32, #tpu.memory_space<vmem>>, vector<1x16x16xf32>,
    %c2_25 = arith.constant 2 : index
    %c1_26 = arith.constant 1 : index
    %c1_27 = arith.constant 1 : index
    %144 = vector.load %arg9[%c2_25, %c1_26, %c1_27] : memref<3x18x18xf32, #tpu.memory_space<vmem>>, vector<1x16x16xf32>
    %145 = vector.shape_cast %144 : vector<1x16x16xf32> to vector<16x16xf32>
    %146 = vector.shape_cast %137 : vector<16x16xf32> to vector<1x16x16xf32>
    tpu.vector_store %arg9[%c2_25, %c1_26, %c1_27], %146 {strides = array<i32>} : memref<3x18x18xf32, #tpu.memory_space<vmem>>, vector<1x16x16xf32>,
    %c0_28 = arith.constant 0 : index
    %147 = memref.load %arg5[%c0_28] : memref<3xf32, #tpu.memory_space<smem>>
    %148 = vector.broadcast %147 : f32 to vector<16x16xf32>
    %c1_29 = arith.constant 1 : index
    %149 = memref.load %arg5[%c1_29] : memref<3xf32, #tpu.memory_space<smem>>
    %150 = vector.broadcast %149 : f32 to vector<16x16xf32>
    %c2_30 = arith.constant 2 : index
    %151 = memref.load %arg5[%c2_30] : memref<3xf32, #tpu.memory_space<smem>>
    %152 = vector.broadcast %151 : f32 to vector<16x16xf32>
    %c0_31 = arith.constant 0 : index
    %c0_32 = arith.constant 0 : index
    %c0_33 = arith.constant 0 : index
    %153 = vector.load %arg9[%c0_31, %c0_32, %c0_33] : memref<3x18x18xf32, #tpu.memory_space<vmem>>, vector<1x18x18xf32>
    %154 = vector.shape_cast %153 : vector<1x18x18xf32> to vector<18x18xf32>
    %155 = vector.extract_strided_slice %154 {offsets = [0, 0], sizes = [16, 16], strides = [1, 1]} : vector<18x18xf32> to vector<16x16xf32>
    %156 = vector.extract_strided_slice %154 {offsets = [0, 1], sizes = [16, 16], strides = [1, 1]} : vector<18x18xf32> to vector<16x16xf32>
    %157 = vector.extract_strided_slice %154 {offsets = [0, 2], sizes = [16, 16], strides = [1, 1]} : vector<18x18xf32> to vector<16x16xf32>
    %158 = vector.extract_strided_slice %154 {offsets = [1, 0], sizes = [16, 16], strides = [1, 1]} : vector<18x18xf32> to vector<16x16xf32>
    %159 = vector.extract_strided_slice %154 {offsets = [1, 1], sizes = [16, 16], strides = [1, 1]} : vector<18x18xf32> to vector<16x16xf32>
    %160 = vector.extract_strided_slice %154 {offsets = [1, 2], sizes = [16, 16], strides = [1, 1]} : vector<18x18xf32> to vector<16x16xf32>
    %161 = vector.extract_strided_slice %154 {offsets = [2, 0], sizes = [16, 16], strides = [1, 1]} : vector<18x18xf32> to vector<16x16xf32>
    %162 = vector.extract_strided_slice %154 {offsets = [2, 1], sizes = [16, 16], strides = [1, 1]} : vector<18x18xf32> to vector<16x16xf32>
    %163 = vector.extract_strided_slice %154 {offsets = [2, 2], sizes = [16, 16], strides = [1, 1]} : vector<18x18xf32> to vector<16x16xf32>
    %c0_34 = arith.constant 0 : index
    %164 = memref.load %arg4[%c0_34] : memref<81xf32, #tpu.memory_space<smem>>
    %165 = vector.broadcast %164 : f32 to vector<16x16xf32>
    %166 = arith.mulf %155, %165 : vector<16x16xf32>
    %167 = arith.addf %148, %166 : vector<16x16xf32>
    %c1_35 = arith.constant 1 : index
    %168 = memref.load %arg4[%c1_35] : memref<81xf32, #tpu.memory_space<smem>>
    %169 = vector.broadcast %168 : f32 to vector<16x16xf32>
    %170 = arith.mulf %156, %169 : vector<16x16xf32>
    %171 = arith.addf %167, %170 : vector<16x16xf32>
    %c2_36 = arith.constant 2 : index
    %172 = memref.load %arg4[%c2_36] : memref<81xf32, #tpu.memory_space<smem>>
    %173 = vector.broadcast %172 : f32 to vector<16x16xf32>
    %174 = arith.mulf %157, %173 : vector<16x16xf32>
    %175 = arith.addf %171, %174 : vector<16x16xf32>
    %c3_37 = arith.constant 3 : index
    %176 = memref.load %arg4[%c3_37] : memref<81xf32, #tpu.memory_space<smem>>
    %177 = vector.broadcast %176 : f32 to vector<16x16xf32>
    %178 = arith.mulf %158, %177 : vector<16x16xf32>
    %179 = arith.addf %175, %178 : vector<16x16xf32>
    %c4_38 = arith.constant 4 : index
    %180 = memref.load %arg4[%c4_38] : memref<81xf32, #tpu.memory_space<smem>>
    %181 = vector.broadcast %180 : f32 to vector<16x16xf32>
    %182 = arith.mulf %159, %181 : vector<16x16xf32>
    %183 = arith.addf %179, %182 : vector<16x16xf32>
    %c5_39 = arith.constant 5 : index
    %184 = memref.load %arg4[%c5_39] : memref<81xf32, #tpu.memory_space<smem>>
    %185 = vector.broadcast %184 : f32 to vector<16x16xf32>
    %186 = arith.mulf %160, %185 : vector<16x16xf32>
    %187 = arith.addf %183, %186 : vector<16x16xf32>
    %c6_40 = arith.constant 6 : index
    %188 = memref.load %arg4[%c6_40] : memref<81xf32, #tpu.memory_space<smem>>
    %189 = vector.broadcast %188 : f32 to vector<16x16xf32>
    %190 = arith.mulf %161, %189 : vector<16x16xf32>
    %191 = arith.addf %187, %190 : vector<16x16xf32>
    %c7_41 = arith.constant 7 : index
    %192 = memref.load %arg4[%c7_41] : memref<81xf32, #tpu.memory_space<smem>>
    %193 = vector.broadcast %192 : f32 to vector<16x16xf32>
    %194 = arith.mulf %162, %193 : vector<16x16xf32>
    %195 = arith.addf %191, %194 : vector<16x16xf32>
    %c8_42 = arith.constant 8 : index
    %196 = memref.load %arg4[%c8_42] : memref<81xf32, #tpu.memory_space<smem>>
    %197 = vector.broadcast %196 : f32 to vector<16x16xf32>
    %198 = arith.mulf %163, %197 : vector<16x16xf32>
    %199 = arith.addf %195, %198 : vector<16x16xf32>
    %c27 = arith.constant 27 : index
    %200 = memref.load %arg4[%c27] : memref<81xf32, #tpu.memory_space<smem>>
    %201 = vector.broadcast %200 : f32 to vector<16x16xf32>
    %202 = arith.mulf %155, %201 : vector<16x16xf32>
    %203 = arith.addf %150, %202 : vector<16x16xf32>
    %c28 = arith.constant 28 : index
    %204 = memref.load %arg4[%c28] : memref<81xf32, #tpu.memory_space<smem>>
    %205 = vector.broadcast %204 : f32 to vector<16x16xf32>
    %206 = arith.mulf %156, %205 : vector<16x16xf32>
    %207 = arith.addf %203, %206 : vector<16x16xf32>
    %c29 = arith.constant 29 : index
    %208 = memref.load %arg4[%c29] : memref<81xf32, #tpu.memory_space<smem>>
    %209 = vector.broadcast %208 : f32 to vector<16x16xf32>
    %210 = arith.mulf %157, %209 : vector<16x16xf32>
    %211 = arith.addf %207, %210 : vector<16x16xf32>
    %c30 = arith.constant 30 : index
    %212 = memref.load %arg4[%c30] : memref<81xf32, #tpu.memory_space<smem>>
    %213 = vector.broadcast %212 : f32 to vector<16x16xf32>
    %214 = arith.mulf %158, %213 : vector<16x16xf32>
    %215 = arith.addf %211, %214 : vector<16x16xf32>
    %c31 = arith.constant 31 : index
    %216 = memref.load %arg4[%c31] : memref<81xf32, #tpu.memory_space<smem>>
    %217 = vector.broadcast %216 : f32 to vector<16x16xf32>
    %218 = arith.mulf %159, %217 : vector<16x16xf32>
    %219 = arith.addf %215, %218 : vector<16x16xf32>
    %c32 = arith.constant 32 : index
    %220 = memref.load %arg4[%c32] : memref<81xf32, #tpu.memory_space<smem>>
    %221 = vector.broadcast %220 : f32 to vector<16x16xf32>
    %222 = arith.mulf %160, %221 : vector<16x16xf32>
    %223 = arith.addf %219, %222 : vector<16x16xf32>
    %c33 = arith.constant 33 : index
    %224 = memref.load %arg4[%c33] : memref<81xf32, #tpu.memory_space<smem>>
    %225 = vector.broadcast %224 : f32 to vector<16x16xf32>
    %226 = arith.mulf %161, %225 : vector<16x16xf32>
    %227 = arith.addf %223, %226 : vector<16x16xf32>
    %c34 = arith.constant 34 : index
    %228 = memref.load %arg4[%c34] : memref<81xf32, #tpu.memory_space<smem>>
    %229 = vector.broadcast %228 : f32 to vector<16x16xf32>
    %230 = arith.mulf %162, %229 : vector<16x16xf32>
    %231 = arith.addf %227, %230 : vector<16x16xf32>
    %c35 = arith.constant 35 : index
    %232 = memref.load %arg4[%c35] : memref<81xf32, #tpu.memory_space<smem>>
    %233 = vector.broadcast %232 : f32 to vector<16x16xf32>
    %234 = arith.mulf %163, %233 : vector<16x16xf32>
    %235 = arith.addf %231, %234 : vector<16x16xf32>
    %c54 = arith.constant 54 : index
    %236 = memref.load %arg4[%c54] : memref<81xf32, #tpu.memory_space<smem>>
    %237 = vector.broadcast %236 : f32 to vector<16x16xf32>
    %238 = arith.mulf %155, %237 : vector<16x16xf32>
    %239 = arith.addf %152, %238 : vector<16x16xf32>
    %c55 = arith.constant 55 : index
    %240 = memref.load %arg4[%c55] : memref<81xf32, #tpu.memory_space<smem>>
    %241 = vector.broadcast %240 : f32 to vector<16x16xf32>
    %242 = arith.mulf %156, %241 : vector<16x16xf32>
    %243 = arith.addf %239, %242 : vector<16x16xf32>
    %c56 = arith.constant 56 : index
    %244 = memref.load %arg4[%c56] : memref<81xf32, #tpu.memory_space<smem>>
    %245 = vector.broadcast %244 : f32 to vector<16x16xf32>
    %246 = arith.mulf %157, %245 : vector<16x16xf32>
    %247 = arith.addf %243, %246 : vector<16x16xf32>
    %c57 = arith.constant 57 : index
    %248 = memref.load %arg4[%c57] : memref<81xf32, #tpu.memory_space<smem>>
    %249 = vector.broadcast %248 : f32 to vector<16x16xf32>
    %250 = arith.mulf %158, %249 : vector<16x16xf32>
    %251 = arith.addf %247, %250 : vector<16x16xf32>
    %c58 = arith.constant 58 : index
    %252 = memref.load %arg4[%c58] : memref<81xf32, #tpu.memory_space<smem>>
    %253 = vector.broadcast %252 : f32 to vector<16x16xf32>
    %254 = arith.mulf %159, %253 : vector<16x16xf32>
    %255 = arith.addf %251, %254 : vector<16x16xf32>
    %c59 = arith.constant 59 : index
    %256 = memref.load %arg4[%c59] : memref<81xf32, #tpu.memory_space<smem>>
    %257 = vector.broadcast %256 : f32 to vector<16x16xf32>
    %258 = arith.mulf %160, %257 : vector<16x16xf32>
    %259 = arith.addf %255, %258 : vector<16x16xf32>
    %c60 = arith.constant 60 : index
    %260 = memref.load %arg4[%c60] : memref<81xf32, #tpu.memory_space<smem>>
    %261 = vector.broadcast %260 : f32 to vector<16x16xf32>
    %262 = arith.mulf %161, %261 : vector<16x16xf32>
    %263 = arith.addf %259, %262 : vector<16x16xf32>
    %c61 = arith.constant 61 : index
    %264 = memref.load %arg4[%c61] : memref<81xf32, #tpu.memory_space<smem>>
    %265 = vector.broadcast %264 : f32 to vector<16x16xf32>
    %266 = arith.mulf %162, %265 : vector<16x16xf32>
    %267 = arith.addf %263, %266 : vector<16x16xf32>
    %c62 = arith.constant 62 : index
    %268 = memref.load %arg4[%c62] : memref<81xf32, #tpu.memory_space<smem>>
    %269 = vector.broadcast %268 : f32 to vector<16x16xf32>
    %270 = arith.mulf %163, %269 : vector<16x16xf32>
    %271 = arith.addf %267, %270 : vector<16x16xf32>
    %c1_43 = arith.constant 1 : index
    %c0_44 = arith.constant 0 : index
    %c0_45 = arith.constant 0 : index
    %272 = vector.load %arg9[%c1_43, %c0_44, %c0_45] : memref<3x18x18xf32, #tpu.memory_space<vmem>>, vector<1x18x18xf32>
    %273 = vector.shape_cast %272 : vector<1x18x18xf32> to vector<18x18xf32>
    %274 = vector.extract_strided_slice %273 {offsets = [0, 0], sizes = [16, 16], strides = [1, 1]} : vector<18x18xf32> to vector<16x16xf32>
    %275 = vector.extract_strided_slice %273 {offsets = [0, 1], sizes = [16, 16], strides = [1, 1]} : vector<18x18xf32> to vector<16x16xf32>
    %276 = vector.extract_strided_slice %273 {offsets = [0, 2], sizes = [16, 16], strides = [1, 1]} : vector<18x18xf32> to vector<16x16xf32>
    %277 = vector.extract_strided_slice %273 {offsets = [1, 0], sizes = [16, 16], strides = [1, 1]} : vector<18x18xf32> to vector<16x16xf32>
    %278 = vector.extract_strided_slice %273 {offsets = [1, 1], sizes = [16, 16], strides = [1, 1]} : vector<18x18xf32> to vector<16x16xf32>
    %279 = vector.extract_strided_slice %273 {offsets = [1, 2], sizes = [16, 16], strides = [1, 1]} : vector<18x18xf32> to vector<16x16xf32>
    %280 = vector.extract_strided_slice %273 {offsets = [2, 0], sizes = [16, 16], strides = [1, 1]} : vector<18x18xf32> to vector<16x16xf32>
    %281 = vector.extract_strided_slice %273 {offsets = [2, 1], sizes = [16, 16], strides = [1, 1]} : vector<18x18xf32> to vector<16x16xf32>
    %282 = vector.extract_strided_slice %273 {offsets = [2, 2], sizes = [16, 16], strides = [1, 1]} : vector<18x18xf32> to vector<16x16xf32>
    %c9_46 = arith.constant 9 : index
    %283 = memref.load %arg4[%c9_46] : memref<81xf32, #tpu.memory_space<smem>>
    %284 = vector.broadcast %283 : f32 to vector<16x16xf32>
    %285 = arith.mulf %274, %284 : vector<16x16xf32>
    %286 = arith.addf %199, %285 : vector<16x16xf32>
    %c10_47 = arith.constant 10 : index
    %287 = memref.load %arg4[%c10_47] : memref<81xf32, #tpu.memory_space<smem>>
    %288 = vector.broadcast %287 : f32 to vector<16x16xf32>
    %289 = arith.mulf %275, %288 : vector<16x16xf32>
    %290 = arith.addf %286, %289 : vector<16x16xf32>
    %c11_48 = arith.constant 11 : index
    %291 = memref.load %arg4[%c11_48] : memref<81xf32, #tpu.memory_space<smem>>
    %292 = vector.broadcast %291 : f32 to vector<16x16xf32>
    %293 = arith.mulf %276, %292 : vector<16x16xf32>
    %294 = arith.addf %290, %293 : vector<16x16xf32>
    %c12_49 = arith.constant 12 : index
    %295 = memref.load %arg4[%c12_49] : memref<81xf32, #tpu.memory_space<smem>>
    %296 = vector.broadcast %295 : f32 to vector<16x16xf32>
    %297 = arith.mulf %277, %296 : vector<16x16xf32>
    %298 = arith.addf %294, %297 : vector<16x16xf32>
    %c13_50 = arith.constant 13 : index
    %299 = memref.load %arg4[%c13_50] : memref<81xf32, #tpu.memory_space<smem>>
    %300 = vector.broadcast %299 : f32 to vector<16x16xf32>
    %301 = arith.mulf %278, %300 : vector<16x16xf32>
    %302 = arith.addf %298, %301 : vector<16x16xf32>
    %c14_51 = arith.constant 14 : index
    %303 = memref.load %arg4[%c14_51] : memref<81xf32, #tpu.memory_space<smem>>
    %304 = vector.broadcast %303 : f32 to vector<16x16xf32>
    %305 = arith.mulf %279, %304 : vector<16x16xf32>
    %306 = arith.addf %302, %305 : vector<16x16xf32>
    %c15_52 = arith.constant 15 : index
    %307 = memref.load %arg4[%c15_52] : memref<81xf32, #tpu.memory_space<smem>>
    %308 = vector.broadcast %307 : f32 to vector<16x16xf32>
    %309 = arith.mulf %280, %308 : vector<16x16xf32>
    %310 = arith.addf %306, %309 : vector<16x16xf32>
    %c16_53 = arith.constant 16 : index
    %311 = memref.load %arg4[%c16_53] : memref<81xf32, #tpu.memory_space<smem>>
    %312 = vector.broadcast %311 : f32 to vector<16x16xf32>
    %313 = arith.mulf %281, %312 : vector<16x16xf32>
    %314 = arith.addf %310, %313 : vector<16x16xf32>
    %c17_54 = arith.constant 17 : index
    %315 = memref.load %arg4[%c17_54] : memref<81xf32, #tpu.memory_space<smem>>
    %316 = vector.broadcast %315 : f32 to vector<16x16xf32>
    %317 = arith.mulf %282, %316 : vector<16x16xf32>
    %318 = arith.addf %314, %317 : vector<16x16xf32>
    %c36 = arith.constant 36 : index
    %319 = memref.load %arg4[%c36] : memref<81xf32, #tpu.memory_space<smem>>
    %320 = vector.broadcast %319 : f32 to vector<16x16xf32>
    %321 = arith.mulf %274, %320 : vector<16x16xf32>
    %322 = arith.addf %235, %321 : vector<16x16xf32>
    %c37 = arith.constant 37 : index
    %323 = memref.load %arg4[%c37] : memref<81xf32, #tpu.memory_space<smem>>
    %324 = vector.broadcast %323 : f32 to vector<16x16xf32>
    %325 = arith.mulf %275, %324 : vector<16x16xf32>
    %326 = arith.addf %322, %325 : vector<16x16xf32>
    %c38 = arith.constant 38 : index
    %327 = memref.load %arg4[%c38] : memref<81xf32, #tpu.memory_space<smem>>
    %328 = vector.broadcast %327 : f32 to vector<16x16xf32>
    %329 = arith.mulf %276, %328 : vector<16x16xf32>
    %330 = arith.addf %326, %329 : vector<16x16xf32>
    %c39 = arith.constant 39 : index
    %331 = memref.load %arg4[%c39] : memref<81xf32, #tpu.memory_space<smem>>
    %332 = vector.broadcast %331 : f32 to vector<16x16xf32>
    %333 = arith.mulf %277, %332 : vector<16x16xf32>
    %334 = arith.addf %330, %333 : vector<16x16xf32>
    %c40 = arith.constant 40 : index
    %335 = memref.load %arg4[%c40] : memref<81xf32, #tpu.memory_space<smem>>
    %336 = vector.broadcast %335 : f32 to vector<16x16xf32>
    %337 = arith.mulf %278, %336 : vector<16x16xf32>
    %338 = arith.addf %334, %337 : vector<16x16xf32>
    %c41 = arith.constant 41 : index
    %339 = memref.load %arg4[%c41] : memref<81xf32, #tpu.memory_space<smem>>
    %340 = vector.broadcast %339 : f32 to vector<16x16xf32>
    %341 = arith.mulf %279, %340 : vector<16x16xf32>
    %342 = arith.addf %338, %341 : vector<16x16xf32>
    %c42 = arith.constant 42 : index
    %343 = memref.load %arg4[%c42] : memref<81xf32, #tpu.memory_space<smem>>
    %344 = vector.broadcast %343 : f32 to vector<16x16xf32>
    %345 = arith.mulf %280, %344 : vector<16x16xf32>
    %346 = arith.addf %342, %345 : vector<16x16xf32>
    %c43 = arith.constant 43 : index
    %347 = memref.load %arg4[%c43] : memref<81xf32, #tpu.memory_space<smem>>
    %348 = vector.broadcast %347 : f32 to vector<16x16xf32>
    %349 = arith.mulf %281, %348 : vector<16x16xf32>
    %350 = arith.addf %346, %349 : vector<16x16xf32>
    %c44 = arith.constant 44 : index
    %351 = memref.load %arg4[%c44] : memref<81xf32, #tpu.memory_space<smem>>
    %352 = vector.broadcast %351 : f32 to vector<16x16xf32>
    %353 = arith.mulf %282, %352 : vector<16x16xf32>
    %354 = arith.addf %350, %353 : vector<16x16xf32>
    %c63 = arith.constant 63 : index
    %355 = memref.load %arg4[%c63] : memref<81xf32, #tpu.memory_space<smem>>
    %356 = vector.broadcast %355 : f32 to vector<16x16xf32>
    %357 = arith.mulf %274, %356 : vector<16x16xf32>
    %358 = arith.addf %271, %357 : vector<16x16xf32>
    %c64 = arith.constant 64 : index
    %359 = memref.load %arg4[%c64] : memref<81xf32, #tpu.memory_space<smem>>
    %360 = vector.broadcast %359 : f32 to vector<16x16xf32>
    %361 = arith.mulf %275, %360 : vector<16x16xf32>
    %362 = arith.addf %358, %361 : vector<16x16xf32>
    %c65 = arith.constant 65 : index
    %363 = memref.load %arg4[%c65] : memref<81xf32, #tpu.memory_space<smem>>
    %364 = vector.broadcast %363 : f32 to vector<16x16xf32>
    %365 = arith.mulf %276, %364 : vector<16x16xf32>
    %366 = arith.addf %362, %365 : vector<16x16xf32>
    %c66 = arith.constant 66 : index
    %367 = memref.load %arg4[%c66] : memref<81xf32, #tpu.memory_space<smem>>
    %368 = vector.broadcast %367 : f32 to vector<16x16xf32>
    %369 = arith.mulf %277, %368 : vector<16x16xf32>
    %370 = arith.addf %366, %369 : vector<16x16xf32>
    %c67 = arith.constant 67 : index
    %371 = memref.load %arg4[%c67] : memref<81xf32, #tpu.memory_space<smem>>
    %372 = vector.broadcast %371 : f32 to vector<16x16xf32>
    %373 = arith.mulf %278, %372 : vector<16x16xf32>
    %374 = arith.addf %370, %373 : vector<16x16xf32>
    %c68 = arith.constant 68 : index
    %375 = memref.load %arg4[%c68] : memref<81xf32, #tpu.memory_space<smem>>
    %376 = vector.broadcast %375 : f32 to vector<16x16xf32>
    %377 = arith.mulf %279, %376 : vector<16x16xf32>
    %378 = arith.addf %374, %377 : vector<16x16xf32>
    %c69 = arith.constant 69 : index
    %379 = memref.load %arg4[%c69] : memref<81xf32, #tpu.memory_space<smem>>
    %380 = vector.broadcast %379 : f32 to vector<16x16xf32>
    %381 = arith.mulf %280, %380 : vector<16x16xf32>
    %382 = arith.addf %378, %381 : vector<16x16xf32>
    %c70 = arith.constant 70 : index
    %383 = memref.load %arg4[%c70] : memref<81xf32, #tpu.memory_space<smem>>
    %384 = vector.broadcast %383 : f32 to vector<16x16xf32>
    %385 = arith.mulf %281, %384 : vector<16x16xf32>
    %386 = arith.addf %382, %385 : vector<16x16xf32>
    %c71 = arith.constant 71 : index
    %387 = memref.load %arg4[%c71] : memref<81xf32, #tpu.memory_space<smem>>
    %388 = vector.broadcast %387 : f32 to vector<16x16xf32>
    %389 = arith.mulf %282, %388 : vector<16x16xf32>
    %390 = arith.addf %386, %389 : vector<16x16xf32>
    %c2_55 = arith.constant 2 : index
    %c0_56 = arith.constant 0 : index
    %c0_57 = arith.constant 0 : index
    %391 = vector.load %arg9[%c2_55, %c0_56, %c0_57] : memref<3x18x18xf32, #tpu.memory_space<vmem>>, vector<1x18x18xf32>
    %392 = vector.shape_cast %391 : vector<1x18x18xf32> to vector<18x18xf32>
    %393 = vector.extract_strided_slice %392 {offsets = [0, 0], sizes = [16, 16], strides = [1, 1]} : vector<18x18xf32> to vector<16x16xf32>
    %394 = vector.extract_strided_slice %392 {offsets = [0, 1], sizes = [16, 16], strides = [1, 1]} : vector<18x18xf32> to vector<16x16xf32>
    %395 = vector.extract_strided_slice %392 {offsets = [0, 2], sizes = [16, 16], strides = [1, 1]} : vector<18x18xf32> to vector<16x16xf32>
    %396 = vector.extract_strided_slice %392 {offsets = [1, 0], sizes = [16, 16], strides = [1, 1]} : vector<18x18xf32> to vector<16x16xf32>
    %397 = vector.extract_strided_slice %392 {offsets = [1, 1], sizes = [16, 16], strides = [1, 1]} : vector<18x18xf32> to vector<16x16xf32>
    %398 = vector.extract_strided_slice %392 {offsets = [1, 2], sizes = [16, 16], strides = [1, 1]} : vector<18x18xf32> to vector<16x16xf32>
    %399 = vector.extract_strided_slice %392 {offsets = [2, 0], sizes = [16, 16], strides = [1, 1]} : vector<18x18xf32> to vector<16x16xf32>
    %400 = vector.extract_strided_slice %392 {offsets = [2, 1], sizes = [16, 16], strides = [1, 1]} : vector<18x18xf32> to vector<16x16xf32>
    %401 = vector.extract_strided_slice %392 {offsets = [2, 2], sizes = [16, 16], strides = [1, 1]} : vector<18x18xf32> to vector<16x16xf32>
    %c18_58 = arith.constant 18 : index
    %402 = memref.load %arg4[%c18_58] : memref<81xf32, #tpu.memory_space<smem>>
    %403 = vector.broadcast %402 : f32 to vector<16x16xf32>
    %404 = arith.mulf %393, %403 : vector<16x16xf32>
    %405 = arith.addf %318, %404 : vector<16x16xf32>
    %c19_59 = arith.constant 19 : index
    %406 = memref.load %arg4[%c19_59] : memref<81xf32, #tpu.memory_space<smem>>
    %407 = vector.broadcast %406 : f32 to vector<16x16xf32>
    %408 = arith.mulf %394, %407 : vector<16x16xf32>
    %409 = arith.addf %405, %408 : vector<16x16xf32>
    %c20_60 = arith.constant 20 : index
    %410 = memref.load %arg4[%c20_60] : memref<81xf32, #tpu.memory_space<smem>>
    %411 = vector.broadcast %410 : f32 to vector<16x16xf32>
    %412 = arith.mulf %395, %411 : vector<16x16xf32>
    %413 = arith.addf %409, %412 : vector<16x16xf32>
    %c21_61 = arith.constant 21 : index
    %414 = memref.load %arg4[%c21_61] : memref<81xf32, #tpu.memory_space<smem>>
    %415 = vector.broadcast %414 : f32 to vector<16x16xf32>
    %416 = arith.mulf %396, %415 : vector<16x16xf32>
    %417 = arith.addf %413, %416 : vector<16x16xf32>
    %c22_62 = arith.constant 22 : index
    %418 = memref.load %arg4[%c22_62] : memref<81xf32, #tpu.memory_space<smem>>
    %419 = vector.broadcast %418 : f32 to vector<16x16xf32>
    %420 = arith.mulf %397, %419 : vector<16x16xf32>
    %421 = arith.addf %417, %420 : vector<16x16xf32>
    %c23_63 = arith.constant 23 : index
    %422 = memref.load %arg4[%c23_63] : memref<81xf32, #tpu.memory_space<smem>>
    %423 = vector.broadcast %422 : f32 to vector<16x16xf32>
    %424 = arith.mulf %398, %423 : vector<16x16xf32>
    %425 = arith.addf %421, %424 : vector<16x16xf32>
    %c24_64 = arith.constant 24 : index
    %426 = memref.load %arg4[%c24_64] : memref<81xf32, #tpu.memory_space<smem>>
    %427 = vector.broadcast %426 : f32 to vector<16x16xf32>
    %428 = arith.mulf %399, %427 : vector<16x16xf32>
    %429 = arith.addf %425, %428 : vector<16x16xf32>
    %c25_65 = arith.constant 25 : index
    %430 = memref.load %arg4[%c25_65] : memref<81xf32, #tpu.memory_space<smem>>
    %431 = vector.broadcast %430 : f32 to vector<16x16xf32>
    %432 = arith.mulf %400, %431 : vector<16x16xf32>
    %433 = arith.addf %429, %432 : vector<16x16xf32>
    %c26_66 = arith.constant 26 : index
    %434 = memref.load %arg4[%c26_66] : memref<81xf32, #tpu.memory_space<smem>>
    %435 = vector.broadcast %434 : f32 to vector<16x16xf32>
    %436 = arith.mulf %401, %435 : vector<16x16xf32>
    %437 = arith.addf %433, %436 : vector<16x16xf32>
    %c45 = arith.constant 45 : index
    %438 = memref.load %arg4[%c45] : memref<81xf32, #tpu.memory_space<smem>>
    %439 = vector.broadcast %438 : f32 to vector<16x16xf32>
    %440 = arith.mulf %393, %439 : vector<16x16xf32>
    %441 = arith.addf %354, %440 : vector<16x16xf32>
    %c46 = arith.constant 46 : index
    %442 = memref.load %arg4[%c46] : memref<81xf32, #tpu.memory_space<smem>>
    %443 = vector.broadcast %442 : f32 to vector<16x16xf32>
    %444 = arith.mulf %394, %443 : vector<16x16xf32>
    %445 = arith.addf %441, %444 : vector<16x16xf32>
    %c47 = arith.constant 47 : index
    %446 = memref.load %arg4[%c47] : memref<81xf32, #tpu.memory_space<smem>>
    %447 = vector.broadcast %446 : f32 to vector<16x16xf32>
    %448 = arith.mulf %395, %447 : vector<16x16xf32>
    %449 = arith.addf %445, %448 : vector<16x16xf32>
    %c48 = arith.constant 48 : index
    %450 = memref.load %arg4[%c48] : memref<81xf32, #tpu.memory_space<smem>>
    %451 = vector.broadcast %450 : f32 to vector<16x16xf32>
    %452 = arith.mulf %396, %451 : vector<16x16xf32>
    %453 = arith.addf %449, %452 : vector<16x16xf32>
    %c49 = arith.constant 49 : index
    %454 = memref.load %arg4[%c49] : memref<81xf32, #tpu.memory_space<smem>>
    %455 = vector.broadcast %454 : f32 to vector<16x16xf32>
    %456 = arith.mulf %397, %455 : vector<16x16xf32>
    %457 = arith.addf %453, %456 : vector<16x16xf32>
    %c50 = arith.constant 50 : index
    %458 = memref.load %arg4[%c50] : memref<81xf32, #tpu.memory_space<smem>>
    %459 = vector.broadcast %458 : f32 to vector<16x16xf32>
    %460 = arith.mulf %398, %459 : vector<16x16xf32>
    %461 = arith.addf %457, %460 : vector<16x16xf32>
    %c51 = arith.constant 51 : index
    %462 = memref.load %arg4[%c51] : memref<81xf32, #tpu.memory_space<smem>>
    %463 = vector.broadcast %462 : f32 to vector<16x16xf32>
    %464 = arith.mulf %399, %463 : vector<16x16xf32>
    %465 = arith.addf %461, %464 : vector<16x16xf32>
    %c52 = arith.constant 52 : index
    %466 = memref.load %arg4[%c52] : memref<81xf32, #tpu.memory_space<smem>>
    %467 = vector.broadcast %466 : f32 to vector<16x16xf32>
    %468 = arith.mulf %400, %467 : vector<16x16xf32>
    %469 = arith.addf %465, %468 : vector<16x16xf32>
    %c53 = arith.constant 53 : index
    %470 = memref.load %arg4[%c53] : memref<81xf32, #tpu.memory_space<smem>>
    %471 = vector.broadcast %470 : f32 to vector<16x16xf32>
    %472 = arith.mulf %401, %471 : vector<16x16xf32>
    %473 = arith.addf %469, %472 : vector<16x16xf32>
    %c72 = arith.constant 72 : index
    %474 = memref.load %arg4[%c72] : memref<81xf32, #tpu.memory_space<smem>>
    %475 = vector.broadcast %474 : f32 to vector<16x16xf32>
    %476 = arith.mulf %393, %475 : vector<16x16xf32>
    %477 = arith.addf %390, %476 : vector<16x16xf32>
    %c73 = arith.constant 73 : index
    %478 = memref.load %arg4[%c73] : memref<81xf32, #tpu.memory_space<smem>>
    %479 = vector.broadcast %478 : f32 to vector<16x16xf32>
    %480 = arith.mulf %394, %479 : vector<16x16xf32>
    %481 = arith.addf %477, %480 : vector<16x16xf32>
    %c74 = arith.constant 74 : index
    %482 = memref.load %arg4[%c74] : memref<81xf32, #tpu.memory_space<smem>>
    %483 = vector.broadcast %482 : f32 to vector<16x16xf32>
    %484 = arith.mulf %395, %483 : vector<16x16xf32>
    %485 = arith.addf %481, %484 : vector<16x16xf32>
    %c75 = arith.constant 75 : index
    %486 = memref.load %arg4[%c75] : memref<81xf32, #tpu.memory_space<smem>>
    %487 = vector.broadcast %486 : f32 to vector<16x16xf32>
    %488 = arith.mulf %396, %487 : vector<16x16xf32>
    %489 = arith.addf %485, %488 : vector<16x16xf32>
    %c76 = arith.constant 76 : index
    %490 = memref.load %arg4[%c76] : memref<81xf32, #tpu.memory_space<smem>>
    %491 = vector.broadcast %490 : f32 to vector<16x16xf32>
    %492 = arith.mulf %397, %491 : vector<16x16xf32>
    %493 = arith.addf %489, %492 : vector<16x16xf32>
    %c77 = arith.constant 77 : index
    %494 = memref.load %arg4[%c77] : memref<81xf32, #tpu.memory_space<smem>>
    %495 = vector.broadcast %494 : f32 to vector<16x16xf32>
    %496 = arith.mulf %398, %495 : vector<16x16xf32>
    %497 = arith.addf %493, %496 : vector<16x16xf32>
    %c78 = arith.constant 78 : index
    %498 = memref.load %arg4[%c78] : memref<81xf32, #tpu.memory_space<smem>>
    %499 = vector.broadcast %498 : f32 to vector<16x16xf32>
    %500 = arith.mulf %399, %499 : vector<16x16xf32>
    %501 = arith.addf %497, %500 : vector<16x16xf32>
    %c79 = arith.constant 79 : index
    %502 = memref.load %arg4[%c79] : memref<81xf32, #tpu.memory_space<smem>>
    %503 = vector.broadcast %502 : f32 to vector<16x16xf32>
    %504 = arith.mulf %400, %503 : vector<16x16xf32>
    %505 = arith.addf %501, %504 : vector<16x16xf32>
    %c80 = arith.constant 80 : index
    %506 = memref.load %arg4[%c80] : memref<81xf32, #tpu.memory_space<smem>>
    %507 = vector.broadcast %506 : f32 to vector<16x16xf32>
    %508 = arith.mulf %401, %507 : vector<16x16xf32>
    %509 = arith.addf %505, %508 : vector<16x16xf32>
    %cst_67 = arith.constant 0.000000e+00 : f32
    %510 = vector.broadcast %cst_67 : f32 to vector<16x16xf32>
    %511 = arith.maximumf %437, %510 : vector<16x16xf32>
    %cst_68 = arith.constant 0.000000e+00 : f32
    %512 = vector.broadcast %cst_68 : f32 to vector<16x16xf32>
    %513 = arith.maximumf %473, %512 : vector<16x16xf32>
    %cst_69 = arith.constant 0.000000e+00 : f32
    %514 = vector.broadcast %cst_69 : f32 to vector<16x16xf32>
    %515 = arith.maximumf %509, %514 : vector<16x16xf32>
    %c0_70 = arith.constant 0 : index
    %c1_71 = arith.constant 1 : index
    %c1_72 = arith.constant 1 : index
    %516 = vector.load %arg9[%c0_70, %c1_71, %c1_72] : memref<3x18x18xf32, #tpu.memory_space<vmem>>, vector<1x16x16xf32>
    %517 = vector.shape_cast %516 : vector<1x16x16xf32> to vector<16x16xf32>
    %518 = vector.shape_cast %511 : vector<16x16xf32> to vector<1x16x16xf32>
    tpu.vector_store %arg9[%c0_70, %c1_71, %c1_72], %518 {strides = array<i32>} : memref<3x18x18xf32, #tpu.memory_space<vmem>>, vector<1x16x16xf32>,
    %c1_73 = arith.constant 1 : index
    %c1_74 = arith.constant 1 : index
    %c1_75 = arith.constant 1 : index
    %519 = vector.load %arg9[%c1_73, %c1_74, %c1_75] : memref<3x18x18xf32, #tpu.memory_space<vmem>>, vector<1x16x16xf32>
    %520 = vector.shape_cast %519 : vector<1x16x16xf32> to vector<16x16xf32>
    %521 = vector.shape_cast %513 : vector<16x16xf32> to vector<1x16x16xf32>
    tpu.vector_store %arg9[%c1_73, %c1_74, %c1_75], %521 {strides = array<i32>} : memref<3x18x18xf32, #tpu.memory_space<vmem>>, vector<1x16x16xf32>,
    %c2_76 = arith.constant 2 : index
    %c1_77 = arith.constant 1 : index
    %c1_78 = arith.constant 1 : index
    %522 = vector.load %arg9[%c2_76, %c1_77, %c1_78] : memref<3x18x18xf32, #tpu.memory_space<vmem>>, vector<1x16x16xf32>
    %523 = vector.shape_cast %522 : vector<1x16x16xf32> to vector<16x16xf32>
    %524 = vector.shape_cast %515 : vector<16x16xf32> to vector<1x16x16xf32>
    tpu.vector_store %arg9[%c2_76, %c1_77, %c1_78], %524 {strides = array<i32>} : memref<3x18x18xf32, #tpu.memory_space<vmem>>, vector<1x16x16xf32>,
    %c0_79 = arith.constant 0 : index
    %525 = memref.load %arg7[%c0_79] : memref<3xf32, #tpu.memory_space<smem>>
    %526 = vector.broadcast %525 : f32 to vector<16x16xf32>
    %c1_80 = arith.constant 1 : index
    %527 = memref.load %arg7[%c1_80] : memref<3xf32, #tpu.memory_space<smem>>
    %528 = vector.broadcast %527 : f32 to vector<16x16xf32>
    %c2_81 = arith.constant 2 : index
    %529 = memref.load %arg7[%c2_81] : memref<3xf32, #tpu.memory_space<smem>>
    %530 = vector.broadcast %529 : f32 to vector<16x16xf32>
    %c0_82 = arith.constant 0 : index
    %c0_83 = arith.constant 0 : index
    %c0_84 = arith.constant 0 : index
    %531 = vector.load %arg9[%c0_82, %c0_83, %c0_84] : memref<3x18x18xf32, #tpu.memory_space<vmem>>, vector<1x18x18xf32>
    %532 = vector.shape_cast %531 : vector<1x18x18xf32> to vector<18x18xf32>
    %533 = vector.extract_strided_slice %532 {offsets = [0, 0], sizes = [16, 16], strides = [1, 1]} : vector<18x18xf32> to vector<16x16xf32>
    %534 = vector.extract_strided_slice %532 {offsets = [0, 1], sizes = [16, 16], strides = [1, 1]} : vector<18x18xf32> to vector<16x16xf32>
    %535 = vector.extract_strided_slice %532 {offsets = [0, 2], sizes = [16, 16], strides = [1, 1]} : vector<18x18xf32> to vector<16x16xf32>
    %536 = vector.extract_strided_slice %532 {offsets = [1, 0], sizes = [16, 16], strides = [1, 1]} : vector<18x18xf32> to vector<16x16xf32>
    %537 = vector.extract_strided_slice %532 {offsets = [1, 1], sizes = [16, 16], strides = [1, 1]} : vector<18x18xf32> to vector<16x16xf32>
    %538 = vector.extract_strided_slice %532 {offsets = [1, 2], sizes = [16, 16], strides = [1, 1]} : vector<18x18xf32> to vector<16x16xf32>
    %539 = vector.extract_strided_slice %532 {offsets = [2, 0], sizes = [16, 16], strides = [1, 1]} : vector<18x18xf32> to vector<16x16xf32>
    %540 = vector.extract_strided_slice %532 {offsets = [2, 1], sizes = [16, 16], strides = [1, 1]} : vector<18x18xf32> to vector<16x16xf32>
    %541 = vector.extract_strided_slice %532 {offsets = [2, 2], sizes = [16, 16], strides = [1, 1]} : vector<18x18xf32> to vector<16x16xf32>
    %c0_85 = arith.constant 0 : index
    %542 = memref.load %arg6[%c0_85] : memref<81xf32, #tpu.memory_space<smem>>
    %543 = vector.broadcast %542 : f32 to vector<16x16xf32>
    %544 = arith.mulf %533, %543 : vector<16x16xf32>
    %545 = arith.addf %526, %544 : vector<16x16xf32>
    %c1_86 = arith.constant 1 : index
    %546 = memref.load %arg6[%c1_86] : memref<81xf32, #tpu.memory_space<smem>>
    %547 = vector.broadcast %546 : f32 to vector<16x16xf32>
    %548 = arith.mulf %534, %547 : vector<16x16xf32>
    %549 = arith.addf %545, %548 : vector<16x16xf32>
    %c2_87 = arith.constant 2 : index
    %550 = memref.load %arg6[%c2_87] : memref<81xf32, #tpu.memory_space<smem>>
    %551 = vector.broadcast %550 : f32 to vector<16x16xf32>
    %552 = arith.mulf %535, %551 : vector<16x16xf32>
    %553 = arith.addf %549, %552 : vector<16x16xf32>
    %c3_88 = arith.constant 3 : index
    %554 = memref.load %arg6[%c3_88] : memref<81xf32, #tpu.memory_space<smem>>
    %555 = vector.broadcast %554 : f32 to vector<16x16xf32>
    %556 = arith.mulf %536, %555 : vector<16x16xf32>
    %557 = arith.addf %553, %556 : vector<16x16xf32>
    %c4_89 = arith.constant 4 : index
    %558 = memref.load %arg6[%c4_89] : memref<81xf32, #tpu.memory_space<smem>>
    %559 = vector.broadcast %558 : f32 to vector<16x16xf32>
    %560 = arith.mulf %537, %559 : vector<16x16xf32>
    %561 = arith.addf %557, %560 : vector<16x16xf32>
    %c5_90 = arith.constant 5 : index
    %562 = memref.load %arg6[%c5_90] : memref<81xf32, #tpu.memory_space<smem>>
    %563 = vector.broadcast %562 : f32 to vector<16x16xf32>
    %564 = arith.mulf %538, %563 : vector<16x16xf32>
    %565 = arith.addf %561, %564 : vector<16x16xf32>
    %c6_91 = arith.constant 6 : index
    %566 = memref.load %arg6[%c6_91] : memref<81xf32, #tpu.memory_space<smem>>
    %567 = vector.broadcast %566 : f32 to vector<16x16xf32>
    %568 = arith.mulf %539, %567 : vector<16x16xf32>
    %569 = arith.addf %565, %568 : vector<16x16xf32>
    %c7_92 = arith.constant 7 : index
    %570 = memref.load %arg6[%c7_92] : memref<81xf32, #tpu.memory_space<smem>>
    %571 = vector.broadcast %570 : f32 to vector<16x16xf32>
    %572 = arith.mulf %540, %571 : vector<16x16xf32>
    %573 = arith.addf %569, %572 : vector<16x16xf32>
    %c8_93 = arith.constant 8 : index
    %574 = memref.load %arg6[%c8_93] : memref<81xf32, #tpu.memory_space<smem>>
    %575 = vector.broadcast %574 : f32 to vector<16x16xf32>
    %576 = arith.mulf %541, %575 : vector<16x16xf32>
    %577 = arith.addf %573, %576 : vector<16x16xf32>
    %c27_94 = arith.constant 27 : index
    %578 = memref.load %arg6[%c27_94] : memref<81xf32, #tpu.memory_space<smem>>
    %579 = vector.broadcast %578 : f32 to vector<16x16xf32>
    %580 = arith.mulf %533, %579 : vector<16x16xf32>
    %581 = arith.addf %528, %580 : vector<16x16xf32>
    %c28_95 = arith.constant 28 : index
    %582 = memref.load %arg6[%c28_95] : memref<81xf32, #tpu.memory_space<smem>>
    %583 = vector.broadcast %582 : f32 to vector<16x16xf32>
    %584 = arith.mulf %534, %583 : vector<16x16xf32>
    %585 = arith.addf %581, %584 : vector<16x16xf32>
    %c29_96 = arith.constant 29 : index
    %586 = memref.load %arg6[%c29_96] : memref<81xf32, #tpu.memory_space<smem>>
    %587 = vector.broadcast %586 : f32 to vector<16x16xf32>
    %588 = arith.mulf %535, %587 : vector<16x16xf32>
    %589 = arith.addf %585, %588 : vector<16x16xf32>
    %c30_97 = arith.constant 30 : index
    %590 = memref.load %arg6[%c30_97] : memref<81xf32, #tpu.memory_space<smem>>
    %591 = vector.broadcast %590 : f32 to vector<16x16xf32>
    %592 = arith.mulf %536, %591 : vector<16x16xf32>
    %593 = arith.addf %589, %592 : vector<16x16xf32>
    %c31_98 = arith.constant 31 : index
    %594 = memref.load %arg6[%c31_98] : memref<81xf32, #tpu.memory_space<smem>>
    %595 = vector.broadcast %594 : f32 to vector<16x16xf32>
    %596 = arith.mulf %537, %595 : vector<16x16xf32>
    %597 = arith.addf %593, %596 : vector<16x16xf32>
    %c32_99 = arith.constant 32 : index
    %598 = memref.load %arg6[%c32_99] : memref<81xf32, #tpu.memory_space<smem>>
    %599 = vector.broadcast %598 : f32 to vector<16x16xf32>
    %600 = arith.mulf %538, %599 : vector<16x16xf32>
    %601 = arith.addf %597, %600 : vector<16x16xf32>
    %c33_100 = arith.constant 33 : index
    %602 = memref.load %arg6[%c33_100] : memref<81xf32, #tpu.memory_space<smem>>
    %603 = vector.broadcast %602 : f32 to vector<16x16xf32>
    %604 = arith.mulf %539, %603 : vector<16x16xf32>
    %605 = arith.addf %601, %604 : vector<16x16xf32>
    %c34_101 = arith.constant 34 : index
    %606 = memref.load %arg6[%c34_101] : memref<81xf32, #tpu.memory_space<smem>>
    %607 = vector.broadcast %606 : f32 to vector<16x16xf32>
    %608 = arith.mulf %540, %607 : vector<16x16xf32>
    %609 = arith.addf %605, %608 : vector<16x16xf32>
    %c35_102 = arith.constant 35 : index
    %610 = memref.load %arg6[%c35_102] : memref<81xf32, #tpu.memory_space<smem>>
    %611 = vector.broadcast %610 : f32 to vector<16x16xf32>
    %612 = arith.mulf %541, %611 : vector<16x16xf32>
    %613 = arith.addf %609, %612 : vector<16x16xf32>
    %c54_103 = arith.constant 54 : index
    %614 = memref.load %arg6[%c54_103] : memref<81xf32, #tpu.memory_space<smem>>
    %615 = vector.broadcast %614 : f32 to vector<16x16xf32>
    %616 = arith.mulf %533, %615 : vector<16x16xf32>
    %617 = arith.addf %530, %616 : vector<16x16xf32>
    %c55_104 = arith.constant 55 : index
    %618 = memref.load %arg6[%c55_104] : memref<81xf32, #tpu.memory_space<smem>>
    %619 = vector.broadcast %618 : f32 to vector<16x16xf32>
    %620 = arith.mulf %534, %619 : vector<16x16xf32>
    %621 = arith.addf %617, %620 : vector<16x16xf32>
    %c56_105 = arith.constant 56 : index
    %622 = memref.load %arg6[%c56_105] : memref<81xf32, #tpu.memory_space<smem>>
    %623 = vector.broadcast %622 : f32 to vector<16x16xf32>
    %624 = arith.mulf %535, %623 : vector<16x16xf32>
    %625 = arith.addf %621, %624 : vector<16x16xf32>
    %c57_106 = arith.constant 57 : index
    %626 = memref.load %arg6[%c57_106] : memref<81xf32, #tpu.memory_space<smem>>
    %627 = vector.broadcast %626 : f32 to vector<16x16xf32>
    %628 = arith.mulf %536, %627 : vector<16x16xf32>
    %629 = arith.addf %625, %628 : vector<16x16xf32>
    %c58_107 = arith.constant 58 : index
    %630 = memref.load %arg6[%c58_107] : memref<81xf32, #tpu.memory_space<smem>>
    %631 = vector.broadcast %630 : f32 to vector<16x16xf32>
    %632 = arith.mulf %537, %631 : vector<16x16xf32>
    %633 = arith.addf %629, %632 : vector<16x16xf32>
    %c59_108 = arith.constant 59 : index
    %634 = memref.load %arg6[%c59_108] : memref<81xf32, #tpu.memory_space<smem>>
    %635 = vector.broadcast %634 : f32 to vector<16x16xf32>
    %636 = arith.mulf %538, %635 : vector<16x16xf32>
    %637 = arith.addf %633, %636 : vector<16x16xf32>
    %c60_109 = arith.constant 60 : index
    %638 = memref.load %arg6[%c60_109] : memref<81xf32, #tpu.memory_space<smem>>
    %639 = vector.broadcast %638 : f32 to vector<16x16xf32>
    %640 = arith.mulf %539, %639 : vector<16x16xf32>
    %641 = arith.addf %637, %640 : vector<16x16xf32>
    %c61_110 = arith.constant 61 : index
    %642 = memref.load %arg6[%c61_110] : memref<81xf32, #tpu.memory_space<smem>>
    %643 = vector.broadcast %642 : f32 to vector<16x16xf32>
    %644 = arith.mulf %540, %643 : vector<16x16xf32>
    %645 = arith.addf %641, %644 : vector<16x16xf32>
    %c62_111 = arith.constant 62 : index
    %646 = memref.load %arg6[%c62_111] : memref<81xf32, #tpu.memory_space<smem>>
    %647 = vector.broadcast %646 : f32 to vector<16x16xf32>
    %648 = arith.mulf %541, %647 : vector<16x16xf32>
    %649 = arith.addf %645, %648 : vector<16x16xf32>
    %c1_112 = arith.constant 1 : index
    %c0_113 = arith.constant 0 : index
    %c0_114 = arith.constant 0 : index
    %650 = vector.load %arg9[%c1_112, %c0_113, %c0_114] : memref<3x18x18xf32, #tpu.memory_space<vmem>>, vector<1x18x18xf32>
    %651 = vector.shape_cast %650 : vector<1x18x18xf32> to vector<18x18xf32>
    %652 = vector.extract_strided_slice %651 {offsets = [0, 0], sizes = [16, 16], strides = [1, 1]} : vector<18x18xf32> to vector<16x16xf32>
    %653 = vector.extract_strided_slice %651 {offsets = [0, 1], sizes = [16, 16], strides = [1, 1]} : vector<18x18xf32> to vector<16x16xf32>
    %654 = vector.extract_strided_slice %651 {offsets = [0, 2], sizes = [16, 16], strides = [1, 1]} : vector<18x18xf32> to vector<16x16xf32>
    %655 = vector.extract_strided_slice %651 {offsets = [1, 0], sizes = [16, 16], strides = [1, 1]} : vector<18x18xf32> to vector<16x16xf32>
    %656 = vector.extract_strided_slice %651 {offsets = [1, 1], sizes = [16, 16], strides = [1, 1]} : vector<18x18xf32> to vector<16x16xf32>
    %657 = vector.extract_strided_slice %651 {offsets = [1, 2], sizes = [16, 16], strides = [1, 1]} : vector<18x18xf32> to vector<16x16xf32>
    %658 = vector.extract_strided_slice %651 {offsets = [2, 0], sizes = [16, 16], strides = [1, 1]} : vector<18x18xf32> to vector<16x16xf32>
    %659 = vector.extract_strided_slice %651 {offsets = [2, 1], sizes = [16, 16], strides = [1, 1]} : vector<18x18xf32> to vector<16x16xf32>
    %660 = vector.extract_strided_slice %651 {offsets = [2, 2], sizes = [16, 16], strides = [1, 1]} : vector<18x18xf32> to vector<16x16xf32>
    %c9_115 = arith.constant 9 : index
    %661 = memref.load %arg6[%c9_115] : memref<81xf32, #tpu.memory_space<smem>>
    %662 = vector.broadcast %661 : f32 to vector<16x16xf32>
    %663 = arith.mulf %652, %662 : vector<16x16xf32>
    %664 = arith.addf %577, %663 : vector<16x16xf32>
    %c10_116 = arith.constant 10 : index
    %665 = memref.load %arg6[%c10_116] : memref<81xf32, #tpu.memory_space<smem>>
    %666 = vector.broadcast %665 : f32 to vector<16x16xf32>
    %667 = arith.mulf %653, %666 : vector<16x16xf32>
    %668 = arith.addf %664, %667 : vector<16x16xf32>
    %c11_117 = arith.constant 11 : index
    %669 = memref.load %arg6[%c11_117] : memref<81xf32, #tpu.memory_space<smem>>
    %670 = vector.broadcast %669 : f32 to vector<16x16xf32>
    %671 = arith.mulf %654, %670 : vector<16x16xf32>
    %672 = arith.addf %668, %671 : vector<16x16xf32>
    %c12_118 = arith.constant 12 : index
    %673 = memref.load %arg6[%c12_118] : memref<81xf32, #tpu.memory_space<smem>>
    %674 = vector.broadcast %673 : f32 to vector<16x16xf32>
    %675 = arith.mulf %655, %674 : vector<16x16xf32>
    %676 = arith.addf %672, %675 : vector<16x16xf32>
    %c13_119 = arith.constant 13 : index
    %677 = memref.load %arg6[%c13_119] : memref<81xf32, #tpu.memory_space<smem>>
    %678 = vector.broadcast %677 : f32 to vector<16x16xf32>
    %679 = arith.mulf %656, %678 : vector<16x16xf32>
    %680 = arith.addf %676, %679 : vector<16x16xf32>
    %c14_120 = arith.constant 14 : index
    %681 = memref.load %arg6[%c14_120] : memref<81xf32, #tpu.memory_space<smem>>
    %682 = vector.broadcast %681 : f32 to vector<16x16xf32>
    %683 = arith.mulf %657, %682 : vector<16x16xf32>
    %684 = arith.addf %680, %683 : vector<16x16xf32>
    %c15_121 = arith.constant 15 : index
    %685 = memref.load %arg6[%c15_121] : memref<81xf32, #tpu.memory_space<smem>>
    %686 = vector.broadcast %685 : f32 to vector<16x16xf32>
    %687 = arith.mulf %658, %686 : vector<16x16xf32>
    %688 = arith.addf %684, %687 : vector<16x16xf32>
    %c16_122 = arith.constant 16 : index
    %689 = memref.load %arg6[%c16_122] : memref<81xf32, #tpu.memory_space<smem>>
    %690 = vector.broadcast %689 : f32 to vector<16x16xf32>
    %691 = arith.mulf %659, %690 : vector<16x16xf32>
    %692 = arith.addf %688, %691 : vector<16x16xf32>
    %c17_123 = arith.constant 17 : index
    %693 = memref.load %arg6[%c17_123] : memref<81xf32, #tpu.memory_space<smem>>
    %694 = vector.broadcast %693 : f32 to vector<16x16xf32>
    %695 = arith.mulf %660, %694 : vector<16x16xf32>
    %696 = arith.addf %692, %695 : vector<16x16xf32>
    %c36_124 = arith.constant 36 : index
    %697 = memref.load %arg6[%c36_124] : memref<81xf32, #tpu.memory_space<smem>>
    %698 = vector.broadcast %697 : f32 to vector<16x16xf32>
    %699 = arith.mulf %652, %698 : vector<16x16xf32>
    %700 = arith.addf %613, %699 : vector<16x16xf32>
    %c37_125 = arith.constant 37 : index
    %701 = memref.load %arg6[%c37_125] : memref<81xf32, #tpu.memory_space<smem>>
    %702 = vector.broadcast %701 : f32 to vector<16x16xf32>
    %703 = arith.mulf %653, %702 : vector<16x16xf32>
    %704 = arith.addf %700, %703 : vector<16x16xf32>
    %c38_126 = arith.constant 38 : index
    %705 = memref.load %arg6[%c38_126] : memref<81xf32, #tpu.memory_space<smem>>
    %706 = vector.broadcast %705 : f32 to vector<16x16xf32>
    %707 = arith.mulf %654, %706 : vector<16x16xf32>
    %708 = arith.addf %704, %707 : vector<16x16xf32>
    %c39_127 = arith.constant 39 : index
    %709 = memref.load %arg6[%c39_127] : memref<81xf32, #tpu.memory_space<smem>>
    %710 = vector.broadcast %709 : f32 to vector<16x16xf32>
    %711 = arith.mulf %655, %710 : vector<16x16xf32>
    %712 = arith.addf %708, %711 : vector<16x16xf32>
    %c40_128 = arith.constant 40 : index
    %713 = memref.load %arg6[%c40_128] : memref<81xf32, #tpu.memory_space<smem>>
    %714 = vector.broadcast %713 : f32 to vector<16x16xf32>
    %715 = arith.mulf %656, %714 : vector<16x16xf32>
    %716 = arith.addf %712, %715 : vector<16x16xf32>
    %c41_129 = arith.constant 41 : index
    %717 = memref.load %arg6[%c41_129] : memref<81xf32, #tpu.memory_space<smem>>
    %718 = vector.broadcast %717 : f32 to vector<16x16xf32>
    %719 = arith.mulf %657, %718 : vector<16x16xf32>
    %720 = arith.addf %716, %719 : vector<16x16xf32>
    %c42_130 = arith.constant 42 : index
    %721 = memref.load %arg6[%c42_130] : memref<81xf32, #tpu.memory_space<smem>>
    %722 = vector.broadcast %721 : f32 to vector<16x16xf32>
    %723 = arith.mulf %658, %722 : vector<16x16xf32>
    %724 = arith.addf %720, %723 : vector<16x16xf32>
    %c43_131 = arith.constant 43 : index
    %725 = memref.load %arg6[%c43_131] : memref<81xf32, #tpu.memory_space<smem>>
    %726 = vector.broadcast %725 : f32 to vector<16x16xf32>
    %727 = arith.mulf %659, %726 : vector<16x16xf32>
    %728 = arith.addf %724, %727 : vector<16x16xf32>
    %c44_132 = arith.constant 44 : index
    %729 = memref.load %arg6[%c44_132] : memref<81xf32, #tpu.memory_space<smem>>
    %730 = vector.broadcast %729 : f32 to vector<16x16xf32>
    %731 = arith.mulf %660, %730 : vector<16x16xf32>
    %732 = arith.addf %728, %731 : vector<16x16xf32>
    %c63_133 = arith.constant 63 : index
    %733 = memref.load %arg6[%c63_133] : memref<81xf32, #tpu.memory_space<smem>>
    %734 = vector.broadcast %733 : f32 to vector<16x16xf32>
    %735 = arith.mulf %652, %734 : vector<16x16xf32>
    %736 = arith.addf %649, %735 : vector<16x16xf32>
    %c64_134 = arith.constant 64 : index
    %737 = memref.load %arg6[%c64_134] : memref<81xf32, #tpu.memory_space<smem>>
    %738 = vector.broadcast %737 : f32 to vector<16x16xf32>
    %739 = arith.mulf %653, %738 : vector<16x16xf32>
    %740 = arith.addf %736, %739 : vector<16x16xf32>
    %c65_135 = arith.constant 65 : index
    %741 = memref.load %arg6[%c65_135] : memref<81xf32, #tpu.memory_space<smem>>
    %742 = vector.broadcast %741 : f32 to vector<16x16xf32>
    %743 = arith.mulf %654, %742 : vector<16x16xf32>
    %744 = arith.addf %740, %743 : vector<16x16xf32>
    %c66_136 = arith.constant 66 : index
    %745 = memref.load %arg6[%c66_136] : memref<81xf32, #tpu.memory_space<smem>>
    %746 = vector.broadcast %745 : f32 to vector<16x16xf32>
    %747 = arith.mulf %655, %746 : vector<16x16xf32>
    %748 = arith.addf %744, %747 : vector<16x16xf32>
    %c67_137 = arith.constant 67 : index
    %749 = memref.load %arg6[%c67_137] : memref<81xf32, #tpu.memory_space<smem>>
    %750 = vector.broadcast %749 : f32 to vector<16x16xf32>
    %751 = arith.mulf %656, %750 : vector<16x16xf32>
    %752 = arith.addf %748, %751 : vector<16x16xf32>
    %c68_138 = arith.constant 68 : index
    %753 = memref.load %arg6[%c68_138] : memref<81xf32, #tpu.memory_space<smem>>
    %754 = vector.broadcast %753 : f32 to vector<16x16xf32>
    %755 = arith.mulf %657, %754 : vector<16x16xf32>
    %756 = arith.addf %752, %755 : vector<16x16xf32>
    %c69_139 = arith.constant 69 : index
    %757 = memref.load %arg6[%c69_139] : memref<81xf32, #tpu.memory_space<smem>>
    %758 = vector.broadcast %757 : f32 to vector<16x16xf32>
    %759 = arith.mulf %658, %758 : vector<16x16xf32>
    %760 = arith.addf %756, %759 : vector<16x16xf32>
    %c70_140 = arith.constant 70 : index
    %761 = memref.load %arg6[%c70_140] : memref<81xf32, #tpu.memory_space<smem>>
    %762 = vector.broadcast %761 : f32 to vector<16x16xf32>
    %763 = arith.mulf %659, %762 : vector<16x16xf32>
    %764 = arith.addf %760, %763 : vector<16x16xf32>
    %c71_141 = arith.constant 71 : index
    %765 = memref.load %arg6[%c71_141] : memref<81xf32, #tpu.memory_space<smem>>
    %766 = vector.broadcast %765 : f32 to vector<16x16xf32>
    %767 = arith.mulf %660, %766 : vector<16x16xf32>
    %768 = arith.addf %764, %767 : vector<16x16xf32>
    %c2_142 = arith.constant 2 : index
    %c0_143 = arith.constant 0 : index
    %c0_144 = arith.constant 0 : index
    %769 = vector.load %arg9[%c2_142, %c0_143, %c0_144] : memref<3x18x18xf32, #tpu.memory_space<vmem>>, vector<1x18x18xf32>
    %770 = vector.shape_cast %769 : vector<1x18x18xf32> to vector<18x18xf32>
    %771 = vector.extract_strided_slice %770 {offsets = [0, 0], sizes = [16, 16], strides = [1, 1]} : vector<18x18xf32> to vector<16x16xf32>
    %772 = vector.extract_strided_slice %770 {offsets = [0, 1], sizes = [16, 16], strides = [1, 1]} : vector<18x18xf32> to vector<16x16xf32>
    %773 = vector.extract_strided_slice %770 {offsets = [0, 2], sizes = [16, 16], strides = [1, 1]} : vector<18x18xf32> to vector<16x16xf32>
    %774 = vector.extract_strided_slice %770 {offsets = [1, 0], sizes = [16, 16], strides = [1, 1]} : vector<18x18xf32> to vector<16x16xf32>
    %775 = vector.extract_strided_slice %770 {offsets = [1, 1], sizes = [16, 16], strides = [1, 1]} : vector<18x18xf32> to vector<16x16xf32>
    %776 = vector.extract_strided_slice %770 {offsets = [1, 2], sizes = [16, 16], strides = [1, 1]} : vector<18x18xf32> to vector<16x16xf32>
    %777 = vector.extract_strided_slice %770 {offsets = [2, 0], sizes = [16, 16], strides = [1, 1]} : vector<18x18xf32> to vector<16x16xf32>
    %778 = vector.extract_strided_slice %770 {offsets = [2, 1], sizes = [16, 16], strides = [1, 1]} : vector<18x18xf32> to vector<16x16xf32>
    %779 = vector.extract_strided_slice %770 {offsets = [2, 2], sizes = [16, 16], strides = [1, 1]} : vector<18x18xf32> to vector<16x16xf32>
    %c18_145 = arith.constant 18 : index
    %780 = memref.load %arg6[%c18_145] : memref<81xf32, #tpu.memory_space<smem>>
    %781 = vector.broadcast %780 : f32 to vector<16x16xf32>
    %782 = arith.mulf %771, %781 : vector<16x16xf32>
    %783 = arith.addf %696, %782 : vector<16x16xf32>
    %c19_146 = arith.constant 19 : index
    %784 = memref.load %arg6[%c19_146] : memref<81xf32, #tpu.memory_space<smem>>
    %785 = vector.broadcast %784 : f32 to vector<16x16xf32>
    %786 = arith.mulf %772, %785 : vector<16x16xf32>
    %787 = arith.addf %783, %786 : vector<16x16xf32>
    %c20_147 = arith.constant 20 : index
    %788 = memref.load %arg6[%c20_147] : memref<81xf32, #tpu.memory_space<smem>>
    %789 = vector.broadcast %788 : f32 to vector<16x16xf32>
    %790 = arith.mulf %773, %789 : vector<16x16xf32>
    %791 = arith.addf %787, %790 : vector<16x16xf32>
    %c21_148 = arith.constant 21 : index
    %792 = memref.load %arg6[%c21_148] : memref<81xf32, #tpu.memory_space<smem>>
    %793 = vector.broadcast %792 : f32 to vector<16x16xf32>
    %794 = arith.mulf %774, %793 : vector<16x16xf32>
    %795 = arith.addf %791, %794 : vector<16x16xf32>
    %c22_149 = arith.constant 22 : index
    %796 = memref.load %arg6[%c22_149] : memref<81xf32, #tpu.memory_space<smem>>
    %797 = vector.broadcast %796 : f32 to vector<16x16xf32>
    %798 = arith.mulf %775, %797 : vector<16x16xf32>
    %799 = arith.addf %795, %798 : vector<16x16xf32>
    %c23_150 = arith.constant 23 : index
    %800 = memref.load %arg6[%c23_150] : memref<81xf32, #tpu.memory_space<smem>>
    %801 = vector.broadcast %800 : f32 to vector<16x16xf32>
    %802 = arith.mulf %776, %801 : vector<16x16xf32>
    %803 = arith.addf %799, %802 : vector<16x16xf32>
    %c24_151 = arith.constant 24 : index
    %804 = memref.load %arg6[%c24_151] : memref<81xf32, #tpu.memory_space<smem>>
    %805 = vector.broadcast %804 : f32 to vector<16x16xf32>
    %806 = arith.mulf %777, %805 : vector<16x16xf32>
    %807 = arith.addf %803, %806 : vector<16x16xf32>
    %c25_152 = arith.constant 25 : index
    %808 = memref.load %arg6[%c25_152] : memref<81xf32, #tpu.memory_space<smem>>
    %809 = vector.broadcast %808 : f32 to vector<16x16xf32>
    %810 = arith.mulf %778, %809 : vector<16x16xf32>
    %811 = arith.addf %807, %810 : vector<16x16xf32>
    %c26_153 = arith.constant 26 : index
    %812 = memref.load %arg6[%c26_153] : memref<81xf32, #tpu.memory_space<smem>>
    %813 = vector.broadcast %812 : f32 to vector<16x16xf32>
    %814 = arith.mulf %779, %813 : vector<16x16xf32>
    %815 = arith.addf %811, %814 : vector<16x16xf32>
    %c45_154 = arith.constant 45 : index
    %816 = memref.load %arg6[%c45_154] : memref<81xf32, #tpu.memory_space<smem>>
    %817 = vector.broadcast %816 : f32 to vector<16x16xf32>
    %818 = arith.mulf %771, %817 : vector<16x16xf32>
    %819 = arith.addf %732, %818 : vector<16x16xf32>
    %c46_155 = arith.constant 46 : index
    %820 = memref.load %arg6[%c46_155] : memref<81xf32, #tpu.memory_space<smem>>
    %821 = vector.broadcast %820 : f32 to vector<16x16xf32>
    %822 = arith.mulf %772, %821 : vector<16x16xf32>
    %823 = arith.addf %819, %822 : vector<16x16xf32>
    %c47_156 = arith.constant 47 : index
    %824 = memref.load %arg6[%c47_156] : memref<81xf32, #tpu.memory_space<smem>>
    %825 = vector.broadcast %824 : f32 to vector<16x16xf32>
    %826 = arith.mulf %773, %825 : vector<16x16xf32>
    %827 = arith.addf %823, %826 : vector<16x16xf32>
    %c48_157 = arith.constant 48 : index
    %828 = memref.load %arg6[%c48_157] : memref<81xf32, #tpu.memory_space<smem>>
    %829 = vector.broadcast %828 : f32 to vector<16x16xf32>
    %830 = arith.mulf %774, %829 : vector<16x16xf32>
    %831 = arith.addf %827, %830 : vector<16x16xf32>
    %c49_158 = arith.constant 49 : index
    %832 = memref.load %arg6[%c49_158] : memref<81xf32, #tpu.memory_space<smem>>
    %833 = vector.broadcast %832 : f32 to vector<16x16xf32>
    %834 = arith.mulf %775, %833 : vector<16x16xf32>
    %835 = arith.addf %831, %834 : vector<16x16xf32>
    %c50_159 = arith.constant 50 : index
    %836 = memref.load %arg6[%c50_159] : memref<81xf32, #tpu.memory_space<smem>>
    %837 = vector.broadcast %836 : f32 to vector<16x16xf32>
    %838 = arith.mulf %776, %837 : vector<16x16xf32>
    %839 = arith.addf %835, %838 : vector<16x16xf32>
    %c51_160 = arith.constant 51 : index
    %840 = memref.load %arg6[%c51_160] : memref<81xf32, #tpu.memory_space<smem>>
    %841 = vector.broadcast %840 : f32 to vector<16x16xf32>
    %842 = arith.mulf %777, %841 : vector<16x16xf32>
    %843 = arith.addf %839, %842 : vector<16x16xf32>
    %c52_161 = arith.constant 52 : index
    %844 = memref.load %arg6[%c52_161] : memref<81xf32, #tpu.memory_space<smem>>
    %845 = vector.broadcast %844 : f32 to vector<16x16xf32>
    %846 = arith.mulf %778, %845 : vector<16x16xf32>
    %847 = arith.addf %843, %846 : vector<16x16xf32>
    %c53_162 = arith.constant 53 : index
    %848 = memref.load %arg6[%c53_162] : memref<81xf32, #tpu.memory_space<smem>>
    %849 = vector.broadcast %848 : f32 to vector<16x16xf32>
    %850 = arith.mulf %779, %849 : vector<16x16xf32>
    %851 = arith.addf %847, %850 : vector<16x16xf32>
    %c72_163 = arith.constant 72 : index
    %852 = memref.load %arg6[%c72_163] : memref<81xf32, #tpu.memory_space<smem>>
    %853 = vector.broadcast %852 : f32 to vector<16x16xf32>
    %854 = arith.mulf %771, %853 : vector<16x16xf32>
    %855 = arith.addf %768, %854 : vector<16x16xf32>
    %c73_164 = arith.constant 73 : index
    %856 = memref.load %arg6[%c73_164] : memref<81xf32, #tpu.memory_space<smem>>
    %857 = vector.broadcast %856 : f32 to vector<16x16xf32>
    %858 = arith.mulf %772, %857 : vector<16x16xf32>
    %859 = arith.addf %855, %858 : vector<16x16xf32>
    %c74_165 = arith.constant 74 : index
    %860 = memref.load %arg6[%c74_165] : memref<81xf32, #tpu.memory_space<smem>>
    %861 = vector.broadcast %860 : f32 to vector<16x16xf32>
    %862 = arith.mulf %773, %861 : vector<16x16xf32>
    %863 = arith.addf %859, %862 : vector<16x16xf32>
    %c75_166 = arith.constant 75 : index
    %864 = memref.load %arg6[%c75_166] : memref<81xf32, #tpu.memory_space<smem>>
    %865 = vector.broadcast %864 : f32 to vector<16x16xf32>
    %866 = arith.mulf %774, %865 : vector<16x16xf32>
    %867 = arith.addf %863, %866 : vector<16x16xf32>
    %c76_167 = arith.constant 76 : index
    %868 = memref.load %arg6[%c76_167] : memref<81xf32, #tpu.memory_space<smem>>
    %869 = vector.broadcast %868 : f32 to vector<16x16xf32>
    %870 = arith.mulf %775, %869 : vector<16x16xf32>
    %871 = arith.addf %867, %870 : vector<16x16xf32>
    %c77_168 = arith.constant 77 : index
    %872 = memref.load %arg6[%c77_168] : memref<81xf32, #tpu.memory_space<smem>>
    %873 = vector.broadcast %872 : f32 to vector<16x16xf32>
    %874 = arith.mulf %776, %873 : vector<16x16xf32>
    %875 = arith.addf %871, %874 : vector<16x16xf32>
    %c78_169 = arith.constant 78 : index
    %876 = memref.load %arg6[%c78_169] : memref<81xf32, #tpu.memory_space<smem>>
    %877 = vector.broadcast %876 : f32 to vector<16x16xf32>
    %878 = arith.mulf %777, %877 : vector<16x16xf32>
    %879 = arith.addf %875, %878 : vector<16x16xf32>
    %c79_170 = arith.constant 79 : index
    %880 = memref.load %arg6[%c79_170] : memref<81xf32, #tpu.memory_space<smem>>
    %881 = vector.broadcast %880 : f32 to vector<16x16xf32>
    %882 = arith.mulf %778, %881 : vector<16x16xf32>
    %883 = arith.addf %879, %882 : vector<16x16xf32>
    %c80_171 = arith.constant 80 : index
    %884 = memref.load %arg6[%c80_171] : memref<81xf32, #tpu.memory_space<smem>>
    %885 = vector.broadcast %884 : f32 to vector<16x16xf32>
    %886 = arith.mulf %779, %885 : vector<16x16xf32>
    %887 = arith.addf %883, %886 : vector<16x16xf32>
    %c0_172 = arith.constant 0 : index
    %c0_173 = arith.constant 0 : index
    %c0_174 = arith.constant 0 : index
    %c0_175 = arith.constant 0 : index
    %888 = vector.load %arg8[%c0_172, %c0_173, %c0_174, %c0_175] : memref<1x3x16x16xf32, #tpu.memory_space<vmem>>, vector<1x1x16x16xf32>
    %889 = vector.shape_cast %888 : vector<1x1x16x16xf32> to vector<16x16xf32>
    %890 = vector.shape_cast %815 : vector<16x16xf32> to vector<1x1x16x16xf32>
    tpu.vector_store %arg8[%c0_172, %c0_173, %c0_174, %c0_175], %890 {strides = array<i32>} : memref<1x3x16x16xf32, #tpu.memory_space<vmem>>, vector<1x1x16x16xf32>,
    %c0_176 = arith.constant 0 : index
    %c1_177 = arith.constant 1 : index
    %c0_178 = arith.constant 0 : index
    %c0_179 = arith.constant 0 : index
    %891 = vector.load %arg8[%c0_176, %c1_177, %c0_178, %c0_179] : memref<1x3x16x16xf32, #tpu.memory_space<vmem>>, vector<1x1x16x16xf32>
    %892 = vector.shape_cast %891 : vector<1x1x16x16xf32> to vector<16x16xf32>
    %893 = vector.shape_cast %851 : vector<16x16xf32> to vector<1x1x16x16xf32>
    tpu.vector_store %arg8[%c0_176, %c1_177, %c0_178, %c0_179], %893 {strides = array<i32>} : memref<1x3x16x16xf32, #tpu.memory_space<vmem>>, vector<1x1x16x16xf32>,
    %c0_180 = arith.constant 0 : index
    %c2_181 = arith.constant 2 : index
    %c0_182 = arith.constant 0 : index
    %c0_183 = arith.constant 0 : index
    %894 = vector.load %arg8[%c0_180, %c2_181, %c0_182, %c0_183] : memref<1x3x16x16xf32, #tpu.memory_space<vmem>>, vector<1x1x16x16xf32>
    %895 = vector.shape_cast %894 : vector<1x1x16x16xf32> to vector<16x16xf32>
    %896 = vector.shape_cast %887 : vector<16x16xf32> to vector<1x1x16x16xf32>
    tpu.vector_store %arg8[%c0_180, %c2_181, %c0_182, %c0_183], %896 {strides = array<i32>} : memref<1x3x16x16xf32, #tpu.memory_space<vmem>>, vector<1x1x16x16xf32>,
    return
  }
  func.func @transform_0(%arg0: i32) -> (i32, i32, i32, i32) {
    %c0_i32 = arith.constant 0 : i32
    %c0_i32_0 = arith.constant 0 : i32
    %c0_i32_1 = arith.constant 0 : i32
    %c0_i32_2 = arith.constant 0 : i32
    return %arg0, %c0_i32, %c0_i32_0, %c0_i32_1 : i32, i32, i32, i32
  }
  func.func @transform_1(%arg0: i32) -> i32 {
    %c0_i32 = arith.constant 0 : i32
    %c0_i32_0 = arith.constant 0 : i32
    return %c0_i32 : i32
  }
  func.func @transform_2(%arg0: i32) -> i32 {
    %c0_i32 = arith.constant 0 : i32
    %c0_i32_0 = arith.constant 0 : i32
    return %c0_i32 : i32
  }
  func.func @transform_3(%arg0: i32) -> i32 {
    %c0_i32 = arith.constant 0 : i32
    %c0_i32_0 = arith.constant 0 : i32
    return %c0_i32 : i32
  }
  func.func @transform_4(%arg0: i32) -> i32 {
    %c0_i32 = arith.constant 0 : i32
    %c0_i32_0 = arith.constant 0 : i32
    return %c0_i32 : i32
  }
  func.func @transform_5(%arg0: i32) -> i32 {
    %c0_i32 = arith.constant 0 : i32
    %c0_i32_0 = arith.constant 0 : i32
    return %c0_i32 : i32
  }
  func.func @transform_6(%arg0: i32) -> i32 {
    %c0_i32 = arith.constant 0 : i32
    %c0_i32_0 = arith.constant 0 : i32
    return %c0_i32 : i32
  }
  func.func @transform_7(%arg0: i32) -> (i32, i32, i32, i32) {
    %c0_i32 = arith.constant 0 : i32
    %c0_i32_0 = arith.constant 0 : i32
    %c0_i32_1 = arith.constant 0 : i32
    %c0_i32_2 = arith.constant 0 : i32
    return %arg0, %c0_i32, %c0_i32_0, %c0_i32_1 : i32, i32, i32, i32
  }
}

</mosaic_0001>

<llo_original>
// kernel: tpu_custom_call.1
$region0: #{tpu_custom_call.1}
  #allocation0 [shape = 'u32[]', space=smem, size = 0x4, offset = 0x4, fixed_abs, tag = 'smem constant byte address 0x4 - core index']
  #allocation1 [shape = 'u32[144,128]{1,0:T(1,128)}', space=vmem, size = 0x12000, scoped, tag = 'internal scratch']
  #allocation2 [shape = 'f32[3,18,18]{2,1,0:T(8,128)}', space=vmem, size = 0x9000, scoped, tag = 'scratch operand']
  %s0 = inlined_call_operand.hbm [shape: f32[2,1,16,16], index: 0, kind: input, shape index: {}]
  %s1 = inlined_call_operand.vmem [shape: f32[27], index: 1, kind: input, shape index: {}]
  %s2 = inlined_call_operand.vmem [shape: f32[3], index: 2, kind: input, shape index: {}]
  %s3 = inlined_call_operand.vmem [shape: f32[81], index: 3, kind: input, shape index: {}]
  %s4 = inlined_call_operand.vmem [shape: f32[3], index: 4, kind: input, shape index: {}]
  %s5 = inlined_call_operand.vmem [shape: f32[81], index: 5, kind: input, shape index: {}]
  %s6 = inlined_call_operand.vmem [shape: f32[3], index: 6, kind: input, shape index: {}]
  %s7 = inlined_call_operand.hbm [shape: f32[2,3,16,16], index: 7, kind: output, shape index: {}]
  %s8 = sld [smem:[#allocation0]]
  $region89: #{tpu_custom_call.1} parent=0
    _
  %s10 = ssub.s32 1, %s8
  %s11 = scalar_select 0, %s10, %s8
  $region1: #{tpu_custom_call.1} parent=0
    #allocation3 [shape = 'u8[16384]{0}', space=vmem, size = 0x4000, scoped, tag = 'input window, operand 0']
    #allocation4 [shape = 's32[2]{0}', space=sflag, size = 0x8, scoped, tag = 'scoped memory for tpu_custom_call.1']
    #allocation5 [shape = 's32[2]{0}', space=sflag, size = 0x8, scoped, tag = 'scoped memory for tpu_custom_call.1']
    #allocation6 [shape = 's32[2]{0}', space=sflag, size = 0x8, scoped, tag = 'scoped memory for tpu_custom_call.1']
    #allocation7 [shape = 'u8[512]{0}', space=smem, size = 0x200, scoped, tag = 'input window, operand 1, single buffered']
    #allocation8 [shape = 'u8[512]{0}', space=smem, size = 0x200, scoped, tag = 'input window, operand 2, single buffered']
    #allocation9 [shape = 's32[1]{0}', space=sflag, size = 0x4, scoped, tag = 'scoped memory for tpu_custom_call.1']
    #allocation10 [shape = 'u8[512]{0}', space=smem, size = 0x200, scoped, tag = 'input window, operand 3, single buffered']
    #allocation11 [shape = 'u8[512]{0}', space=smem, size = 0x200, scoped, tag = 'input window, operand 4, single buffered']
    #allocation12 [shape = 's32[1]{0}', space=sflag, size = 0x4, scoped, tag = 'scoped memory for tpu_custom_call.1']
    #allocation13 [shape = 'u8[512]{0}', space=smem, size = 0x200, scoped, tag = 'input window, operand 5, single buffered']
    #allocation14 [shape = 'u8[512]{0}', space=smem, size = 0x200, scoped, tag = 'input window, operand 6, single buffered']
    #allocation15 [shape = 's32[1]{0}', space=sflag, size = 0x4, scoped, tag = 'scoped memory for tpu_custom_call.1']
    #allocation16 [shape = 'u8[49152]{0}', space=vmem, size = 0xc000, scoped, tag = 'output window, operand 0']
    %12 = vsyncpa [#allocation4], 0
    %s13 = scalar_lea.sflag [#allocation4], 1
    %14 = vsyncpa %s13, 0
    %15 = vsyncpa [#allocation6], 0
    %16 = vsyncpa [#allocation9], 0
    %17 = vsyncpa [#allocation12], 0
    %18 = vsyncpa [#allocation15], 0
    %19 = vsyncpa [#allocation5], 0
    %s20 = scalar_lea.sflag [#allocation5], 1
    %21 = vsyncpa %s20, 0
    loop: start=0, step=1, limit=4
    $region2: #{tpu_custom_call.1} parent=1 // loop_pre_header
      _
    $region3: #{tpu_custom_call.1} parent=1 // loop_header
      %s23 = sphi 0, %s27
      %p24 = scmp.ge.s32.totalorder %s23, 4
      %s33 = sphi 0, %s35
      %s36 = sphi 0, %s33
      %s37 = sphi 0, %s36
      %s53 = sphi 0, %s37
      %s57 = sphi 0, %s57
      %s59 = sphi 0, %s57
      %s60 = sphi 0, %s59
      %s74 = sphi 0, %s60
      %s78 = sphi 0, %s78
      %s80 = sphi 0, %s78
      %s81 = sphi 0, %s80
      %s95 = sphi 0, %s81
      %s99 = sphi 0, %s99
      %s101 = sphi 0, %s99
      %s102 = sphi 0, %s101
      %s116 = sphi 0, %s102
      %s120 = sphi 0, %s120
      %s122 = sphi 0, %s120
      %s123 = sphi 0, %s122
      %s137 = sphi 0, %s123
      %s141 = sphi 0, %s141
      %s143 = sphi 0, %s141
      %s144 = sphi 0, %s143
      %s158 = sphi 0, %s144
      %s162 = sphi 0, %s162
      %s164 = sphi 0, %s162
      %s165 = sphi 0, %s164
      %s179 = sphi 0, %s165
      %s185 = sphi 0, %s187
      %s188 = sphi 0, %s185
      %s189 = sphi 0, %s188
      %s205 = sphi 0, %s189
    $region4: #{tpu_custom_call.1} parent=1 // loop_header_branch
      %26 = sbr.rel (%p24) target = $region8
    $region5: #{tpu_custom_call.1} parent=1 // loop_body
      %s28 = ssub.s32 %s23, 1
      %s29 = ssub.s32 %s23, 2
      %s30 = sadd.s32 %s23, 1
      %s31 = ssub.s32 %s23, %s30
      %p32 = scmp.eq.s32.totalorder %s31, 0
      %s34 = sadd.s32 %s33, 1
      %s35 = scalar_select %p32, %s33, %s34
      %p38 = pneg %p32
      %p39 = scmp.eq.s32.totalorder %s23, 1
      %p40 = por %p38, %p39
      %p41 = scmp.ne.s32.totalorder %s33, %s36
      %p42 = scmp.eq.s32.totalorder %s23, 0
      %p43 = por %p41, %p42
      %p44 = scmp.ne.s32.totalorder %s33, %s36
      %p45 = scmp.eq.s32.totalorder %s28, 1
      %p46 = por %p44, %p45
      %p47 = scmp.ne.s32.totalorder %s36, %s37
      %p48 = scmp.eq.s32.totalorder %s28, 0
      %p49 = por %p47, %p48
      %p50 = scmp.ne.s32.totalorder %s36, %s37
      %p51 = scmp.eq.s32.totalorder %s29, 1
      %p52 = por %p50, %p51
      %p54 = scmp.ne.s32.totalorder %s37, %s53
      %p55 = scmp.eq.s32.totalorder %s29, 0
      %p56 = por %p54, %p55
      %s58 = sadd.s32 %s57, 1
      %p61 = scmp.eq.s32.totalorder %s23, 1
      %p62 = scmp.ne.s32.totalorder %s57, %s59
      %p63 = scmp.eq.s32.totalorder %s23, 0
      %p64 = por %p62, %p63
      %p65 = scmp.ne.s32.totalorder %s57, %s59
      %p66 = scmp.eq.s32.totalorder %s28, 1
      %p67 = por %p65, %p66
      %p68 = scmp.ne.s32.totalorder %s59, %s60
      %p69 = scmp.eq.s32.totalorder %s28, 0
      %p70 = por %p68, %p69
      %p71 = scmp.ne.s32.totalorder %s59, %s60
      %p72 = scmp.eq.s32.totalorder %s29, 1
      %p73 = por %p71, %p72
      %p75 = scmp.ne.s32.totalorder %s60, %s74
      %p76 = scmp.eq.s32.totalorder %s29, 0
      %p77 = por %p75, %p76
      %s79 = sadd.s32 %s78, 1
      %p82 = scmp.eq.s32.totalorder %s23, 1
      %p83 = scmp.ne.s32.totalorder %s78, %s80
      %p84 = scmp.eq.s32.totalorder %s23, 0
      %p85 = por %p83, %p84
      %p86 = scmp.ne.s32.totalorder %s78, %s80
      %p87 = scmp.eq.s32.totalorder %s28, 1
      %p88 = por %p86, %p87
      %p89 = scmp.ne.s32.totalorder %s80, %s81
      %p90 = scmp.eq.s32.totalorder %s28, 0
      %p91 = por %p89, %p90
      %p92 = scmp.ne.s32.totalorder %s80, %s81
      %p93 = scmp.eq.s32.totalorder %s29, 1
      %p94 = por %p92, %p93
      %p96 = scmp.ne.s32.totalorder %s81, %s95
      %p97 = scmp.eq.s32.totalorder %s29, 0
      %p98 = por %p96, %p97
      %s100 = sadd.s32 %s99, 1
      %p103 = scmp.eq.s32.totalorder %s23, 1
      %p104 = scmp.ne.s32.totalorder %s99, %s101
      %p105 = scmp.eq.s32.totalorder %s23, 0
      %p106 = por %p104, %p105
      %p107 = scmp.ne.s32.totalorder %s99, %s101
      %p108 = scmp.eq.s32.totalorder %s28, 1
      %p109 = por %p107, %p108
      %p110 = scmp.ne.s32.totalorder %s101, %s102
      %p111 = scmp.eq.s32.totalorder %s28, 0
      %p112 = por %p110, %p111
      %p113 = scmp.ne.s32.totalorder %s101, %s102
      %p114 = scmp.eq.s32.totalorder %s29, 1
      %p115 = por %p113, %p114
      %p117 = scmp.ne.s32.totalorder %s102, %s116
      %p118 = scmp.eq.s32.totalorder %s29, 0
      %p119 = por %p117, %p118
      %s121 = sadd.s32 %s120, 1
      %p124 = scmp.eq.s32.totalorder %s23, 1
      %p125 = scmp.ne.s32.totalorder %s120, %s122
      %p126 = scmp.eq.s32.totalorder %s23, 0
      %p127 = por %p125, %p126
      %p128 = scmp.ne.s32.totalorder %s120, %s122
      %p129 = scmp.eq.s32.totalorder %s28, 1
      %p130 = por %p128, %p129
      %p131 = scmp.ne.s32.totalorder %s122, %s123
      %p132 = scmp.eq.s32.totalorder %s28, 0
      %p133 = por %p131, %p132
      %p134 = scmp.ne.s32.totalorder %s122, %s123
      %p135 = scmp.eq.s32.totalorder %s29, 1
      %p136 = por %p134, %p135
      %p138 = scmp.ne.s32.totalorder %s123, %s137
      %p139 = scmp.eq.s32.totalorder %s29, 0
      %p140 = por %p138, %p139
      %s142 = sadd.s32 %s141, 1
      %p145 = scmp.eq.s32.totalorder %s23, 1
      %p146 = scmp.ne.s32.totalorder %s141, %s143
      %p147 = scmp.eq.s32.totalorder %s23, 0
      %p148 = por %p146, %p147
      %p149 = scmp.ne.s32.totalorder %s141, %s143
      %p150 = scmp.eq.s32.totalorder %s28, 1
      %p151 = por %p149, %p150
      %p152 = scmp.ne.s32.totalorder %s143, %s144
      %p153 = scmp.eq.s32.totalorder %s28, 0
      %p154 = por %p152, %p153
      %p155 = scmp.ne.s32.totalorder %s143, %s144
      %p156 = scmp.eq.s32.totalorder %s29, 1
      %p157 = por %p155, %p156
      %p159 = scmp.ne.s32.totalorder %s144, %s158
      %p160 = scmp.eq.s32.totalorder %s29, 0
      %p161 = por %p159, %p160
      %s163 = sadd.s32 %s162, 1
      %p166 = scmp.eq.s32.totalorder %s23, 1
      %p167 = scmp.ne.s32.totalorder %s162, %s164
      %p168 = scmp.eq.s32.totalorder %s23, 0
      %p169 = por %p167, %p168
      %p170 = scmp.ne.s32.totalorder %s162, %s164
      %p171 = scmp.eq.s32.totalorder %s28, 1
      %p172 = por %p170, %p171
      %p173 = scmp.ne.s32.totalorder %s164, %s165
      %p174 = scmp.eq.s32.totalorder %s28, 0
      %p175 = por %p173, %p174
      %p176 = scmp.ne.s32.totalorder %s164, %s165
      %p177 = scmp.eq.s32.totalorder %s29, 1
      %p178 = por %p176, %p177
      %p180 = scmp.ne.s32.totalorder %s165, %s179
      %p181 = scmp.eq.s32.totalorder %s29, 0
      %p182 = por %p180, %p181
      %s183 = ssub.s32 %s23, %s30
      %p184 = scmp.eq.s32.totalorder %s183, 0
      %s186 = sadd.s32 %s185, 1
      %s187 = scalar_select %p184, %s185, %s186
      %p190 = pneg %p184
      %p191 = scmp.eq.s32.totalorder %s23, 1
      %p192 = por %p190, %p191
      %p193 = scmp.ne.s32.totalorder %s185, %s188
      %p194 = scmp.eq.s32.totalorder %s23, 0
      %p195 = por %p193, %p194
      %p196 = scmp.ne.s32.totalorder %s185, %s188
      %p197 = scmp.eq.s32.totalorder %s28, 1
      %p198 = por %p196, %p197
      %p199 = scmp.ne.s32.totalorder %s188, %s189
      %p200 = scmp.eq.s32.totalorder %s28, 0
      %p201 = por %p199, %p200
      %p202 = scmp.ne.s32.totalorder %s188, %s189
      %p203 = scmp.eq.s32.totalorder %s29, 1
      %p204 = por %p202, %p203
      %p206 = scmp.ne.s32.totalorder %s189, %s205
      %p207 = scmp.eq.s32.totalorder %s29, 0
      %p208 = por %p206, %p207
      %p209 = scmp.le.s32.totalorder 1, %s23
      %p210 = scmp.lt.s32.totalorder %s23, 3
      %p211 = pnand %p209, %p210
      %p212 = pneg %p211
      // Predicated region
      $region9: #{tpu_custom_call.1} parent=5 // pred_check
        _
      $region10: #{tpu_custom_call.1} parent=5 // pred_check_branch
        %214 = sbr.rel (%p211) target = $region12
      $region11: #{tpu_custom_call.1} parent=5 // pred_region
        %s215 = ssub.s32 %s23, 1
        // Predicated region
        $region13: #{tpu_custom_call.1} parent=11 // pred_check
          %p216 = pneg %p70
        $region14: #{tpu_custom_call.1} parent=11 // pred_check_branch
          %218 = sbr.rel (%p216) target = $region16
        $region15: #{tpu_custom_call.1} parent=11 // pred_region
          %s220 = ssub.s32 16, 16
          %221 = vsyncadd [#allocation6], %s220
          %s223 = sshll.u32 %s1, 4
          %s224 = int_to_ptr.vmem [resolvable:$true] %s223
          %226 = dma.vmem_to_smem %s224, 16, [#allocation7], [#allocation6]
        $region16: #{tpu_custom_call.1} parent=11 // pred_fallthru
          _
        // Predicated region
        $region17: #{tpu_custom_call.1} parent=11 // pred_check
          %p227 = pneg %p91
        $region18: #{tpu_custom_call.1} parent=11 // pred_check_branch
          %229 = sbr.rel (%p227) target = $region20
        $region19: #{tpu_custom_call.1} parent=11 // pred_region
          %s231 = ssub.s32 16, 16
          %232 = vsyncadd [#allocation9], %s231
          %s234 = sshll.u32 %s2, 4
          %s235 = int_to_ptr.vmem [resolvable:$true] %s234
          %237 = dma.vmem_to_smem %s235, 16, [#allocation8], [#allocation9]
        $region20: #{tpu_custom_call.1} parent=11 // pred_fallthru
          _
        // Predicated region
        $region21: #{tpu_custom_call.1} parent=11 // pred_check
          %p238 = pneg %p112
        $region22: #{tpu_custom_call.1} parent=11 // pred_check_branch
          %240 = sbr.rel (%p238) target = $region24
        $region23: #{tpu_custom_call.1} parent=11 // pred_region
          %s242 = ssub.s32 16, 16
          %243 = vsyncadd [#allocation9], %s242
          %s245 = sshll.u32 %s3, 4
          %s246 = int_to_ptr.vmem [resolvable:$true] %s245
          %248 = dma.vmem_to_smem %s246, 16, [#allocation10], [#allocation9]
        $region24: #{tpu_custom_call.1} parent=11 // pred_fallthru
          _
        // Predicated region
        $region25: #{tpu_custom_call.1} parent=11 // pred_check
          %p249 = pneg %p133
        $region26: #{tpu_custom_call.1} parent=11 // pred_check_branch
          %251 = sbr.rel (%p249) target = $region28
        $region27: #{tpu_custom_call.1} parent=11 // pred_region
          %s253 = ssub.s32 16, 16
          %254 = vsyncadd [#allocation12], %s253
          %s256 = sshll.u32 %s4, 4
          %s257 = int_to_ptr.vmem [resolvable:$true] %s256
          %259 = dma.vmem_to_smem %s257, 16, [#allocation11], [#allocation12]
        $region28: #{tpu_custom_call.1} parent=11 // pred_fallthru
          _
        // Predicated region
        $region29: #{tpu_custom_call.1} parent=11 // pred_check
          %p260 = pneg %p154
        $region30: #{tpu_custom_call.1} parent=11 // pred_check_branch
          %262 = sbr.rel (%p260) target = $region32
        $region31: #{tpu_custom_call.1} parent=11 // pred_region
          %s264 = ssub.s32 16, 16
          %265 = vsyncadd [#allocation12], %s264
          %s267 = sshll.u32 %s5, 4
          %s268 = int_to_ptr.vmem [resolvable:$true] %s267
          %270 = dma.vmem_to_smem %s268, 16, [#allocation13], [#allocation12]
        $region32: #{tpu_custom_call.1} parent=11 // pred_fallthru
          _
        // Predicated region
        $region33: #{tpu_custom_call.1} parent=11 // pred_check
          %p271 = pneg %p175
        $region34: #{tpu_custom_call.1} parent=11 // pred_check_branch
          %273 = sbr.rel (%p271) target = $region36
        $region35: #{tpu_custom_call.1} parent=11 // pred_region
          %s275 = ssub.s32 16, 16
          %276 = vsyncadd [#allocation15], %s275
          %s278 = sshll.u32 %s6, 4
          %s279 = int_to_ptr.vmem [resolvable:$true] %s278
          %281 = dma.vmem_to_smem %s279, 16, [#allocation14], [#allocation15]
        $region36: #{tpu_custom_call.1} parent=11 // pred_fallthru
          _
      $region12: #{tpu_custom_call.1} parent=5 // pred_fallthru
        _
      %p282 = scmp.lt.s32.totalorder %s23, 2
      // Predicated region
      $region37: #{tpu_custom_call.1} parent=5 // pred_check
        %p283 = pneg %p282
      $region38: #{tpu_custom_call.1} parent=5 // pred_check_branch
        %285 = sbr.rel (%p283) target = $region40
      $region39: #{tpu_custom_call.1} parent=5 // pred_region
        // Predicated region
        $region41: #{tpu_custom_call.1} parent=39 // pred_check
          %p286 = pneg %p43
        $region42: #{tpu_custom_call.1} parent=39 // pred_check_branch
          %288 = sbr.rel (%p286) target = $region44
        $region43: #{tpu_custom_call.1} parent=39 // pred_region
          %s289 = sand.u32 %s33, 1
          %s290 = scalar_lea.sflag [#allocation4], %s289
          %s291 = sand.u32 %s33, 1
          %s292 = smul.addr %s291, 16
          %s293 = scalar_lea.vmem [#allocation3], %s292
          %s295 = ssub.s32 256, 256
          %296 = vsyncadd %s290, %s295
          %s297 = smul.addr %s23, 2
          %s298 = smul.addr %s297, 128
          %s299 = scalar_lea.hbm %s0, %s298
          %s300 = sshll.u32 %s293, 4
          %s301 = int_to_ptr.vmem [resolvable:$true] %s300
          %306 = dma.hbm_to_vmem [thread:$0]  %s299, 256, %s301, %s290, 128, 128, 8
        $region44: #{tpu_custom_call.1} parent=39 // pred_fallthru
          _
      $region40: #{tpu_custom_call.1} parent=5 // pred_fallthru
        _
      %p307 = scmp.le.s32.totalorder 1, %s23
      %p308 = scmp.lt.s32.totalorder %s23, 3
      %p309 = pnand %p307, %p308
      %p310 = pneg %p309
      // Predicated region
      $region45: #{tpu_custom_call.1} parent=5 // pred_check
        _
      $region46: #{tpu_custom_call.1} parent=5 // pred_check_branch
        %312 = sbr.rel (%p309) target = $region48
      $region47: #{tpu_custom_call.1} parent=5 // pred_region
        %s313 = ssub.s32 %s23, 1
        %s314 = sand.u32 %s36, 1
        %s315 = scalar_lea.sflag [#allocation4], %s314
        %s316 = sand.u32 %s36, 1
        %s317 = smul.addr %s316, 16
        %s318 = scalar_lea.vmem [#allocation3], %s317
        // Predicated region
        $region49: #{tpu_custom_call.1} parent=47 // pred_check
          %p319 = pneg %p49
        $region50: #{tpu_custom_call.1} parent=47 // pred_check_branch
          %321 = sbr.rel (%p319) target = $region52
        $region51: #{tpu_custom_call.1} parent=47 // pred_region
          %322 = dma.done %s315, 256
        $region52: #{tpu_custom_call.1} parent=47 // pred_fallthru
          _
        // Predicated region
        $region53: #{tpu_custom_call.1} parent=47 // pred_check
          %p323 = pneg %p70
        $region54: #{tpu_custom_call.1} parent=47 // pred_check_branch
          %325 = sbr.rel (%p323) target = $region56
        $region55: #{tpu_custom_call.1} parent=47 // pred_region
          %326 = dma.done [#allocation6], 16
        $region56: #{tpu_custom_call.1} parent=47 // pred_fallthru
          _
        // Predicated region
        $region57: #{tpu_custom_call.1} parent=47 // pred_check
          %p327 = pneg %p91
        $region58: #{tpu_custom_call.1} parent=47 // pred_check_branch
          %329 = sbr.rel (%p327) target = $region60
        $region59: #{tpu_custom_call.1} parent=47 // pred_region
          %330 = dma.done [#allocation9], 16
        $region60: #{tpu_custom_call.1} parent=47 // pred_fallthru
          _
        // Predicated region
        $region61: #{tpu_custom_call.1} parent=47 // pred_check
          %p331 = pneg %p112
        $region62: #{tpu_custom_call.1} parent=47 // pred_check_branch
          %333 = sbr.rel (%p331) target = $region64
        $region63: #{tpu_custom_call.1} parent=47 // pred_region
          %334 = dma.done [#allocation9], 16
        $region64: #{tpu_custom_call.1} parent=47 // pred_fallthru
          _
        // Predicated region
        $region65: #{tpu_custom_call.1} parent=47 // pred_check
          %p335 = pneg %p133
        $region66: #{tpu_custom_call.1} parent=47 // pred_check_branch
          %337 = sbr.rel (%p335) target = $region68
        $region67: #{tpu_custom_call.1} parent=47 // pred_region
          %338 = dma.done [#allocation12], 16
        $region68: #{tpu_custom_call.1} parent=47 // pred_fallthru
          _
        // Predicated region
        $region69: #{tpu_custom_call.1} parent=47 // pred_check
          %p339 = pneg %p154
        $region70: #{tpu_custom_call.1} parent=47 // pred_check_branch
          %341 = sbr.rel (%p339) target = $region72
        $region71: #{tpu_custom_call.1} parent=47 // pred_region
          %342 = dma.done [#allocation12], 16
        $region72: #{tpu_custom_call.1} parent=47 // pred_fallthru
          _
        // Predicated region
        $region73: #{tpu_custom_call.1} parent=47 // pred_check
          %p343 = pneg %p175
        $region74: #{tpu_custom_call.1} parent=47 // pred_check_branch
          %345 = sbr.rel (%p343) target = $region76
        $region75: #{tpu_custom_call.1} parent=47 // pred_region
          %346 = dma.done [#allocation15], 16
        $region76: #{tpu_custom_call.1} parent=47 // pred_fallthru
          _
        %347 = sfence
        %s348 = sand.u32 %s36, 1
        %s349 = scalar_lea.sflag [#allocation4], %s348
        %s350 = sand.u32 %s36, 1
        %s351 = smul.addr %s350, 16
        %s352 = scalar_lea.vmem [#allocation3], %s351
        %p353 = pneg %p49
        %p354 = pneg %p46
        %p355 = pneg %p70
        %p356 = pneg %p67
        %p357 = pneg %p91
        %p358 = pneg %p88
        %p359 = pneg %p112
        %p360 = pneg %p109
        %p361 = pneg %p133
        %p362 = pneg %p130
        %p363 = pneg %p154
        %p364 = pneg %p151
        %p365 = pneg %p175
        %p366 = pneg %p172
        %p367 = pneg %p201
        %p368 = pneg %p198
        %s369 = sand.u32 %s188, 1
        %s370 = scalar_lea.sflag [#allocation5], %s369
        %s371 = sand.u32 %s188, 1
        %s372 = smul.addr %s371, 48
        %s373 = scalar_lea.vmem [#allocation16], %s372
        %vm374 = vcmask 146432
        %375 = vst.msk [vmem:[#allocation2] sm:$0xff] %vm374, 0.0
        %376 = vst.msk [vmem:[#allocation2 + $0x8] sm:$0xff] %vm374, 0.0
        %vm377 = vcmask 140288
        %378 = vst.msk [vmem:[#allocation2 + $0x10] sm:$0x3] %vm377, 0.0
        %379 = vst.msk [vmem:[#allocation2 + $0x18] sm:$0xff] %vm374, 0.0
        %380 = vst.msk [vmem:[#allocation2 + $0x20] sm:$0xff] %vm374, 0.0
        %381 = vst.msk [vmem:[#allocation2 + $0x28] sm:$0x3] %vm377, 0.0
        %382 = vst.msk [vmem:[#allocation2 + $0x30] sm:$0xff] %vm374, 0.0
        %383 = vst.msk [vmem:[#allocation2 + $0x38] sm:$0xff] %vm374, 0.0
        %384 = vst.msk [vmem:[#allocation2 + $0x40] sm:$0x3] %vm377, 0.0
        %v385 = vld [vmem:[%s318] sm:$0xff]
        %v386 = vld [vmem:[%s318 + $0x8] sm:$0xff]
        %389 = vrot.lane.b32.xlu0 %v385, 1
        %v390 = vpop.permute.xlu0 %389
        %391 = vrot.lane.b32.xlu0 %v386, 1
        %v392 = vpop.permute.xlu0 %391
        %vm395 = vcmask 138248
        %396 = vst.msk [vmem:[#allocation2 + $0x1] sm:$0xff] %vm395, %v390
        %397 = vst.msk [vmem:[#allocation2 + $0x9] sm:$0xff] %vm395, %v392
        %s398 = sld [smem:[#allocation8]]
        %v399 = vstv %s398
        %s400 = sld [smem:[#allocation8 + $0x1]]
        %v401 = vstv %s400
        %s402 = sld [smem:[#allocation8 + $0x2]]
        %v403 = vstv %s402
        %v404 = vld [vmem:[#allocation2] sm:$0xff]
        %v405 = vld [vmem:[#allocation2 + $0x8] sm:$0xff]
        %v406 = vld [vmem:[#allocation2 + $0x10] sm:$0x3]
        %s407 = sld [smem:[#allocation7]]
        %v408 = vstv %s407
        %v409 = vmul.f32 %v404, %v408
        %v410 = vmul.f32 %v405, %v408
        %v411 = vadd.f32 %v399, %v409
        %v412 = vadd.f32 %v399, %v410
        %s413 = sld [smem:[#allocation7 + $0x1]]
        %v414 = vstv %s413
        %v415 = vmul.f32 %v404, %v414
        %v416 = vmul.f32 %v405, %v414
        %419 = vrot.lane.b32.xlu0 %v415, 127
        %v420 = vpop.permute.xlu0 %419
        %421 = vrot.lane.b32.xlu0 %v416, 127
        %v422 = vpop.permute.xlu0 %421
        %v425 = vadd.f32 %v411, %v420
        %v426 = vadd.f32 %v412, %v422
        %s427 = sld [smem:[#allocation7 + $0x2]]
        %v428 = vstv %s427
        %v429 = vmul.f32 %v404, %v428
        %v430 = vmul.f32 %v405, %v428
        %433 = vrot.lane.b32.xlu0 %v429, 126
        %v434 = vpop.permute.xlu0 %433
        %435 = vrot.lane.b32.xlu0 %v430, 126
        %v436 = vpop.permute.xlu0 %435
        %v439 = vadd.f32 %v425, %v434
        %v440 = vadd.f32 %v426, %v436
        %s441 = sld [smem:[#allocation7 + $0x3]]
        %v442 = vstv %s441
        %v443 = vmul.f32 %v404, %v442
        %v444 = vmul.f32 %v405, %v442
        %v445 = vmul.f32 %v406, %v442
        %vm449 = vcmask 1046528
        %v450 = vrot.slane %v443, 1
        %v451 = vrot.slane %v444, 1
        %v452 = vsel %vm449, %v450, %v451
        %v453 = vrot.slane %v445, 1
        %v454 = vsel %vm449, %v451, %v453
        %v457 = vadd.f32 %v439, %v452
        %v458 = vadd.f32 %v440, %v454
        %s459 = sld [smem:[#allocation7 + $0x4]]
        %v460 = vstv %s459
        %v461 = vmul.f32 %v404, %v460
        %v462 = vmul.f32 %v405, %v460
        %v463 = vmul.f32 %v406, %v460
        %v467 = vrot.slane %v461, 1
        %v468 = vrot.slane %v462, 1
        %v469 = vsel %vm449, %v467, %v468
        %v470 = vrot.slane %v463, 1
        %v471 = vsel %vm449, %v468, %v470
        %472 = vrot.lane.b32.xlu0 %v469, 127
        %v473 = vpop.permute.xlu0 %472
        %474 = vrot.lane.b32.xlu0 %v471, 127
        %v475 = vpop.permute.xlu0 %474
        %v478 = vadd.f32 %v457, %v473
        %v479 = vadd.f32 %v458, %v475
        %s480 = sld [smem:[#allocation7 + $0x5]]
        %v481 = vstv %s480
        %v482 = vmul.f32 %v404, %v481
        %v483 = vmul.f32 %v405, %v481
        %v484 = vmul.f32 %v406, %v481
        %v488 = vrot.slane %v482, 1
        %v489 = vrot.slane %v483, 1
        %v490 = vsel %vm449, %v488, %v489
        %v491 = vrot.slane %v484, 1
        %v492 = vsel %vm449, %v489, %v491
        %493 = vrot.lane.b32.xlu0 %v490, 126
        %v494 = vpop.permute.xlu0 %493
        %495 = vrot.lane.b32.xlu0 %v492, 126
        %v496 = vpop.permute.xlu0 %495
        %v499 = vadd.f32 %v478, %v494
        %v500 = vadd.f32 %v479, %v496
        %s501 = sld [smem:[#allocation7 + $0x6]]
        %v502 = vstv %s501
        %v503 = vmul.f32 %v404, %v502
        %v504 = vmul.f32 %v405, %v502
        %v505 = vmul.f32 %v406, %v502
        %vm509 = vcmask 1045504
        %v510 = vrot.slane %v503, 2
        %v511 = vrot.slane %v504, 2
        %v512 = vsel %vm509, %v510, %v511
        %v513 = vrot.slane %v505, 2
        %v514 = vsel %vm509, %v511, %v513
        %v517 = vadd.f32 %v499, %v512
        %v518 = vadd.f32 %v500, %v514
        %s519 = sld [smem:[#allocation7 + $0x7]]
        %v520 = vstv %s519
        %v521 = vmul.f32 %v404, %v520
        %v522 = vmul.f32 %v405, %v520
        %v523 = vmul.f32 %v406, %v520
        %v527 = vrot.slane %v521, 2
        %v528 = vrot.slane %v522, 2
        %v529 = vsel %vm509, %v527, %v528
        %v530 = vrot.slane %v523, 2
        %v531 = vsel %vm509, %v528, %v530
        %532 = vrot.lane.b32.xlu0 %v529, 127
        %v533 = vpop.permute.xlu0 %532
        %534 = vrot.lane.b32.xlu0 %v531, 127
        %v535 = vpop.permute.xlu0 %534
        %v538 = vadd.f32 %v517, %v533
        %v539 = vadd.f32 %v518, %v535
        %s540 = sld [smem:[#allocation7 + $0x8]]
        %v541 = vstv %s540
        %v542 = vmul.f32 %v404, %v541
        %v543 = vmul.f32 %v405, %v541
        %v544 = vmul.f32 %v406, %v541
        %v548 = vrot.slane %v542, 2
        %v549 = vrot.slane %v543, 2
        %v550 = vsel %vm509, %v548, %v549
        %v551 = vrot.slane %v544, 2
        %v552 = vsel %vm509, %v549, %v551
        %553 = vrot.lane.b32.xlu0 %v550, 126
        %v554 = vpop.permute.xlu0 %553
        %555 = vrot.lane.b32.xlu0 %v552, 126
        %v556 = vpop.permute.xlu0 %555
        %v559 = vadd.f32 %v538, %v554
        %v560 = vadd.f32 %v539, %v556
        %s561 = sld [smem:[#allocation7 + $0x9]]
        %v562 = vstv %s561
        %v563 = vmul.f32 %v404, %v562
        %v564 = vmul.f32 %v405, %v562
        %v565 = vadd.f32 %v401, %v563
        %v566 = vadd.f32 %v401, %v564
        %s567 = sld [smem:[#allocation7 + $0xa]]
        %v568 = vstv %s567
        %v569 = vmul.f32 %v404, %v568
        %v570 = vmul.f32 %v405, %v568
        %573 = vrot.lane.b32.xlu0 %v569, 127
        %v574 = vpop.permute.xlu0 %573
        %575 = vrot.lane.b32.xlu0 %v570, 127
        %v576 = vpop.permute.xlu0 %575
        %v579 = vadd.f32 %v565, %v574
        %v580 = vadd.f32 %v566, %v576
        %s581 = sld [smem:[#allocation7 + $0xb]]
        %v582 = vstv %s581
        %v583 = vmul.f32 %v404, %v582
        %v584 = vmul.f32 %v405, %v582
        %587 = vrot.lane.b32.xlu0 %v583, 126
        %v588 = vpop.permute.xlu0 %587
        %589 = vrot.lane.b32.xlu0 %v584, 126
        %v590 = vpop.permute.xlu0 %589
        %v593 = vadd.f32 %v579, %v588
        %v594 = vadd.f32 %v580, %v590
        %s595 = sld [smem:[#allocation7 + $0xc]]
        %v596 = vstv %s595
        %v597 = vmul.f32 %v404, %v596
        %v598 = vmul.f32 %v405, %v596
        %v599 = vmul.f32 %v406, %v596
        %v603 = vrot.slane %v597, 1
        %v604 = vrot.slane %v598, 1
        %v605 = vsel %vm449, %v603, %v604
        %v606 = vrot.slane %v599, 1
        %v607 = vsel %vm449, %v604, %v606
        %v610 = vadd.f32 %v593, %v605
        %v611 = vadd.f32 %v594, %v607
        %s612 = sld [smem:[#allocation7 + $0xd]]
        %v613 = vstv %s612
        %v614 = vmul.f32 %v404, %v613
        %v615 = vmul.f32 %v405, %v613
        %v616 = vmul.f32 %v406, %v613
        %v620 = vrot.slane %v614, 1
        %v621 = vrot.slane %v615, 1
        %v622 = vsel %vm449, %v620, %v621
        %v623 = vrot.slane %v616, 1
        %v624 = vsel %vm449, %v621, %v623
        %625 = vrot.lane.b32.xlu0 %v622, 127
        %v626 = vpop.permute.xlu0 %625
        %627 = vrot.lane.b32.xlu0 %v624, 127
        %v628 = vpop.permute.xlu0 %627
        %v631 = vadd.f32 %v610, %v626
        %v632 = vadd.f32 %v611, %v628
        %s633 = sld [smem:[#allocation7 + $0xe]]
        %v634 = vstv %s633
        %v635 = vmul.f32 %v404, %v634
        %v636 = vmul.f32 %v405, %v634
        %v637 = vmul.f32 %v406, %v634
        %v641 = vrot.slane %v635, 1
        %v642 = vrot.slane %v636, 1
        %v643 = vsel %vm449, %v641, %v642
        %v644 = vrot.slane %v637, 1
        %v645 = vsel %vm449, %v642, %v644
        %646 = vrot.lane.b32.xlu0 %v643, 126
        %v647 = vpop.permute.xlu0 %646
        %648 = vrot.lane.b32.xlu0 %v645, 126
        %v649 = vpop.permute.xlu0 %648
        %v652 = vadd.f32 %v631, %v647
        %v653 = vadd.f32 %v632, %v649
        %s654 = sld [smem:[#allocation7 + $0xf]]
        %v655 = vstv %s654
        %v656 = vmul.f32 %v404, %v655
        %v657 = vmul.f32 %v405, %v655
        %v658 = vmul.f32 %v406, %v655
        %v662 = vrot.slane %v656, 2
        %v663 = vrot.slane %v657, 2
        %v664 = vsel %vm509, %v662, %v663
        %v665 = vrot.slane %v658, 2
        %v666 = vsel %vm509, %v663, %v665
        %v669 = vadd.f32 %v652, %v664
        %v670 = vadd.f32 %v653, %v666
        %s671 = sld [smem:[#allocation7 + $0x10]]
        %v672 = vstv %s671
        %v673 = vmul.f32 %v404, %v672
        %v674 = vmul.f32 %v405, %v672
        %v675 = vmul.f32 %v406, %v672
        %v679 = vrot.slane %v673, 2
        %v680 = vrot.slane %v674, 2
        %v681 = vsel %vm509, %v679, %v680
        %v682 = vrot.slane %v675, 2
        %v683 = vsel %vm509, %v680, %v682
        %684 = vrot.lane.b32.xlu0 %v681, 127
        %v685 = vpop.permute.xlu0 %684
        %686 = vrot.lane.b32.xlu0 %v683, 127
        %v687 = vpop.permute.xlu0 %686
        %v690 = vadd.f32 %v669, %v685
        %v691 = vadd.f32 %v670, %v687
        %s692 = sld [smem:[#allocation7 + $0x11]]
        %v693 = vstv %s692
        %v694 = vmul.f32 %v404, %v693
        %v695 = vmul.f32 %v405, %v693
        %v696 = vmul.f32 %v406, %v693
        %v700 = vrot.slane %v694, 2
        %v701 = vrot.slane %v695, 2
        %v702 = vsel %vm509, %v700, %v701
        %v703 = vrot.slane %v696, 2
        %v704 = vsel %vm509, %v701, %v703
        %705 = vrot.lane.b32.xlu0 %v702, 126
        %v706 = vpop.permute.xlu0 %705
        %707 = vrot.lane.b32.xlu0 %v704, 126
        %v708 = vpop.permute.xlu0 %707
        %v711 = vadd.f32 %v690, %v706
        %v712 = vadd.f32 %v691, %v708
        %s713 = sld [smem:[#allocation7 + $0x12]]
        %v714 = vstv %s713
        %v715 = vmul.f32 %v404, %v714
        %v716 = vmul.f32 %v405, %v714
        %v717 = vadd.f32 %v403, %v715
        %v718 = vadd.f32 %v403, %v716
        %s719 = sld [smem:[#allocation7 + $0x13]]
        %v720 = vstv %s719
        %v721 = vmul.f32 %v404, %v720
        %v722 = vmul.f32 %v405, %v720
        %725 = vrot.lane.b32.xlu0 %v721, 127
        %v726 = vpop.permute.xlu0 %725
        %727 = vrot.lane.b32.xlu0 %v722, 127
        %v728 = vpop.permute.xlu0 %727
        %v731 = vadd.f32 %v717, %v726
        %v732 = vadd.f32 %v718, %v728
        %s733 = sld [smem:[#allocation7 + $0x14]]
        %v734 = vstv %s733
        %v735 = vmul.f32 %v404, %v734
        %v736 = vmul.f32 %v405, %v734
        %739 = vrot.lane.b32.xlu0 %v735, 126
        %v740 = vpop.permute.xlu0 %739
        %741 = vrot.lane.b32.xlu0 %v736, 126
        %v742 = vpop.permute.xlu0 %741
        %v745 = vadd.f32 %v731, %v740
        %v746 = vadd.f32 %v732, %v742
        %s747 = sld [smem:[#allocation7 + $0x15]]
        %v748 = vstv %s747
        %v749 = vmul.f32 %v404, %v748
        %v750 = vmul.f32 %v405, %v748
        %v751 = vmul.f32 %v406, %v748
        %v755 = vrot.slane %v749, 1
        %v756 = vrot.slane %v750, 1
        %v757 = vsel %vm449, %v755, %v756
        %v758 = vrot.slane %v751, 1
        %v759 = vsel %vm449, %v756, %v758
        %v762 = vadd.f32 %v745, %v757
        %v763 = vadd.f32 %v746, %v759
        %s764 = sld [smem:[#allocation7 + $0x16]]
        %v765 = vstv %s764
        %v766 = vmul.f32 %v404, %v765
        %v767 = vmul.f32 %v405, %v765
        %v768 = vmul.f32 %v406, %v765
        %v772 = vrot.slane %v766, 1
        %v773 = vrot.slane %v767, 1
        %v774 = vsel %vm449, %v772, %v773
        %v775 = vrot.slane %v768, 1
        %v776 = vsel %vm449, %v773, %v775
        %777 = vrot.lane.b32.xlu0 %v774, 127
        %v778 = vpop.permute.xlu0 %777
        %779 = vrot.lane.b32.xlu0 %v776, 127
        %v780 = vpop.permute.xlu0 %779
        %v783 = vadd.f32 %v762, %v778
        %v784 = vadd.f32 %v763, %v780
        %s785 = sld [smem:[#allocation7 + $0x17]]
        %v786 = vstv %s785
        %v787 = vmul.f32 %v404, %v786
        %v788 = vmul.f32 %v405, %v786
        %v789 = vmul.f32 %v406, %v786
        %v793 = vrot.slane %v787, 1
        %v794 = vrot.slane %v788, 1
        %v795 = vsel %vm449, %v793, %v794
        %v796 = vrot.slane %v789, 1
        %v797 = vsel %vm449, %v794, %v796
        %798 = vrot.lane.b32.xlu0 %v795, 126
        %v799 = vpop.permute.xlu0 %798
        %800 = vrot.lane.b32.xlu0 %v797, 126
        %v801 = vpop.permute.xlu0 %800
        %v804 = vadd.f32 %v783, %v799
        %v805 = vadd.f32 %v784, %v801
        %s806 = sld [smem:[#allocation7 + $0x18]]
        %v807 = vstv %s806
        %v808 = vmul.f32 %v404, %v807
        %v809 = vmul.f32 %v405, %v807
        %v810 = vmul.f32 %v406, %v807
        %v814 = vrot.slane %v808, 2
        %v815 = vrot.slane %v809, 2
        %v816 = vsel %vm509, %v814, %v815
        %v817 = vrot.slane %v810, 2
        %v818 = vsel %vm509, %v815, %v817
        %v821 = vadd.f32 %v804, %v816
        %v822 = vadd.f32 %v805, %v818
        %s823 = sld [smem:[#allocation7 + $0x19]]
        %v824 = vstv %s823
        %v825 = vmul.f32 %v404, %v824
        %v826 = vmul.f32 %v405, %v824
        %v827 = vmul.f32 %v406, %v824
        %v831 = vrot.slane %v825, 2
        %v832 = vrot.slane %v826, 2
        %v833 = vsel %vm509, %v831, %v832
        %v834 = vrot.slane %v827, 2
        %v835 = vsel %vm509, %v832, %v834
        %836 = vrot.lane.b32.xlu0 %v833, 127
        %v837 = vpop.permute.xlu0 %836
        %838 = vrot.lane.b32.xlu0 %v835, 127
        %v839 = vpop.permute.xlu0 %838
        %v842 = vadd.f32 %v821, %v837
        %v843 = vadd.f32 %v822, %v839
        %s844 = sld [smem:[#allocation7 + $0x1a]]
        %v845 = vstv %s844
        %v846 = vmul.f32 %v404, %v845
        %v847 = vmul.f32 %v405, %v845
        %v848 = vmul.f32 %v406, %v845
        %v852 = vrot.slane %v846, 2
        %v853 = vrot.slane %v847, 2
        %v854 = vsel %vm509, %v852, %v853
        %v855 = vrot.slane %v848, 2
        %v856 = vsel %vm509, %v853, %v855
        %857 = vrot.lane.b32.xlu0 %v854, 126
        %v858 = vpop.permute.xlu0 %857
        %859 = vrot.lane.b32.xlu0 %v856, 126
        %v860 = vpop.permute.xlu0 %859
        %v863 = vadd.f32 %v842, %v858
        %v864 = vadd.f32 %v843, %v860
        %v865 = vmax.f32 %v559, 0.0
        %v866 = vmax.f32 %v560, 0.0
        %v867 = vmax.f32 %v711, 0.0
        %v868 = vmax.f32 %v712, 0.0
        %v869 = vmax.f32 %v863, 0.0
        %v870 = vmax.f32 %v864, 0.0
        %873 = vrot.lane.b32.xlu0 %v865, 1
        %v874 = vpop.permute.xlu0 %873
        %875 = vrot.lane.b32.xlu0 %v866, 1
        %v876 = vpop.permute.xlu0 %875
        %879 = vst.msk [vmem:[#allocation2 + $0x1] sm:$0xff] %vm395, %v874
        %880 = vst.msk [vmem:[#allocation2 + $0x9] sm:$0xff] %vm395, %v876
        %883 = vrot.lane.b32.xlu0 %v867, 1
        %v884 = vpop.permute.xlu0 %883
        %885 = vrot.lane.b32.xlu0 %v868, 1
        %v886 = vpop.permute.xlu0 %885
        %s889 = scalar_lea.vmem [#allocation2], 24
        %890 = vst.msk [vmem:[%s889 + $0x1] sm:$0xff] %vm395, %v884
        %891 = vst.msk [vmem:[%s889 + $0x9] sm:$0xff] %vm395, %v886
        %894 = vrot.lane.b32.xlu0 %v869, 1
        %v895 = vpop.permute.xlu0 %894
        %896 = vrot.lane.b32.xlu0 %v870, 1
        %v897 = vpop.permute.xlu0 %896
        %s900 = scalar_lea.vmem [#allocation2], 48
        %901 = vst.msk [vmem:[%s900 + $0x1] sm:$0xff] %vm395, %v895
        %902 = vst.msk [vmem:[%s900 + $0x9] sm:$0xff] %vm395, %v897
        %s903 = sld [smem:[#allocation11]]
        %v904 = vstv %s903
        %s905 = sld [smem:[#allocation11 + $0x1]]
        %v906 = vstv %s905
        %s907 = sld [smem:[#allocation11 + $0x2]]
        %v908 = vstv %s907
        %v909 = vld [vmem:[#allocation2] sm:$0xff]
        %v910 = vld [vmem:[#allocation2 + $0x8] sm:$0xff]
        %v911 = vld [vmem:[#allocation2 + $0x10] sm:$0x3]
        %s912 = sld [smem:[#allocation10]]
        %v913 = vstv %s912
        %v914 = vmul.f32 %v909, %v913
        %v915 = vmul.f32 %v910, %v913
        %v916 = vadd.f32 %v904, %v914
        %v917 = vadd.f32 %v904, %v915
        %s918 = sld [smem:[#allocation10 + $0x1]]
        %v919 = vstv %s918
        %v920 = vmul.f32 %v909, %v919
        %v921 = vmul.f32 %v910, %v919
        %924 = vrot.lane.b32.xlu0 %v920, 127
        %v925 = vpop.permute.xlu0 %924
        %926 = vrot.lane.b32.xlu0 %v921, 127
        %v927 = vpop.permute.xlu0 %926
        %v930 = vadd.f32 %v916, %v925
        %v931 = vadd.f32 %v917, %v927
        %s932 = sld [smem:[#allocation10 + $0x2]]
        %v933 = vstv %s932
        %v934 = vmul.f32 %v909, %v933
        %v935 = vmul.f32 %v910, %v933
        %938 = vrot.lane.b32.xlu0 %v934, 126
        %v939 = vpop.permute.xlu0 %938
        %940 = vrot.lane.b32.xlu0 %v935, 126
        %v941 = vpop.permute.xlu0 %940
        %v944 = vadd.f32 %v930, %v939
        %v945 = vadd.f32 %v931, %v941
        %s946 = sld [smem:[#allocation10 + $0x3]]
        %v947 = vstv %s946
        %v948 = vmul.f32 %v909, %v947
        %v949 = vmul.f32 %v910, %v947
        %v950 = vmul.f32 %v911, %v947
        %v954 = vrot.slane %v948, 1
        %v955 = vrot.slane %v949, 1
        %v956 = vsel %vm449, %v954, %v955
        %v957 = vrot.slane %v950, 1
        %v958 = vsel %vm449, %v955, %v957
        %v961 = vadd.f32 %v944, %v956
        %v962 = vadd.f32 %v945, %v958
        %s963 = sld [smem:[#allocation10 + $0x4]]
        %v964 = vstv %s963
        %v965 = vmul.f32 %v909, %v964
        %v966 = vmul.f32 %v910, %v964
        %v967 = vmul.f32 %v911, %v964
        %v971 = vrot.slane %v965, 1
        %v972 = vrot.slane %v966, 1
        %v973 = vsel %vm449, %v971, %v972
        %v974 = vrot.slane %v967, 1
        %v975 = vsel %vm449, %v972, %v974
        %976 = vrot.lane.b32.xlu0 %v973, 127
        %v977 = vpop.permute.xlu0 %976
        %978 = vrot.lane.b32.xlu0 %v975, 127
        %v979 = vpop.permute.xlu0 %978
        %v982 = vadd.f32 %v961, %v977
        %v983 = vadd.f32 %v962, %v979
        %s984 = sld [smem:[#allocation10 + $0x5]]
        %v985 = vstv %s984
        %v986 = vmul.f32 %v909, %v985
        %v987 = vmul.f32 %v910, %v985
        %v988 = vmul.f32 %v911, %v985
        %v992 = vrot.slane %v986, 1
        %v993 = vrot.slane %v987, 1
        %v994 = vsel %vm449, %v992, %v993
        %v995 = vrot.slane %v988, 1
        %v996 = vsel %vm449, %v993, %v995
        %997 = vrot.lane.b32.xlu0 %v994, 126
        %v998 = vpop.permute.xlu0 %997
        %999 = vrot.lane.b32.xlu0 %v996, 126
        %v1000 = vpop.permute.xlu0 %999
        %v1003 = vadd.f32 %v982, %v998
        %v1004 = vadd.f32 %v983, %v1000
        %s1005 = sld [smem:[#allocation10 + $0x6]]
        %v1006 = vstv %s1005
        %v1007 = vmul.f32 %v909, %v1006
        %v1008 = vmul.f32 %v910, %v1006
        %v1009 = vmul.f32 %v911, %v1006
        %v1013 = vrot.slane %v1007, 2
        %v1014 = vrot.slane %v1008, 2
        %v1015 = vsel %vm509, %v1013, %v1014
        %v1016 = vrot.slane %v1009, 2
        %v1017 = vsel %vm509, %v1014, %v1016
        %v1020 = vadd.f32 %v1003, %v1015
        %v1021 = vadd.f32 %v1004, %v1017
        %s1022 = sld [smem:[#allocation10 + $0x7]]
        %v1023 = vstv %s1022
        %v1024 = vmul.f32 %v909, %v1023
        %v1025 = vmul.f32 %v910, %v1023
        %v1026 = vmul.f32 %v911, %v1023
        %v1030 = vrot.slane %v1024, 2
        %v1031 = vrot.slane %v1025, 2
        %v1032 = vsel %vm509, %v1030, %v1031
        %v1033 = vrot.slane %v1026, 2
        %v1034 = vsel %vm509, %v1031, %v1033
        %1035 = vrot.lane.b32.xlu0 %v1032, 127
        %v1036 = vpop.permute.xlu0 %1035
        %1037 = vrot.lane.b32.xlu0 %v1034, 127
        %v1038 = vpop.permute.xlu0 %1037
        %v1041 = vadd.f32 %v1020, %v1036
        %v1042 = vadd.f32 %v1021, %v1038
        %s1043 = sld [smem:[#allocation10 + $0x8]]
        %v1044 = vstv %s1043
        %v1045 = vmul.f32 %v909, %v1044
        %v1046 = vmul.f32 %v910, %v1044
        %v1047 = vmul.f32 %v911, %v1044
        %v1051 = vrot.slane %v1045, 2
        %v1052 = vrot.slane %v1046, 2
        %v1053 = vsel %vm509, %v1051, %v1052
        %v1054 = vrot.slane %v1047, 2
        %v1055 = vsel %vm509, %v1052, %v1054
        %1056 = vrot.lane.b32.xlu0 %v1053, 126
        %v1057 = vpop.permute.xlu0 %1056
        %1058 = vrot.lane.b32.xlu0 %v1055, 126
        %v1059 = vpop.permute.xlu0 %1058
        %v1062 = vadd.f32 %v1041, %v1057
        %v1063 = vadd.f32 %v1042, %v1059
        %s1064 = sld [smem:[#allocation10 + $0x1b]]
        %v1065 = vstv %s1064
        %v1066 = vmul.f32 %v909, %v1065
        %v1067 = vmul.f32 %v910, %v1065
        %v1068 = vadd.f32 %v906, %v1066
        %v1069 = vadd.f32 %v906, %v1067
        %s1070 = sld [smem:[#allocation10 + $0x1c]]
        %v1071 = vstv %s1070
        %v1072 = vmul.f32 %v909, %v1071
        %v1073 = vmul.f32 %v910, %v1071
        %1076 = vrot.lane.b32.xlu0 %v1072, 127
        %v1077 = vpop.permute.xlu0 %1076
        %1078 = vrot.lane.b32.xlu0 %v1073, 127
        %v1079 = vpop.permute.xlu0 %1078
        %v1082 = vadd.f32 %v1068, %v1077
        %v1083 = vadd.f32 %v1069, %v1079
        %s1084 = sld [smem:[#allocation10 + $0x1d]]
        %v1085 = vstv %s1084
        %v1086 = vmul.f32 %v909, %v1085
        %v1087 = vmul.f32 %v910, %v1085
        %1090 = vrot.lane.b32.xlu0 %v1086, 126
        %v1091 = vpop.permute.xlu0 %1090
        %1092 = vrot.lane.b32.xlu0 %v1087, 126
        %v1093 = vpop.permute.xlu0 %1092
        %v1096 = vadd.f32 %v1082, %v1091
        %v1097 = vadd.f32 %v1083, %v1093
        %s1098 = sld [smem:[#allocation10 + $0x1e]]
        %v1099 = vstv %s1098
        %v1100 = vmul.f32 %v909, %v1099
        %v1101 = vmul.f32 %v910, %v1099
        %v1102 = vmul.f32 %v911, %v1099
        %v1106 = vrot.slane %v1100, 1
        %v1107 = vrot.slane %v1101, 1
        %v1108 = vsel %vm449, %v1106, %v1107
        %v1109 = vrot.slane %v1102, 1
        %v1110 = vsel %vm449, %v1107, %v1109
        %v1113 = vadd.f32 %v1096, %v1108
        %v1114 = vadd.f32 %v1097, %v1110
        %s1115 = sld [smem:[#allocation10 + $0x1f]]
        %v1116 = vstv %s1115
        %v1117 = vmul.f32 %v909, %v1116
        %v1118 = vmul.f32 %v910, %v1116
        %v1119 = vmul.f32 %v911, %v1116
        %v1123 = vrot.slane %v1117, 1
        %v1124 = vrot.slane %v1118, 1
        %v1125 = vsel %vm449, %v1123, %v1124
        %v1126 = vrot.slane %v1119, 1
        %v1127 = vsel %vm449, %v1124, %v1126
        %1128 = vrot.lane.b32.xlu0 %v1125, 127
        %v1129 = vpop.permute.xlu0 %1128
        %1130 = vrot.lane.b32.xlu0 %v1127, 127
        %v1131 = vpop.permute.xlu0 %1130
        %v1134 = vadd.f32 %v1113, %v1129
        %v1135 = vadd.f32 %v1114, %v1131
        %s1136 = sld [smem:[#allocation10 + $0x20]]
        %v1137 = vstv %s1136
        %v1138 = vmul.f32 %v909, %v1137
        %v1139 = vmul.f32 %v910, %v1137
        %v1140 = vmul.f32 %v911, %v1137
        %v1144 = vrot.slane %v1138, 1
        %v1145 = vrot.slane %v1139, 1
        %v1146 = vsel %vm449, %v1144, %v1145
        %v1147 = vrot.slane %v1140, 1
        %v1148 = vsel %vm449, %v1145, %v1147
        %1149 = vrot.lane.b32.xlu0 %v1146, 126
        %v1150 = vpop.permute.xlu0 %1149
        %1151 = vrot.lane.b32.xlu0 %v1148, 126
        %v1152 = vpop.permute.xlu0 %1151
        %v1155 = vadd.f32 %v1134, %v1150
        %v1156 = vadd.f32 %v1135, %v1152
        %s1157 = sld [smem:[#allocation10 + $0x21]]
        %v1158 = vstv %s1157
        %v1159 = vmul.f32 %v909, %v1158
        %v1160 = vmul.f32 %v910, %v1158
        %v1161 = vmul.f32 %v911, %v1158
        %v1165 = vrot.slane %v1159, 2
        %v1166 = vrot.slane %v1160, 2
        %v1167 = vsel %vm509, %v1165, %v1166
        %v1168 = vrot.slane %v1161, 2
        %v1169 = vsel %vm509, %v1166, %v1168
        %v1172 = vadd.f32 %v1155, %v1167
        %v1173 = vadd.f32 %v1156, %v1169
        %s1174 = sld [smem:[#allocation10 + $0x22]]
        %v1175 = vstv %s1174
        %v1176 = vmul.f32 %v909, %v1175
        %v1177 = vmul.f32 %v910, %v1175
        %v1178 = vmul.f32 %v911, %v1175
        %v1182 = vrot.slane %v1176, 2
        %v1183 = vrot.slane %v1177, 2
        %v1184 = vsel %vm509, %v1182, %v1183
        %v1185 = vrot.slane %v1178, 2
        %v1186 = vsel %vm509, %v1183, %v1185
        %1187 = vrot.lane.b32.xlu0 %v1184, 127
        %v1188 = vpop.permute.xlu0 %1187
        %1189 = vrot.lane.b32.xlu0 %v1186, 127
        %v1190 = vpop.permute.xlu0 %1189
        %v1193 = vadd.f32 %v1172, %v1188
        %v1194 = vadd.f32 %v1173, %v1190
        %s1195 = sld [smem:[#allocation10 + $0x23]]
        %v1196 = vstv %s1195
        %v1197 = vmul.f32 %v909, %v1196
        %v1198 = vmul.f32 %v910, %v1196
        %v1199 = vmul.f32 %v911, %v1196
        %v1203 = vrot.slane %v1197, 2
        %v1204 = vrot.slane %v1198, 2
        %v1205 = vsel %vm509, %v1203, %v1204
        %v1206 = vrot.slane %v1199, 2
        %v1207 = vsel %vm509, %v1204, %v1206
        %1208 = vrot.lane.b32.xlu0 %v1205, 126
        %v1209 = vpop.permute.xlu0 %1208
        %1210 = vrot.lane.b32.xlu0 %v1207, 126
        %v1211 = vpop.permute.xlu0 %1210
        %v1214 = vadd.f32 %v1193, %v1209
        %v1215 = vadd.f32 %v1194, %v1211
        %s1216 = sld [smem:[#allocation10 + $0x36]]
        %v1217 = vstv %s1216
        %v1218 = vmul.f32 %v909, %v1217
        %v1219 = vmul.f32 %v910, %v1217
        %v1220 = vadd.f32 %v908, %v1218
        %v1221 = vadd.f32 %v908, %v1219
        %s1222 = sld [smem:[#allocation10 + $0x37]]
        %v1223 = vstv %s1222
        %v1224 = vmul.f32 %v909, %v1223
        %v1225 = vmul.f32 %v910, %v1223
        %1228 = vrot.lane.b32.xlu0 %v1224, 127
        %v1229 = vpop.permute.xlu0 %1228
        %1230 = vrot.lane.b32.xlu0 %v1225, 127
        %v1231 = vpop.permute.xlu0 %1230
        %v1234 = vadd.f32 %v1220, %v1229
        %v1235 = vadd.f32 %v1221, %v1231
        %s1236 = sld [smem:[#allocation10 + $0x38]]
        %v1237 = vstv %s1236
        %v1238 = vmul.f32 %v909, %v1237
        %v1239 = vmul.f32 %v910, %v1237
        %1242 = vrot.lane.b32.xlu0 %v1238, 126
        %v1243 = vpop.permute.xlu0 %1242
        %1244 = vrot.lane.b32.xlu0 %v1239, 126
        %v1245 = vpop.permute.xlu0 %1244
        %v1248 = vadd.f32 %v1234, %v1243
        %v1249 = vadd.f32 %v1235, %v1245
        %s1250 = sld [smem:[#allocation10 + $0x39]]
        %v1251 = vstv %s1250
        %v1252 = vmul.f32 %v909, %v1251
        %v1253 = vmul.f32 %v910, %v1251
        %v1254 = vmul.f32 %v911, %v1251
        %v1258 = vrot.slane %v1252, 1
        %v1259 = vrot.slane %v1253, 1
        %v1260 = vsel %vm449, %v1258, %v1259
        %v1261 = vrot.slane %v1254, 1
        %v1262 = vsel %vm449, %v1259, %v1261
        %v1265 = vadd.f32 %v1248, %v1260
        %v1266 = vadd.f32 %v1249, %v1262
        %s1267 = sld [smem:[#allocation10 + $0x3a]]
        %v1268 = vstv %s1267
        %v1269 = vmul.f32 %v909, %v1268
        %v1270 = vmul.f32 %v910, %v1268
        %v1271 = vmul.f32 %v911, %v1268
        %v1275 = vrot.slane %v1269, 1
        %v1276 = vrot.slane %v1270, 1
        %v1277 = vsel %vm449, %v1275, %v1276
        %v1278 = vrot.slane %v1271, 1
        %v1279 = vsel %vm449, %v1276, %v1278
        %1280 = vrot.lane.b32.xlu0 %v1277, 127
        %v1281 = vpop.permute.xlu0 %1280
        %1282 = vrot.lane.b32.xlu0 %v1279, 127
        %v1283 = vpop.permute.xlu0 %1282
        %v1286 = vadd.f32 %v1265, %v1281
        %v1287 = vadd.f32 %v1266, %v1283
        %s1288 = sld [smem:[#allocation10 + $0x3b]]
        %v1289 = vstv %s1288
        %v1290 = vmul.f32 %v909, %v1289
        %v1291 = vmul.f32 %v910, %v1289
        %v1292 = vmul.f32 %v911, %v1289
        %v1296 = vrot.slane %v1290, 1
        %v1297 = vrot.slane %v1291, 1
        %v1298 = vsel %vm449, %v1296, %v1297
        %v1299 = vrot.slane %v1292, 1
        %v1300 = vsel %vm449, %v1297, %v1299
        %1301 = vrot.lane.b32.xlu0 %v1298, 126
        %v1302 = vpop.permute.xlu0 %1301
        %1303 = vrot.lane.b32.xlu0 %v1300, 126
        %v1304 = vpop.permute.xlu0 %1303
        %v1307 = vadd.f32 %v1286, %v1302
        %v1308 = vadd.f32 %v1287, %v1304
        %s1309 = sld [smem:[#allocation10 + $0x3c]]
        %v1310 = vstv %s1309
        %v1311 = vmul.f32 %v909, %v1310
        %v1312 = vmul.f32 %v910, %v1310
        %v1313 = vmul.f32 %v911, %v1310
        %v1317 = vrot.slane %v1311, 2
        %v1318 = vrot.slane %v1312, 2
        %v1319 = vsel %vm509, %v1317, %v1318
        %v1320 = vrot.slane %v1313, 2
        %v1321 = vsel %vm509, %v1318, %v1320
        %v1324 = vadd.f32 %v1307, %v1319
        %v1325 = vadd.f32 %v1308, %v1321
        %s1326 = sld [smem:[#allocation10 + $0x3d]]
        %v1327 = vstv %s1326
        %v1328 = vmul.f32 %v909, %v1327
        %v1329 = vmul.f32 %v910, %v1327
        %v1330 = vmul.f32 %v911, %v1327
        %v1334 = vrot.slane %v1328, 2
        %v1335 = vrot.slane %v1329, 2
        %v1336 = vsel %vm509, %v1334, %v1335
        %v1337 = vrot.slane %v1330, 2
        %v1338 = vsel %vm509, %v1335, %v1337
        %1339 = vrot.lane.b32.xlu0 %v1336, 127
        %v1340 = vpop.permute.xlu0 %1339
        %1341 = vrot.lane.b32.xlu0 %v1338, 127
        %v1342 = vpop.permute.xlu0 %1341
        %v1345 = vadd.f32 %v1324, %v1340
        %v1346 = vadd.f32 %v1325, %v1342
        %s1347 = sld [smem:[#allocation10 + $0x3e]]
        %v1348 = vstv %s1347
        %v1349 = vmul.f32 %v909, %v1348
        %v1350 = vmul.f32 %v910, %v1348
        %v1351 = vmul.f32 %v911, %v1348
        %v1355 = vrot.slane %v1349, 2
        %v1356 = vrot.slane %v1350, 2
        %v1357 = vsel %vm509, %v1355, %v1356
        %v1358 = vrot.slane %v1351, 2
        %v1359 = vsel %vm509, %v1356, %v1358
        %1360 = vrot.lane.b32.xlu0 %v1357, 126
        %v1361 = vpop.permute.xlu0 %1360
        %1362 = vrot.lane.b32.xlu0 %v1359, 126
        %v1363 = vpop.permute.xlu0 %1362
        %v1366 = vadd.f32 %v1345, %v1361
        %v1367 = vadd.f32 %v1346, %v1363
        %v1368 = vld [vmem:[%s889] sm:$0xff]
        %v1369 = vld [vmem:[%s889 + $0x8] sm:$0xff]
        %v1370 = vld [vmem:[%s889 + $0x10] sm:$0x3]
        %s1371 = sld [smem:[#allocation10 + $0x9]]
        %v1372 = vstv %s1371
        %v1373 = vmul.f32 %v1368, %v1372
        %v1374 = vmul.f32 %v1369, %v1372
        %v1375 = vadd.f32 %v1062, %v1373
        %v1376 = vadd.f32 %v1063, %v1374
        %s1377 = sld [smem:[#allocation10 + $0xa]]
        %v1378 = vstv %s1377
        %v1379 = vmul.f32 %v1368, %v1378
        %v1380 = vmul.f32 %v1369, %v1378
        %1383 = vrot.lane.b32.xlu0 %v1379, 127
        %v1384 = vpop.permute.xlu0 %1383
        %1385 = vrot.lane.b32.xlu0 %v1380, 127
        %v1386 = vpop.permute.xlu0 %1385
        %v1389 = vadd.f32 %v1375, %v1384
        %v1390 = vadd.f32 %v1376, %v1386
        %s1391 = sld [smem:[#allocation10 + $0xb]]
        %v1392 = vstv %s1391
        %v1393 = vmul.f32 %v1368, %v1392
        %v1394 = vmul.f32 %v1369, %v1392
        %1397 = vrot.lane.b32.xlu0 %v1393, 126
        %v1398 = vpop.permute.xlu0 %1397
        %1399 = vrot.lane.b32.xlu0 %v1394, 126
        %v1400 = vpop.permute.xlu0 %1399
        %v1403 = vadd.f32 %v1389, %v1398
        %v1404 = vadd.f32 %v1390, %v1400
        %s1405 = sld [smem:[#allocation10 + $0xc]]
        %v1406 = vstv %s1405
        %v1407 = vmul.f32 %v1368, %v1406
        %v1408 = vmul.f32 %v1369, %v1406
        %v1409 = vmul.f32 %v1370, %v1406
        %v1413 = vrot.slane %v1407, 1
        %v1414 = vrot.slane %v1408, 1
        %v1415 = vsel %vm449, %v1413, %v1414
        %v1416 = vrot.slane %v1409, 1
        %v1417 = vsel %vm449, %v1414, %v1416
        %v1420 = vadd.f32 %v1403, %v1415
        %v1421 = vadd.f32 %v1404, %v1417
        %s1422 = sld [smem:[#allocation10 + $0xd]]
        %v1423 = vstv %s1422
        %v1424 = vmul.f32 %v1368, %v1423
        %v1425 = vmul.f32 %v1369, %v1423
        %v1426 = vmul.f32 %v1370, %v1423
        %v1430 = vrot.slane %v1424, 1
        %v1431 = vrot.slane %v1425, 1
        %v1432 = vsel %vm449, %v1430, %v1431
        %v1433 = vrot.slane %v1426, 1
        %v1434 = vsel %vm449, %v1431, %v1433
        %1435 = vrot.lane.b32.xlu0 %v1432, 127
        %v1436 = vpop.permute.xlu0 %1435
        %1437 = vrot.lane.b32.xlu0 %v1434, 127
        %v1438 = vpop.permute.xlu0 %1437
        %v1441 = vadd.f32 %v1420, %v1436
        %v1442 = vadd.f32 %v1421, %v1438
        %s1443 = sld [smem:[#allocation10 + $0xe]]
        %v1444 = vstv %s1443
        %v1445 = vmul.f32 %v1368, %v1444
        %v1446 = vmul.f32 %v1369, %v1444
        %v1447 = vmul.f32 %v1370, %v1444
        %v1451 = vrot.slane %v1445, 1
        %v1452 = vrot.slane %v1446, 1
        %v1453 = vsel %vm449, %v1451, %v1452
        %v1454 = vrot.slane %v1447, 1
        %v1455 = vsel %vm449, %v1452, %v1454
        %1456 = vrot.lane.b32.xlu0 %v1453, 126
        %v1457 = vpop.permute.xlu0 %1456
        %1458 = vrot.lane.b32.xlu0 %v1455, 126
        %v1459 = vpop.permute.xlu0 %1458
        %v1462 = vadd.f32 %v1441, %v1457
        %v1463 = vadd.f32 %v1442, %v1459
        %s1464 = sld [smem:[#allocation10 + $0xf]]
        %v1465 = vstv %s1464
        %v1466 = vmul.f32 %v1368, %v1465
        %v1467 = vmul.f32 %v1369, %v1465
        %v1468 = vmul.f32 %v1370, %v1465
        %v1472 = vrot.slane %v1466, 2
        %v1473 = vrot.slane %v1467, 2
        %v1474 = vsel %vm509, %v1472, %v1473
        %v1475 = vrot.slane %v1468, 2
        %v1476 = vsel %vm509, %v1473, %v1475
        %v1479 = vadd.f32 %v1462, %v1474
        %v1480 = vadd.f32 %v1463, %v1476
        %s1481 = sld [smem:[#allocation10 + $0x10]]
        %v1482 = vstv %s1481
        %v1483 = vmul.f32 %v1368, %v1482
        %v1484 = vmul.f32 %v1369, %v1482
        %v1485 = vmul.f32 %v1370, %v1482
        %v1489 = vrot.slane %v1483, 2
        %v1490 = vrot.slane %v1484, 2
        %v1491 = vsel %vm509, %v1489, %v1490
        %v1492 = vrot.slane %v1485, 2
        %v1493 = vsel %vm509, %v1490, %v1492
        %1494 = vrot.lane.b32.xlu0 %v1491, 127
        %v1495 = vpop.permute.xlu0 %1494
        %1496 = vrot.lane.b32.xlu0 %v1493, 127
        %v1497 = vpop.permute.xlu0 %1496
        %v1500 = vadd.f32 %v1479, %v1495
        %v1501 = vadd.f32 %v1480, %v1497
        %s1502 = sld [smem:[#allocation10 + $0x11]]
        %v1503 = vstv %s1502
        %v1504 = vmul.f32 %v1368, %v1503
        %v1505 = vmul.f32 %v1369, %v1503
        %v1506 = vmul.f32 %v1370, %v1503
        %v1510 = vrot.slane %v1504, 2
        %v1511 = vrot.slane %v1505, 2
        %v1512 = vsel %vm509, %v1510, %v1511
        %v1513 = vrot.slane %v1506, 2
        %v1514 = vsel %vm509, %v1511, %v1513
        %1515 = vrot.lane.b32.xlu0 %v1512, 126
        %v1516 = vpop.permute.xlu0 %1515
        %1517 = vrot.lane.b32.xlu0 %v1514, 126
        %v1518 = vpop.permute.xlu0 %1517
        %v1521 = vadd.f32 %v1500, %v1516
        %v1522 = vadd.f32 %v1501, %v1518
        %s1523 = sld [smem:[#allocation10 + $0x24]]
        %v1524 = vstv %s1523
        %v1525 = vmul.f32 %v1368, %v1524
        %v1526 = vmul.f32 %v1369, %v1524
        %v1527 = vadd.f32 %v1214, %v1525
        %v1528 = vadd.f32 %v1215, %v1526
        %s1529 = sld [smem:[#allocation10 + $0x25]]
        %v1530 = vstv %s1529
        %v1531 = vmul.f32 %v1368, %v1530
        %v1532 = vmul.f32 %v1369, %v1530
        %1535 = vrot.lane.b32.xlu0 %v1531, 127
        %v1536 = vpop.permute.xlu0 %1535
        %1537 = vrot.lane.b32.xlu0 %v1532, 127
        %v1538 = vpop.permute.xlu0 %1537
        %v1541 = vadd.f32 %v1527, %v1536
        %v1542 = vadd.f32 %v1528, %v1538
        %s1543 = sld [smem:[#allocation10 + $0x26]]
        %v1544 = vstv %s1543
        %v1545 = vmul.f32 %v1368, %v1544
        %v1546 = vmul.f32 %v1369, %v1544
        %1549 = vrot.lane.b32.xlu0 %v1545, 126
        %v1550 = vpop.permute.xlu0 %1549
        %1551 = vrot.lane.b32.xlu0 %v1546, 126
        %v1552 = vpop.permute.xlu0 %1551
        %v1555 = vadd.f32 %v1541, %v1550
        %v1556 = vadd.f32 %v1542, %v1552
        %s1557 = sld [smem:[#allocation10 + $0x27]]
        %v1558 = vstv %s1557
        %v1559 = vmul.f32 %v1368, %v1558
        %v1560 = vmul.f32 %v1369, %v1558
        %v1561 = vmul.f32 %v1370, %v1558
        %v1565 = vrot.slane %v1559, 1
        %v1566 = vrot.slane %v1560, 1
        %v1567 = vsel %vm449, %v1565, %v1566
        %v1568 = vrot.slane %v1561, 1
        %v1569 = vsel %vm449, %v1566, %v1568
        %v1572 = vadd.f32 %v1555, %v1567
        %v1573 = vadd.f32 %v1556, %v1569
        %s1574 = sld [smem:[#allocation10 + $0x28]]
        %v1575 = vstv %s1574
        %v1576 = vmul.f32 %v1368, %v1575
        %v1577 = vmul.f32 %v1369, %v1575
        %v1578 = vmul.f32 %v1370, %v1575
        %v1582 = vrot.slane %v1576, 1
        %v1583 = vrot.slane %v1577, 1
        %v1584 = vsel %vm449, %v1582, %v1583
        %v1585 = vrot.slane %v1578, 1
        %v1586 = vsel %vm449, %v1583, %v1585
        %1587 = vrot.lane.b32.xlu0 %v1584, 127
        %v1588 = vpop.permute.xlu0 %1587
        %1589 = vrot.lane.b32.xlu0 %v1586, 127
        %v1590 = vpop.permute.xlu0 %1589
        %v1593 = vadd.f32 %v1572, %v1588
        %v1594 = vadd.f32 %v1573, %v1590
        %s1595 = sld [smem:[#allocation10 + $0x29]]
        %v1596 = vstv %s1595
        %v1597 = vmul.f32 %v1368, %v1596
        %v1598 = vmul.f32 %v1369, %v1596
        %v1599 = vmul.f32 %v1370, %v1596
        %v1603 = vrot.slane %v1597, 1
        %v1604 = vrot.slane %v1598, 1
        %v1605 = vsel %vm449, %v1603, %v1604
        %v1606 = vrot.slane %v1599, 1
        %v1607 = vsel %vm449, %v1604, %v1606
        %1608 = vrot.lane.b32.xlu0 %v1605, 126
        %v1609 = vpop.permute.xlu0 %1608
        %1610 = vrot.lane.b32.xlu0 %v1607, 126
        %v1611 = vpop.permute.xlu0 %1610
        %v1614 = vadd.f32 %v1593, %v1609
        %v1615 = vadd.f32 %v1594, %v1611
        %s1616 = sld [smem:[#allocation10 + $0x2a]]
        %v1617 = vstv %s1616
        %v1618 = vmul.f32 %v1368, %v1617
        %v1619 = vmul.f32 %v1369, %v1617
        %v1620 = vmul.f32 %v1370, %v1617
        %v1624 = vrot.slane %v1618, 2
        %v1625 = vrot.slane %v1619, 2
        %v1626 = vsel %vm509, %v1624, %v1625
        %v1627 = vrot.slane %v1620, 2
        %v1628 = vsel %vm509, %v1625, %v1627
        %v1631 = vadd.f32 %v1614, %v1626
        %v1632 = vadd.f32 %v1615, %v1628
        %s1633 = sld [smem:[#allocation10 + $0x2b]]
        %v1634 = vstv %s1633
        %v1635 = vmul.f32 %v1368, %v1634
        %v1636 = vmul.f32 %v1369, %v1634
        %v1637 = vmul.f32 %v1370, %v1634
        %v1641 = vrot.slane %v1635, 2
        %v1642 = vrot.slane %v1636, 2
        %v1643 = vsel %vm509, %v1641, %v1642
        %v1644 = vrot.slane %v1637, 2
        %v1645 = vsel %vm509, %v1642, %v1644
        %1646 = vrot.lane.b32.xlu0 %v1643, 127
        %v1647 = vpop.permute.xlu0 %1646
        %1648 = vrot.lane.b32.xlu0 %v1645, 127
        %v1649 = vpop.permute.xlu0 %1648
        %v1652 = vadd.f32 %v1631, %v1647
        %v1653 = vadd.f32 %v1632, %v1649
        %s1654 = sld [smem:[#allocation10 + $0x2c]]
        %v1655 = vstv %s1654
        %v1656 = vmul.f32 %v1368, %v1655
        %v1657 = vmul.f32 %v1369, %v1655
        %v1658 = vmul.f32 %v1370, %v1655
        %v1662 = vrot.slane %v1656, 2
        %v1663 = vrot.slane %v1657, 2
        %v1664 = vsel %vm509, %v1662, %v1663
        %v1665 = vrot.slane %v1658, 2
        %v1666 = vsel %vm509, %v1663, %v1665
        %1667 = vrot.lane.b32.xlu0 %v1664, 126
        %v1668 = vpop.permute.xlu0 %1667
        %1669 = vrot.lane.b32.xlu0 %v1666, 126
        %v1670 = vpop.permute.xlu0 %1669
        %v1673 = vadd.f32 %v1652, %v1668
        %v1674 = vadd.f32 %v1653, %v1670
        %s1675 = sld [smem:[#allocation10 + $0x3f]]
        %v1676 = vstv %s1675
        %v1677 = vmul.f32 %v1368, %v1676
        %v1678 = vmul.f32 %v1369, %v1676
        %v1679 = vadd.f32 %v1366, %v1677
        %v1680 = vadd.f32 %v1367, %v1678
        %s1681 = sld [smem:[#allocation10 + $0x40]]
        %v1682 = vstv %s1681
        %v1683 = vmul.f32 %v1368, %v1682
        %v1684 = vmul.f32 %v1369, %v1682
        %1687 = vrot.lane.b32.xlu0 %v1683, 127
        %v1688 = vpop.permute.xlu0 %1687
        %1689 = vrot.lane.b32.xlu0 %v1684, 127
        %v1690 = vpop.permute.xlu0 %1689
        %v1693 = vadd.f32 %v1679, %v1688
        %v1694 = vadd.f32 %v1680, %v1690
        %s1695 = sld [smem:[#allocation10 + $0x41]]
        %v1696 = vstv %s1695
        %v1697 = vmul.f32 %v1368, %v1696
        %v1698 = vmul.f32 %v1369, %v1696
        %1701 = vrot.lane.b32.xlu0 %v1697, 126
        %v1702 = vpop.permute.xlu0 %1701
        %1703 = vrot.lane.b32.xlu0 %v1698, 126
        %v1704 = vpop.permute.xlu0 %1703
        %v1707 = vadd.f32 %v1693, %v1702
        %v1708 = vadd.f32 %v1694, %v1704
        %s1709 = sld [smem:[#allocation10 + $0x42]]
        %v1710 = vstv %s1709
        %v1711 = vmul.f32 %v1368, %v1710
        %v1712 = vmul.f32 %v1369, %v1710
        %v1713 = vmul.f32 %v1370, %v1710
        %v1717 = vrot.slane %v1711, 1
        %v1718 = vrot.slane %v1712, 1
        %v1719 = vsel %vm449, %v1717, %v1718
        %v1720 = vrot.slane %v1713, 1
        %v1721 = vsel %vm449, %v1718, %v1720
        %v1724 = vadd.f32 %v1707, %v1719
        %v1725 = vadd.f32 %v1708, %v1721
        %s1726 = sld [smem:[#allocation10 + $0x43]]
        %v1727 = vstv %s1726
        %v1728 = vmul.f32 %v1368, %v1727
        %v1729 = vmul.f32 %v1369, %v1727
        %v1730 = vmul.f32 %v1370, %v1727
        %v1734 = vrot.slane %v1728, 1
        %v1735 = vrot.slane %v1729, 1
        %v1736 = vsel %vm449, %v1734, %v1735
        %v1737 = vrot.slane %v1730, 1
        %v1738 = vsel %vm449, %v1735, %v1737
        %1739 = vrot.lane.b32.xlu0 %v1736, 127
        %v1740 = vpop.permute.xlu0 %1739
        %1741 = vrot.lane.b32.xlu0 %v1738, 127
        %v1742 = vpop.permute.xlu0 %1741
        %v1745 = vadd.f32 %v1724, %v1740
        %v1746 = vadd.f32 %v1725, %v1742
        %s1747 = sld [smem:[#allocation10 + $0x44]]
        %v1748 = vstv %s1747
        %v1749 = vmul.f32 %v1368, %v1748
        %v1750 = vmul.f32 %v1369, %v1748
        %v1751 = vmul.f32 %v1370, %v1748
        %v1755 = vrot.slane %v1749, 1
        %v1756 = vrot.slane %v1750, 1
        %v1757 = vsel %vm449, %v1755, %v1756
        %v1758 = vrot.slane %v1751, 1
        %v1759 = vsel %vm449, %v1756, %v1758
        %1760 = vrot.lane.b32.xlu0 %v1757, 126
        %v1761 = vpop.permute.xlu0 %1760
        %1762 = vrot.lane.b32.xlu0 %v1759, 126
        %v1763 = vpop.permute.xlu0 %1762
        %v1766 = vadd.f32 %v1745, %v1761
        %v1767 = vadd.f32 %v1746, %v1763
        %s1768 = sld [smem:[#allocation10 + $0x45]]
        %v1769 = vstv %s1768
        %v1770 = vmul.f32 %v1368, %v1769
        %v1771 = vmul.f32 %v1369, %v1769
        %v1772 = vmul.f32 %v1370, %v1769
        %v1776 = vrot.slane %v1770, 2
        %v1777 = vrot.slane %v1771, 2
        %v1778 = vsel %vm509, %v1776, %v1777
        %v1779 = vrot.slane %v1772, 2
        %v1780 = vsel %vm509, %v1777, %v1779
        %v1783 = vadd.f32 %v1766, %v1778
        %v1784 = vadd.f32 %v1767, %v1780
        %s1785 = sld [smem:[#allocation10 + $0x46]]
        %v1786 = vstv %s1785
        %v1787 = vmul.f32 %v1368, %v1786
        %v1788 = vmul.f32 %v1369, %v1786
        %v1789 = vmul.f32 %v1370, %v1786
        %v1793 = vrot.slane %v1787, 2
        %v1794 = vrot.slane %v1788, 2
        %v1795 = vsel %vm509, %v1793, %v1794
        %v1796 = vrot.slane %v1789, 2
        %v1797 = vsel %vm509, %v1794, %v1796
        %1798 = vrot.lane.b32.xlu0 %v1795, 127
        %v1799 = vpop.permute.xlu0 %1798
        %1800 = vrot.lane.b32.xlu0 %v1797, 127
        %v1801 = vpop.permute.xlu0 %1800
        %v1804 = vadd.f32 %v1783, %v1799
        %v1805 = vadd.f32 %v1784, %v1801
        %s1806 = sld [smem:[#allocation10 + $0x47]]
        %v1807 = vstv %s1806
        %v1808 = vmul.f32 %v1368, %v1807
        %v1809 = vmul.f32 %v1369, %v1807
        %v1810 = vmul.f32 %v1370, %v1807
        %v1814 = vrot.slane %v1808, 2
        %v1815 = vrot.slane %v1809, 2
        %v1816 = vsel %vm509, %v1814, %v1815
        %v1817 = vrot.slane %v1810, 2
        %v1818 = vsel %vm509, %v1815, %v1817
        %1819 = vrot.lane.b32.xlu0 %v1816, 126
        %v1820 = vpop.permute.xlu0 %1819
        %1821 = vrot.lane.b32.xlu0 %v1818, 126
        %v1822 = vpop.permute.xlu0 %1821
        %v1825 = vadd.f32 %v1804, %v1820
        %v1826 = vadd.f32 %v1805, %v1822
        %v1827 = vld [vmem:[%s900] sm:$0xff]
        %v1828 = vld [vmem:[%s900 + $0x8] sm:$0xff]
        %v1829 = vld [vmem:[%s900 + $0x10] sm:$0x3]
        %s1830 = sld [smem:[#allocation10 + $0x12]]
        %v1831 = vstv %s1830
        %v1832 = vmul.f32 %v1827, %v1831
        %v1833 = vmul.f32 %v1828, %v1831
        %v1834 = vadd.f32 %v1521, %v1832
        %v1835 = vadd.f32 %v1522, %v1833
        %s1836 = sld [smem:[#allocation10 + $0x13]]
        %v1837 = vstv %s1836
        %v1838 = vmul.f32 %v1827, %v1837
        %v1839 = vmul.f32 %v1828, %v1837
        %1842 = vrot.lane.b32.xlu0 %v1838, 127
        %v1843 = vpop.permute.xlu0 %1842
        %1844 = vrot.lane.b32.xlu0 %v1839, 127
        %v1845 = vpop.permute.xlu0 %1844
        %v1848 = vadd.f32 %v1834, %v1843
        %v1849 = vadd.f32 %v1835, %v1845
        %s1850 = sld [smem:[#allocation10 + $0x14]]
        %v1851 = vstv %s1850
        %v1852 = vmul.f32 %v1827, %v1851
        %v1853 = vmul.f32 %v1828, %v1851
        %1856 = vrot.lane.b32.xlu0 %v1852, 126
        %v1857 = vpop.permute.xlu0 %1856
        %1858 = vrot.lane.b32.xlu0 %v1853, 126
        %v1859 = vpop.permute.xlu0 %1858
        %v1862 = vadd.f32 %v1848, %v1857
        %v1863 = vadd.f32 %v1849, %v1859
        %s1864 = sld [smem:[#allocation10 + $0x15]]
        %v1865 = vstv %s1864
        %v1866 = vmul.f32 %v1827, %v1865
        %v1867 = vmul.f32 %v1828, %v1865
        %v1868 = vmul.f32 %v1829, %v1865
        %v1872 = vrot.slane %v1866, 1
        %v1873 = vrot.slane %v1867, 1
        %v1874 = vsel %vm449, %v1872, %v1873
        %v1875 = vrot.slane %v1868, 1
        %v1876 = vsel %vm449, %v1873, %v1875
        %v1879 = vadd.f32 %v1862, %v1874
        %v1880 = vadd.f32 %v1863, %v1876
        %s1881 = sld [smem:[#allocation10 + $0x16]]
        %v1882 = vstv %s1881
        %v1883 = vmul.f32 %v1827, %v1882
        %v1884 = vmul.f32 %v1828, %v1882
        %v1885 = vmul.f32 %v1829, %v1882
        %v1889 = vrot.slane %v1883, 1
        %v1890 = vrot.slane %v1884, 1
        %v1891 = vsel %vm449, %v1889, %v1890
        %v1892 = vrot.slane %v1885, 1
        %v1893 = vsel %vm449, %v1890, %v1892
        %1894 = vrot.lane.b32.xlu0 %v1891, 127
        %v1895 = vpop.permute.xlu0 %1894
        %1896 = vrot.lane.b32.xlu0 %v1893, 127
        %v1897 = vpop.permute.xlu0 %1896
        %v1900 = vadd.f32 %v1879, %v1895
        %v1901 = vadd.f32 %v1880, %v1897
        %s1902 = sld [smem:[#allocation10 + $0x17]]
        %v1903 = vstv %s1902
        %v1904 = vmul.f32 %v1827, %v1903
        %v1905 = vmul.f32 %v1828, %v1903
        %v1906 = vmul.f32 %v1829, %v1903
        %v1910 = vrot.slane %v1904, 1
        %v1911 = vrot.slane %v1905, 1
        %v1912 = vsel %vm449, %v1910, %v1911
        %v1913 = vrot.slane %v1906, 1
        %v1914 = vsel %vm449, %v1911, %v1913
        %1915 = vrot.lane.b32.xlu0 %v1912, 126
        %v1916 = vpop.permute.xlu0 %1915
        %1917 = vrot.lane.b32.xlu0 %v1914, 126
        %v1918 = vpop.permute.xlu0 %1917
        %v1921 = vadd.f32 %v1900, %v1916
        %v1922 = vadd.f32 %v1901, %v1918
        %s1923 = sld [smem:[#allocation10 + $0x18]]
        %v1924 = vstv %s1923
        %v1925 = vmul.f32 %v1827, %v1924
        %v1926 = vmul.f32 %v1828, %v1924
        %v1927 = vmul.f32 %v1829, %v1924
        %v1931 = vrot.slane %v1925, 2
        %v1932 = vrot.slane %v1926, 2
        %v1933 = vsel %vm509, %v1931, %v1932
        %v1934 = vrot.slane %v1927, 2
        %v1935 = vsel %vm509, %v1932, %v1934
        %v1938 = vadd.f32 %v1921, %v1933
        %v1939 = vadd.f32 %v1922, %v1935
        %s1940 = sld [smem:[#allocation10 + $0x19]]
        %v1941 = vstv %s1940
        %v1942 = vmul.f32 %v1827, %v1941
        %v1943 = vmul.f32 %v1828, %v1941
        %v1944 = vmul.f32 %v1829, %v1941
        %v1948 = vrot.slane %v1942, 2
        %v1949 = vrot.slane %v1943, 2
        %v1950 = vsel %vm509, %v1948, %v1949
        %v1951 = vrot.slane %v1944, 2
        %v1952 = vsel %vm509, %v1949, %v1951
        %1953 = vrot.lane.b32.xlu0 %v1950, 127
        %v1954 = vpop.permute.xlu0 %1953
        %1955 = vrot.lane.b32.xlu0 %v1952, 127
        %v1956 = vpop.permute.xlu0 %1955
        %v1959 = vadd.f32 %v1938, %v1954
        %v1960 = vadd.f32 %v1939, %v1956
        %s1961 = sld [smem:[#allocation10 + $0x1a]]
        %v1962 = vstv %s1961
        %v1963 = vmul.f32 %v1827, %v1962
        %v1964 = vmul.f32 %v1828, %v1962
        %v1965 = vmul.f32 %v1829, %v1962
        %v1969 = vrot.slane %v1963, 2
        %v1970 = vrot.slane %v1964, 2
        %v1971 = vsel %vm509, %v1969, %v1970
        %v1972 = vrot.slane %v1965, 2
        %v1973 = vsel %vm509, %v1970, %v1972
        %1974 = vrot.lane.b32.xlu0 %v1971, 126
        %v1975 = vpop.permute.xlu0 %1974
        %1976 = vrot.lane.b32.xlu0 %v1973, 126
        %v1977 = vpop.permute.xlu0 %1976
        %v1980 = vadd.f32 %v1959, %v1975
        %v1981 = vadd.f32 %v1960, %v1977
        %s1982 = sld [smem:[#allocation10 + $0x2d]]
        %v1983 = vstv %s1982
        %v1984 = vmul.f32 %v1827, %v1983
        %v1985 = vmul.f32 %v1828, %v1983
        %v1986 = vadd.f32 %v1673, %v1984
        %v1987 = vadd.f32 %v1674, %v1985
        %s1988 = sld [smem:[#allocation10 + $0x2e]]
        %v1989 = vstv %s1988
        %v1990 = vmul.f32 %v1827, %v1989
        %v1991 = vmul.f32 %v1828, %v1989
        %1994 = vrot.lane.b32.xlu0 %v1990, 127
        %v1995 = vpop.permute.xlu0 %1994
        %1996 = vrot.lane.b32.xlu0 %v1991, 127
        %v1997 = vpop.permute.xlu0 %1996
        %v2000 = vadd.f32 %v1986, %v1995
        %v2001 = vadd.f32 %v1987, %v1997
        %s2002 = sld [smem:[#allocation10 + $0x2f]]
        %v2003 = vstv %s2002
        %v2004 = vmul.f32 %v1827, %v2003
        %v2005 = vmul.f32 %v1828, %v2003
        %2008 = vrot.lane.b32.xlu0 %v2004, 126
        %v2009 = vpop.permute.xlu0 %2008
        %2010 = vrot.lane.b32.xlu0 %v2005, 126
        %v2011 = vpop.permute.xlu0 %2010
        %v2014 = vadd.f32 %v2000, %v2009
        %v2015 = vadd.f32 %v2001, %v2011
        %s2016 = sld [smem:[#allocation10 + $0x30]]
        %v2017 = vstv %s2016
        %v2018 = vmul.f32 %v1827, %v2017
        %v2019 = vmul.f32 %v1828, %v2017
        %v2020 = vmul.f32 %v1829, %v2017
        %v2024 = vrot.slane %v2018, 1
        %v2025 = vrot.slane %v2019, 1
        %v2026 = vsel %vm449, %v2024, %v2025
        %v2027 = vrot.slane %v2020, 1
        %v2028 = vsel %vm449, %v2025, %v2027
        %v2031 = vadd.f32 %v2014, %v2026
        %v2032 = vadd.f32 %v2015, %v2028
        %s2033 = sld [smem:[#allocation10 + $0x31]]
        %v2034 = vstv %s2033
        %v2035 = vmul.f32 %v1827, %v2034
        %v2036 = vmul.f32 %v1828, %v2034
        %v2037 = vmul.f32 %v1829, %v2034
        %v2041 = vrot.slane %v2035, 1
        %v2042 = vrot.slane %v2036, 1
        %v2043 = vsel %vm449, %v2041, %v2042
        %v2044 = vrot.slane %v2037, 1
        %v2045 = vsel %vm449, %v2042, %v2044
        %2046 = vrot.lane.b32.xlu0 %v2043, 127
        %v2047 = vpop.permute.xlu0 %2046
        %2048 = vrot.lane.b32.xlu0 %v2045, 127
        %v2049 = vpop.permute.xlu0 %2048
        %v2052 = vadd.f32 %v2031, %v2047
        %v2053 = vadd.f32 %v2032, %v2049
        %s2054 = sld [smem:[#allocation10 + $0x32]]
        %v2055 = vstv %s2054
        %v2056 = vmul.f32 %v1827, %v2055
        %v2057 = vmul.f32 %v1828, %v2055
        %v2058 = vmul.f32 %v1829, %v2055
        %v2062 = vrot.slane %v2056, 1
        %v2063 = vrot.slane %v2057, 1
        %v2064 = vsel %vm449, %v2062, %v2063
        %v2065 = vrot.slane %v2058, 1
        %v2066 = vsel %vm449, %v2063, %v2065
        %2067 = vrot.lane.b32.xlu0 %v2064, 126
        %v2068 = vpop.permute.xlu0 %2067
        %2069 = vrot.lane.b32.xlu0 %v2066, 126
        %v2070 = vpop.permute.xlu0 %2069
        %v2073 = vadd.f32 %v2052, %v2068
        %v2074 = vadd.f32 %v2053, %v2070
        %s2075 = sld [smem:[#allocation10 + $0x33]]
        %v2076 = vstv %s2075
        %v2077 = vmul.f32 %v1827, %v2076
        %v2078 = vmul.f32 %v1828, %v2076
        %v2079 = vmul.f32 %v1829, %v2076
        %v2083 = vrot.slane %v2077, 2
        %v2084 = vrot.slane %v2078, 2
        %v2085 = vsel %vm509, %v2083, %v2084
        %v2086 = vrot.slane %v2079, 2
        %v2087 = vsel %vm509, %v2084, %v2086
        %v2090 = vadd.f32 %v2073, %v2085
        %v2091 = vadd.f32 %v2074, %v2087
        %s2092 = sld [smem:[#allocation10 + $0x34]]
        %v2093 = vstv %s2092
        %v2094 = vmul.f32 %v1827, %v2093
        %v2095 = vmul.f32 %v1828, %v2093
        %v2096 = vmul.f32 %v1829, %v2093
        %v2100 = vrot.slane %v2094, 2
        %v2101 = vrot.slane %v2095, 2
        %v2102 = vsel %vm509, %v2100, %v2101
        %v2103 = vrot.slane %v2096, 2
        %v2104 = vsel %vm509, %v2101, %v2103
        %2105 = vrot.lane.b32.xlu0 %v2102, 127
        %v2106 = vpop.permute.xlu0 %2105
        %2107 = vrot.lane.b32.xlu0 %v2104, 127
        %v2108 = vpop.permute.xlu0 %2107
        %v2111 = vadd.f32 %v2090, %v2106
        %v2112 = vadd.f32 %v2091, %v2108
        %s2113 = sld [smem:[#allocation10 + $0x35]]
        %v2114 = vstv %s2113
        %v2115 = vmul.f32 %v1827, %v2114
        %v2116 = vmul.f32 %v1828, %v2114
        %v2117 = vmul.f32 %v1829, %v2114
        %v2121 = vrot.slane %v2115, 2
        %v2122 = vrot.slane %v2116, 2
        %v2123 = vsel %vm509, %v2121, %v2122
        %v2124 = vrot.slane %v2117, 2
        %v2125 = vsel %vm509, %v2122, %v2124
        %2126 = vrot.lane.b32.xlu0 %v2123, 126
        %v2127 = vpop.permute.xlu0 %2126
        %2128 = vrot.lane.b32.xlu0 %v2125, 126
        %v2129 = vpop.permute.xlu0 %2128
        %v2132 = vadd.f32 %v2111, %v2127
        %v2133 = vadd.f32 %v2112, %v2129
        %s2134 = sld [smem:[#allocation10 + $0x48]]
        %v2135 = vstv %s2134
        %v2136 = vmul.f32 %v1827, %v2135
        %v2137 = vmul.f32 %v1828, %v2135
        %v2138 = vadd.f32 %v1825, %v2136
        %v2139 = vadd.f32 %v1826, %v2137
        %s2140 = sld [smem:[#allocation10 + $0x49]]
        %v2141 = vstv %s2140
        %v2142 = vmul.f32 %v1827, %v2141
        %v2143 = vmul.f32 %v1828, %v2141
        %2146 = vrot.lane.b32.xlu0 %v2142, 127
        %v2147 = vpop.permute.xlu0 %2146
        %2148 = vrot.lane.b32.xlu0 %v2143, 127
        %v2149 = vpop.permute.xlu0 %2148
        %v2152 = vadd.f32 %v2138, %v2147
        %v2153 = vadd.f32 %v2139, %v2149
        %s2154 = sld [smem:[#allocation10 + $0x4a]]
        %v2155 = vstv %s2154
        %v2156 = vmul.f32 %v1827, %v2155
        %v2157 = vmul.f32 %v1828, %v2155
        %2160 = vrot.lane.b32.xlu0 %v2156, 126
        %v2161 = vpop.permute.xlu0 %2160
        %2162 = vrot.lane.b32.xlu0 %v2157, 126
        %v2163 = vpop.permute.xlu0 %2162
        %v2166 = vadd.f32 %v2152, %v2161
        %v2167 = vadd.f32 %v2153, %v2163
        %s2168 = sld [smem:[#allocation10 + $0x4b]]
        %v2169 = vstv %s2168
        %v2170 = vmul.f32 %v1827, %v2169
        %v2171 = vmul.f32 %v1828, %v2169
        %v2172 = vmul.f32 %v1829, %v2169
        %v2176 = vrot.slane %v2170, 1
        %v2177 = vrot.slane %v2171, 1
        %v2178 = vsel %vm449, %v2176, %v2177
        %v2179 = vrot.slane %v2172, 1
        %v2180 = vsel %vm449, %v2177, %v2179
        %v2183 = vadd.f32 %v2166, %v2178
        %v2184 = vadd.f32 %v2167, %v2180
        %s2185 = sld [smem:[#allocation10 + $0x4c]]
        %v2186 = vstv %s2185
        %v2187 = vmul.f32 %v1827, %v2186
        %v2188 = vmul.f32 %v1828, %v2186
        %v2189 = vmul.f32 %v1829, %v2186
        %v2193 = vrot.slane %v2187, 1
        %v2194 = vrot.slane %v2188, 1
        %v2195 = vsel %vm449, %v2193, %v2194
        %v2196 = vrot.slane %v2189, 1
        %v2197 = vsel %vm449, %v2194, %v2196
        %2198 = vrot.lane.b32.xlu0 %v2195, 127
        %v2199 = vpop.permute.xlu0 %2198
        %2200 = vrot.lane.b32.xlu0 %v2197, 127
        %v2201 = vpop.permute.xlu0 %2200
        %v2204 = vadd.f32 %v2183, %v2199
        %v2205 = vadd.f32 %v2184, %v2201
        %s2206 = sld [smem:[#allocation10 + $0x4d]]
        %v2207 = vstv %s2206
        %v2208 = vmul.f32 %v1827, %v2207
        %v2209 = vmul.f32 %v1828, %v2207
        %v2210 = vmul.f32 %v1829, %v2207
        %v2214 = vrot.slane %v2208, 1
        %v2215 = vrot.slane %v2209, 1
        %v2216 = vsel %vm449, %v2214, %v2215
        %v2217 = vrot.slane %v2210, 1
        %v2218 = vsel %vm449, %v2215, %v2217
        %2219 = vrot.lane.b32.xlu0 %v2216, 126
        %v2220 = vpop.permute.xlu0 %2219
        %2221 = vrot.lane.b32.xlu0 %v2218, 126
        %v2222 = vpop.permute.xlu0 %2221
        %v2225 = vadd.f32 %v2204, %v2220
        %v2226 = vadd.f32 %v2205, %v2222
        %s2227 = sld [smem:[#allocation10 + $0x4e]]
        %v2228 = vstv %s2227
        %v2229 = vmul.f32 %v1827, %v2228
        %v2230 = vmul.f32 %v1828, %v2228
        %v2231 = vmul.f32 %v1829, %v2228
        %v2235 = vrot.slane %v2229, 2
        %v2236 = vrot.slane %v2230, 2
        %v2237 = vsel %vm509, %v2235, %v2236
        %v2238 = vrot.slane %v2231, 2
        %v2239 = vsel %vm509, %v2236, %v2238
        %v2242 = vadd.f32 %v2225, %v2237
        %v2243 = vadd.f32 %v2226, %v2239
        %s2244 = sld [smem:[#allocation10 + $0x4f]]
        %v2245 = vstv %s2244
        %v2246 = vmul.f32 %v1827, %v2245
        %v2247 = vmul.f32 %v1828, %v2245
        %v2248 = vmul.f32 %v1829, %v2245
        %v2252 = vrot.slane %v2246, 2
        %v2253 = vrot.slane %v2247, 2
        %v2254 = vsel %vm509, %v2252, %v2253
        %v2255 = vrot.slane %v2248, 2
        %v2256 = vsel %vm509, %v2253, %v2255
        %2257 = vrot.lane.b32.xlu0 %v2254, 127
        %v2258 = vpop.permute.xlu0 %2257
        %2259 = vrot.lane.b32.xlu0 %v2256, 127
        %v2260 = vpop.permute.xlu0 %2259
        %v2263 = vadd.f32 %v2242, %v2258
        %v2264 = vadd.f32 %v2243, %v2260
        %s2265 = sld [smem:[#allocation10 + $0x50]]
        %v2266 = vstv %s2265
        %v2267 = vmul.f32 %v1827, %v2266
        %v2268 = vmul.f32 %v1828, %v2266
        %v2269 = vmul.f32 %v1829, %v2266
        %v2273 = vrot.slane %v2267, 2
        %v2274 = vrot.slane %v2268, 2
        %v2275 = vsel %vm509, %v2273, %v2274
        %v2276 = vrot.slane %v2269, 2
        %v2277 = vsel %vm509, %v2274, %v2276
        %2278 = vrot.lane.b32.xlu0 %v2275, 126
        %v2279 = vpop.permute.xlu0 %2278
        %2280 = vrot.lane.b32.xlu0 %v2277, 126
        %v2281 = vpop.permute.xlu0 %2280
        %v2284 = vadd.f32 %v2263, %v2279
        %v2285 = vadd.f32 %v2264, %v2281
        %v2286 = vmax.f32 %v1980, 0.0
        %v2287 = vmax.f32 %v1981, 0.0
        %v2288 = vmax.f32 %v2132, 0.0
        %v2289 = vmax.f32 %v2133, 0.0
        %v2290 = vmax.f32 %v2284, 0.0
        %v2291 = vmax.f32 %v2285, 0.0
        %2294 = vrot.lane.b32.xlu0 %v2286, 1
        %v2295 = vpop.permute.xlu0 %2294
        %2296 = vrot.lane.b32.xlu0 %v2287, 1
        %v2297 = vpop.permute.xlu0 %2296
        %2300 = vst.msk [vmem:[#allocation2 + $0x1] sm:$0xff] %vm395, %v2295
        %2301 = vst.msk [vmem:[#allocation2 + $0x9] sm:$0xff] %vm395, %v2297
        %2304 = vrot.lane.b32.xlu0 %v2288, 1
        %v2305 = vpop.permute.xlu0 %2304
        %2306 = vrot.lane.b32.xlu0 %v2289, 1
        %v2307 = vpop.permute.xlu0 %2306
        %2310 = vst.msk [vmem:[%s889 + $0x1] sm:$0xff] %vm395, %v2305
        %2311 = vst.msk [vmem:[%s889 + $0x9] sm:$0xff] %vm395, %v2307
        %2314 = vrot.lane.b32.xlu0 %v2290, 1
        %v2315 = vpop.permute.xlu0 %2314
        %2316 = vrot.lane.b32.xlu0 %v2291, 1
        %v2317 = vpop.permute.xlu0 %2316
        %2320 = vst.msk [vmem:[%s900 + $0x1] sm:$0xff] %vm395, %v2315
        %2321 = vst.msk [vmem:[%s900 + $0x9] sm:$0xff] %vm395, %v2317
        %s2322 = sld [smem:[#allocation14]]
        %v2323 = vstv %s2322
        %s2324 = sld [smem:[#allocation14 + $0x1]]
        %v2325 = vstv %s2324
        %s2326 = sld [smem:[#allocation14 + $0x2]]
        %v2327 = vstv %s2326
        %v2328 = vld [vmem:[#allocation2] sm:$0xff]
        %v2329 = vld [vmem:[#allocation2 + $0x8] sm:$0xff]
        %v2330 = vld [vmem:[#allocation2 + $0x10] sm:$0x3]
        %s2331 = sld [smem:[#allocation13]]
        %v2332 = vstv %s2331
        %v2333 = vmul.f32 %v2328, %v2332
        %v2334 = vmul.f32 %v2329, %v2332
        %v2335 = vadd.f32 %v2323, %v2333
        %v2336 = vadd.f32 %v2323, %v2334
        %s2337 = sld [smem:[#allocation13 + $0x1]]
        %v2338 = vstv %s2337
        %v2339 = vmul.f32 %v2328, %v2338
        %v2340 = vmul.f32 %v2329, %v2338
        %2343 = vrot.lane.b32.xlu0 %v2339, 127
        %v2344 = vpop.permute.xlu0 %2343
        %2345 = vrot.lane.b32.xlu0 %v2340, 127
        %v2346 = vpop.permute.xlu0 %2345
        %v2349 = vadd.f32 %v2335, %v2344
        %v2350 = vadd.f32 %v2336, %v2346
        %s2351 = sld [smem:[#allocation13 + $0x2]]
        %v2352 = vstv %s2351
        %v2353 = vmul.f32 %v2328, %v2352
        %v2354 = vmul.f32 %v2329, %v2352
        %2357 = vrot.lane.b32.xlu0 %v2353, 126
        %v2358 = vpop.permute.xlu0 %2357
        %2359 = vrot.lane.b32.xlu0 %v2354, 126
        %v2360 = vpop.permute.xlu0 %2359
        %v2363 = vadd.f32 %v2349, %v2358
        %v2364 = vadd.f32 %v2350, %v2360
        %s2365 = sld [smem:[#allocation13 + $0x3]]
        %v2366 = vstv %s2365
        %v2367 = vmul.f32 %v2328, %v2366
        %v2368 = vmul.f32 %v2329, %v2366
        %v2369 = vmul.f32 %v2330, %v2366
        %v2373 = vrot.slane %v2367, 1
        %v2374 = vrot.slane %v2368, 1
        %v2375 = vsel %vm449, %v2373, %v2374
        %v2376 = vrot.slane %v2369, 1
        %v2377 = vsel %vm449, %v2374, %v2376
        %v2380 = vadd.f32 %v2363, %v2375
        %v2381 = vadd.f32 %v2364, %v2377
        %s2382 = sld [smem:[#allocation13 + $0x4]]
        %v2383 = vstv %s2382
        %v2384 = vmul.f32 %v2328, %v2383
        %v2385 = vmul.f32 %v2329, %v2383
        %v2386 = vmul.f32 %v2330, %v2383
        %v2390 = vrot.slane %v2384, 1
        %v2391 = vrot.slane %v2385, 1
        %v2392 = vsel %vm449, %v2390, %v2391
        %v2393 = vrot.slane %v2386, 1
        %v2394 = vsel %vm449, %v2391, %v2393
        %2395 = vrot.lane.b32.xlu0 %v2392, 127
        %v2396 = vpop.permute.xlu0 %2395
        %2397 = vrot.lane.b32.xlu0 %v2394, 127
        %v2398 = vpop.permute.xlu0 %2397
        %v2401 = vadd.f32 %v2380, %v2396
        %v2402 = vadd.f32 %v2381, %v2398
        %s2403 = sld [smem:[#allocation13 + $0x5]]
        %v2404 = vstv %s2403
        %v2405 = vmul.f32 %v2328, %v2404
        %v2406 = vmul.f32 %v2329, %v2404
        %v2407 = vmul.f32 %v2330, %v2404
        %v2411 = vrot.slane %v2405, 1
        %v2412 = vrot.slane %v2406, 1
        %v2413 = vsel %vm449, %v2411, %v2412
        %v2414 = vrot.slane %v2407, 1
        %v2415 = vsel %vm449, %v2412, %v2414
        %2416 = vrot.lane.b32.xlu0 %v2413, 126
        %v2417 = vpop.permute.xlu0 %2416
        %2418 = vrot.lane.b32.xlu0 %v2415, 126
        %v2419 = vpop.permute.xlu0 %2418
        %v2422 = vadd.f32 %v2401, %v2417
        %v2423 = vadd.f32 %v2402, %v2419
        %s2424 = sld [smem:[#allocation13 + $0x6]]
        %v2425 = vstv %s2424
        %v2426 = vmul.f32 %v2328, %v2425
        %v2427 = vmul.f32 %v2329, %v2425
        %v2428 = vmul.f32 %v2330, %v2425
        %v2432 = vrot.slane %v2426, 2
        %v2433 = vrot.slane %v2427, 2
        %v2434 = vsel %vm509, %v2432, %v2433
        %v2435 = vrot.slane %v2428, 2
        %v2436 = vsel %vm509, %v2433, %v2435
        %v2439 = vadd.f32 %v2422, %v2434
        %v2440 = vadd.f32 %v2423, %v2436
        %s2441 = sld [smem:[#allocation13 + $0x7]]
        %v2442 = vstv %s2441
        %v2443 = vmul.f32 %v2328, %v2442
        %v2444 = vmul.f32 %v2329, %v2442
        %v2445 = vmul.f32 %v2330, %v2442
        %v2449 = vrot.slane %v2443, 2
        %v2450 = vrot.slane %v2444, 2
        %v2451 = vsel %vm509, %v2449, %v2450
        %v2452 = vrot.slane %v2445, 2
        %v2453 = vsel %vm509, %v2450, %v2452
        %2454 = vrot.lane.b32.xlu0 %v2451, 127
        %v2455 = vpop.permute.xlu0 %2454
        %2456 = vrot.lane.b32.xlu0 %v2453, 127
        %v2457 = vpop.permute.xlu0 %2456
        %v2460 = vadd.f32 %v2439, %v2455
        %v2461 = vadd.f32 %v2440, %v2457
        %s2462 = sld [smem:[#allocation13 + $0x8]]
        %v2463 = vstv %s2462
        %v2464 = vmul.f32 %v2328, %v2463
        %v2465 = vmul.f32 %v2329, %v2463
        %v2466 = vmul.f32 %v2330, %v2463
        %v2470 = vrot.slane %v2464, 2
        %v2471 = vrot.slane %v2465, 2
        %v2472 = vsel %vm509, %v2470, %v2471
        %v2473 = vrot.slane %v2466, 2
        %v2474 = vsel %vm509, %v2471, %v2473
        %2475 = vrot.lane.b32.xlu0 %v2472, 126
        %v2476 = vpop.permute.xlu0 %2475
        %2477 = vrot.lane.b32.xlu0 %v2474, 126
        %v2478 = vpop.permute.xlu0 %2477
        %v2481 = vadd.f32 %v2460, %v2476
        %v2482 = vadd.f32 %v2461, %v2478
        %s2483 = sld [smem:[#allocation13 + $0x1b]]
        %v2484 = vstv %s2483
        %v2485 = vmul.f32 %v2328, %v2484
        %v2486 = vmul.f32 %v2329, %v2484
        %v2487 = vadd.f32 %v2325, %v2485
        %v2488 = vadd.f32 %v2325, %v2486
        %s2489 = sld [smem:[#allocation13 + $0x1c]]
        %v2490 = vstv %s2489
        %v2491 = vmul.f32 %v2328, %v2490
        %v2492 = vmul.f32 %v2329, %v2490
        %2495 = vrot.lane.b32.xlu0 %v2491, 127
        %v2496 = vpop.permute.xlu0 %2495
        %2497 = vrot.lane.b32.xlu0 %v2492, 127
        %v2498 = vpop.permute.xlu0 %2497
        %v2501 = vadd.f32 %v2487, %v2496
        %v2502 = vadd.f32 %v2488, %v2498
        %s2503 = sld [smem:[#allocation13 + $0x1d]]
        %v2504 = vstv %s2503
        %v2505 = vmul.f32 %v2328, %v2504
        %v2506 = vmul.f32 %v2329, %v2504
        %2509 = vrot.lane.b32.xlu0 %v2505, 126
        %v2510 = vpop.permute.xlu0 %2509
        %2511 = vrot.lane.b32.xlu0 %v2506, 126
        %v2512 = vpop.permute.xlu0 %2511
        %v2515 = vadd.f32 %v2501, %v2510
        %v2516 = vadd.f32 %v2502, %v2512
        %s2517 = sld [smem:[#allocation13 + $0x1e]]
        %v2518 = vstv %s2517
        %v2519 = vmul.f32 %v2328, %v2518
        %v2520 = vmul.f32 %v2329, %v2518
        %v2521 = vmul.f32 %v2330, %v2518
        %v2525 = vrot.slane %v2519, 1
        %v2526 = vrot.slane %v2520, 1
        %v2527 = vsel %vm449, %v2525, %v2526
        %v2528 = vrot.slane %v2521, 1
        %v2529 = vsel %vm449, %v2526, %v2528
        %v2532 = vadd.f32 %v2515, %v2527
        %v2533 = vadd.f32 %v2516, %v2529
        %s2534 = sld [smem:[#allocation13 + $0x1f]]
        %v2535 = vstv %s2534
        %v2536 = vmul.f32 %v2328, %v2535
        %v2537 = vmul.f32 %v2329, %v2535
        %v2538 = vmul.f32 %v2330, %v2535
        %v2542 = vrot.slane %v2536, 1
        %v2543 = vrot.slane %v2537, 1
        %v2544 = vsel %vm449, %v2542, %v2543
        %v2545 = vrot.slane %v2538, 1
        %v2546 = vsel %vm449, %v2543, %v2545
        %2547 = vrot.lane.b32.xlu0 %v2544, 127
        %v2548 = vpop.permute.xlu0 %2547
        %2549 = vrot.lane.b32.xlu0 %v2546, 127
        %v2550 = vpop.permute.xlu0 %2549
        %v2553 = vadd.f32 %v2532, %v2548
        %v2554 = vadd.f32 %v2533, %v2550
        %s2555 = sld [smem:[#allocation13 + $0x20]]
        %v2556 = vstv %s2555
        %v2557 = vmul.f32 %v2328, %v2556
        %v2558 = vmul.f32 %v2329, %v2556
        %v2559 = vmul.f32 %v2330, %v2556
        %v2563 = vrot.slane %v2557, 1
        %v2564 = vrot.slane %v2558, 1
        %v2565 = vsel %vm449, %v2563, %v2564
        %v2566 = vrot.slane %v2559, 1
        %v2567 = vsel %vm449, %v2564, %v2566
        %2568 = vrot.lane.b32.xlu0 %v2565, 126
        %v2569 = vpop.permute.xlu0 %2568
        %2570 = vrot.lane.b32.xlu0 %v2567, 126
        %v2571 = vpop.permute.xlu0 %2570
        %v2574 = vadd.f32 %v2553, %v2569
        %v2575 = vadd.f32 %v2554, %v2571
        %s2576 = sld [smem:[#allocation13 + $0x21]]
        %v2577 = vstv %s2576
        %v2578 = vmul.f32 %v2328, %v2577
        %v2579 = vmul.f32 %v2329, %v2577
        %v2580 = vmul.f32 %v2330, %v2577
        %v2584 = vrot.slane %v2578, 2
        %v2585 = vrot.slane %v2579, 2
        %v2586 = vsel %vm509, %v2584, %v2585
        %v2587 = vrot.slane %v2580, 2
        %v2588 = vsel %vm509, %v2585, %v2587
        %v2591 = vadd.f32 %v2574, %v2586
        %v2592 = vadd.f32 %v2575, %v2588
        %s2593 = sld [smem:[#allocation13 + $0x22]]
        %v2594 = vstv %s2593
        %v2595 = vmul.f32 %v2328, %v2594
        %v2596 = vmul.f32 %v2329, %v2594
        %v2597 = vmul.f32 %v2330, %v2594
        %v2601 = vrot.slane %v2595, 2
        %v2602 = vrot.slane %v2596, 2
        %v2603 = vsel %vm509, %v2601, %v2602
        %v2604 = vrot.slane %v2597, 2
        %v2605 = vsel %vm509, %v2602, %v2604
        %2606 = vrot.lane.b32.xlu0 %v2603, 127
        %v2607 = vpop.permute.xlu0 %2606
        %2608 = vrot.lane.b32.xlu0 %v2605, 127
        %v2609 = vpop.permute.xlu0 %2608
        %v2612 = vadd.f32 %v2591, %v2607
        %v2613 = vadd.f32 %v2592, %v2609
        %s2614 = sld [smem:[#allocation13 + $0x23]]
        %v2615 = vstv %s2614
        %v2616 = vmul.f32 %v2328, %v2615
        %v2617 = vmul.f32 %v2329, %v2615
        %v2618 = vmul.f32 %v2330, %v2615
        %v2622 = vrot.slane %v2616, 2
        %v2623 = vrot.slane %v2617, 2
        %v2624 = vsel %vm509, %v2622, %v2623
        %v2625 = vrot.slane %v2618, 2
        %v2626 = vsel %vm509, %v2623, %v2625
        %2627 = vrot.lane.b32.xlu0 %v2624, 126
        %v2628 = vpop.permute.xlu0 %2627
        %2629 = vrot.lane.b32.xlu0 %v2626, 126
        %v2630 = vpop.permute.xlu0 %2629
        %v2633 = vadd.f32 %v2612, %v2628
        %v2634 = vadd.f32 %v2613, %v2630
        %s2635 = sld [smem:[#allocation13 + $0x36]]
        %v2636 = vstv %s2635
        %v2637 = vmul.f32 %v2328, %v2636
        %v2638 = vmul.f32 %v2329, %v2636
        %v2639 = vadd.f32 %v2327, %v2637
        %v2640 = vadd.f32 %v2327, %v2638
        %s2641 = sld [smem:[#allocation13 + $0x37]]
        %v2642 = vstv %s2641
        %v2643 = vmul.f32 %v2328, %v2642
        %v2644 = vmul.f32 %v2329, %v2642
        %2647 = vrot.lane.b32.xlu0 %v2643, 127
        %v2648 = vpop.permute.xlu0 %2647
        %2649 = vrot.lane.b32.xlu0 %v2644, 127
        %v2650 = vpop.permute.xlu0 %2649
        %v2653 = vadd.f32 %v2639, %v2648
        %v2654 = vadd.f32 %v2640, %v2650
        %s2655 = sld [smem:[#allocation13 + $0x38]]
        %v2656 = vstv %s2655
        %v2657 = vmul.f32 %v2328, %v2656
        %v2658 = vmul.f32 %v2329, %v2656
        %2661 = vrot.lane.b32.xlu0 %v2657, 126
        %v2662 = vpop.permute.xlu0 %2661
        %2663 = vrot.lane.b32.xlu0 %v2658, 126
        %v2664 = vpop.permute.xlu0 %2663
        %v2667 = vadd.f32 %v2653, %v2662
        %v2668 = vadd.f32 %v2654, %v2664
        %s2669 = sld [smem:[#allocation13 + $0x39]]
        %v2670 = vstv %s2669
        %v2671 = vmul.f32 %v2328, %v2670
        %v2672 = vmul.f32 %v2329, %v2670
        %v2673 = vmul.f32 %v2330, %v2670
        %v2677 = vrot.slane %v2671, 1
        %v2678 = vrot.slane %v2672, 1
        %v2679 = vsel %vm449, %v2677, %v2678
        %v2680 = vrot.slane %v2673, 1
        %v2681 = vsel %vm449, %v2678, %v2680
        %v2684 = vadd.f32 %v2667, %v2679
        %v2685 = vadd.f32 %v2668, %v2681
        %s2686 = sld [smem:[#allocation13 + $0x3a]]
        %v2687 = vstv %s2686
        %v2688 = vmul.f32 %v2328, %v2687
        %v2689 = vmul.f32 %v2329, %v2687
        %v2690 = vmul.f32 %v2330, %v2687
        %v2694 = vrot.slane %v2688, 1
        %v2695 = vrot.slane %v2689, 1
        %v2696 = vsel %vm449, %v2694, %v2695
        %v2697 = vrot.slane %v2690, 1
        %v2698 = vsel %vm449, %v2695, %v2697
        %2699 = vrot.lane.b32.xlu0 %v2696, 127
        %v2700 = vpop.permute.xlu0 %2699
        %2701 = vrot.lane.b32.xlu0 %v2698, 127
        %v2702 = vpop.permute.xlu0 %2701
        %v2705 = vadd.f32 %v2684, %v2700
        %v2706 = vadd.f32 %v2685, %v2702
        %s2707 = sld [smem:[#allocation13 + $0x3b]]
        %v2708 = vstv %s2707
        %v2709 = vmul.f32 %v2328, %v2708
        %v2710 = vmul.f32 %v2329, %v2708
        %v2711 = vmul.f32 %v2330, %v2708
        %v2715 = vrot.slane %v2709, 1
        %v2716 = vrot.slane %v2710, 1
        %v2717 = vsel %vm449, %v2715, %v2716
        %v2718 = vrot.slane %v2711, 1
        %v2719 = vsel %vm449, %v2716, %v2718
        %2720 = vrot.lane.b32.xlu0 %v2717, 126
        %v2721 = vpop.permute.xlu0 %2720
        %2722 = vrot.lane.b32.xlu0 %v2719, 126
        %v2723 = vpop.permute.xlu0 %2722
        %v2726 = vadd.f32 %v2705, %v2721
        %v2727 = vadd.f32 %v2706, %v2723
        %s2728 = sld [smem:[#allocation13 + $0x3c]]
        %v2729 = vstv %s2728
        %v2730 = vmul.f32 %v2328, %v2729
        %v2731 = vmul.f32 %v2329, %v2729
        %v2732 = vmul.f32 %v2330, %v2729
        %v2736 = vrot.slane %v2730, 2
        %v2737 = vrot.slane %v2731, 2
        %v2738 = vsel %vm509, %v2736, %v2737
        %v2739 = vrot.slane %v2732, 2
        %v2740 = vsel %vm509, %v2737, %v2739
        %v2743 = vadd.f32 %v2726, %v2738
        %v2744 = vadd.f32 %v2727, %v2740
        %s2745 = sld [smem:[#allocation13 + $0x3d]]
        %v2746 = vstv %s2745
        %v2747 = vmul.f32 %v2328, %v2746
        %v2748 = vmul.f32 %v2329, %v2746
        %v2749 = vmul.f32 %v2330, %v2746
        %v2753 = vrot.slane %v2747, 2
        %v2754 = vrot.slane %v2748, 2
        %v2755 = vsel %vm509, %v2753, %v2754
        %v2756 = vrot.slane %v2749, 2
        %v2757 = vsel %vm509, %v2754, %v2756
        %2758 = vrot.lane.b32.xlu0 %v2755, 127
        %v2759 = vpop.permute.xlu0 %2758
        %2760 = vrot.lane.b32.xlu0 %v2757, 127
        %v2761 = vpop.permute.xlu0 %2760
        %v2764 = vadd.f32 %v2743, %v2759
        %v2765 = vadd.f32 %v2744, %v2761
        %s2766 = sld [smem:[#allocation13 + $0x3e]]
        %v2767 = vstv %s2766
        %v2768 = vmul.f32 %v2328, %v2767
        %v2769 = vmul.f32 %v2329, %v2767
        %v2770 = vmul.f32 %v2330, %v2767
        %v2774 = vrot.slane %v2768, 2
        %v2775 = vrot.slane %v2769, 2
        %v2776 = vsel %vm509, %v2774, %v2775
        %v2777 = vrot.slane %v2770, 2
        %v2778 = vsel %vm509, %v2775, %v2777
        %2779 = vrot.lane.b32.xlu0 %v2776, 126
        %v2780 = vpop.permute.xlu0 %2779
        %2781 = vrot.lane.b32.xlu0 %v2778, 126
        %v2782 = vpop.permute.xlu0 %2781
        %v2785 = vadd.f32 %v2764, %v2780
        %v2786 = vadd.f32 %v2765, %v2782
        %v2787 = vld [vmem:[%s889] sm:$0xff]
        %v2788 = vld [vmem:[%s889 + $0x8] sm:$0xff]
        %v2789 = vld [vmem:[%s889 + $0x10] sm:$0x3]
        %s2790 = sld [smem:[#allocation13 + $0x9]]
        %v2791 = vstv %s2790
        %v2792 = vmul.f32 %v2787, %v2791
        %v2793 = vmul.f32 %v2788, %v2791
        %v2794 = vadd.f32 %v2481, %v2792
        %v2795 = vadd.f32 %v2482, %v2793
        %s2796 = sld [smem:[#allocation13 + $0xa]]
        %v2797 = vstv %s2796
        %v2798 = vmul.f32 %v2787, %v2797
        %v2799 = vmul.f32 %v2788, %v2797
        %2802 = vrot.lane.b32.xlu0 %v2798, 127
        %v2803 = vpop.permute.xlu0 %2802
        %2804 = vrot.lane.b32.xlu0 %v2799, 127
        %v2805 = vpop.permute.xlu0 %2804
        %v2808 = vadd.f32 %v2794, %v2803
        %v2809 = vadd.f32 %v2795, %v2805
        %s2810 = sld [smem:[#allocation13 + $0xb]]
        %v2811 = vstv %s2810
        %v2812 = vmul.f32 %v2787, %v2811
        %v2813 = vmul.f32 %v2788, %v2811
        %2816 = vrot.lane.b32.xlu0 %v2812, 126
        %v2817 = vpop.permute.xlu0 %2816
        %2818 = vrot.lane.b32.xlu0 %v2813, 126
        %v2819 = vpop.permute.xlu0 %2818
        %v2822 = vadd.f32 %v2808, %v2817
        %v2823 = vadd.f32 %v2809, %v2819
        %s2824 = sld [smem:[#allocation13 + $0xc]]
        %v2825 = vstv %s2824
        %v2826 = vmul.f32 %v2787, %v2825
        %v2827 = vmul.f32 %v2788, %v2825
        %v2828 = vmul.f32 %v2789, %v2825
        %v2832 = vrot.slane %v2826, 1
        %v2833 = vrot.slane %v2827, 1
        %v2834 = vsel %vm449, %v2832, %v2833
        %v2835 = vrot.slane %v2828, 1
        %v2836 = vsel %vm449, %v2833, %v2835
        %v2839 = vadd.f32 %v2822, %v2834
        %v2840 = vadd.f32 %v2823, %v2836
        %s2841 = sld [smem:[#allocation13 + $0xd]]
        %v2842 = vstv %s2841
        %v2843 = vmul.f32 %v2787, %v2842
        %v2844 = vmul.f32 %v2788, %v2842
        %v2845 = vmul.f32 %v2789, %v2842
        %v2849 = vrot.slane %v2843, 1
        %v2850 = vrot.slane %v2844, 1
        %v2851 = vsel %vm449, %v2849, %v2850
        %v2852 = vrot.slane %v2845, 1
        %v2853 = vsel %vm449, %v2850, %v2852
        %2854 = vrot.lane.b32.xlu0 %v2851, 127
        %v2855 = vpop.permute.xlu0 %2854
        %2856 = vrot.lane.b32.xlu0 %v2853, 127
        %v2857 = vpop.permute.xlu0 %2856
        %v2860 = vadd.f32 %v2839, %v2855
        %v2861 = vadd.f32 %v2840, %v2857
        %s2862 = sld [smem:[#allocation13 + $0xe]]
        %v2863 = vstv %s2862
        %v2864 = vmul.f32 %v2787, %v2863
        %v2865 = vmul.f32 %v2788, %v2863
        %v2866 = vmul.f32 %v2789, %v2863
        %v2870 = vrot.slane %v2864, 1
        %v2871 = vrot.slane %v2865, 1
        %v2872 = vsel %vm449, %v2870, %v2871
        %v2873 = vrot.slane %v2866, 1
        %v2874 = vsel %vm449, %v2871, %v2873
        %2875 = vrot.lane.b32.xlu0 %v2872, 126
        %v2876 = vpop.permute.xlu0 %2875
        %2877 = vrot.lane.b32.xlu0 %v2874, 126
        %v2878 = vpop.permute.xlu0 %2877
        %v2881 = vadd.f32 %v2860, %v2876
        %v2882 = vadd.f32 %v2861, %v2878
        %s2883 = sld [smem:[#allocation13 + $0xf]]
        %v2884 = vstv %s2883
        %v2885 = vmul.f32 %v2787, %v2884
        %v2886 = vmul.f32 %v2788, %v2884
        %v2887 = vmul.f32 %v2789, %v2884
        %v2891 = vrot.slane %v2885, 2
        %v2892 = vrot.slane %v2886, 2
        %v2893 = vsel %vm509, %v2891, %v2892
        %v2894 = vrot.slane %v2887, 2
        %v2895 = vsel %vm509, %v2892, %v2894
        %v2898 = vadd.f32 %v2881, %v2893
        %v2899 = vadd.f32 %v2882, %v2895
        %s2900 = sld [smem:[#allocation13 + $0x10]]
        %v2901 = vstv %s2900
        %v2902 = vmul.f32 %v2787, %v2901
        %v2903 = vmul.f32 %v2788, %v2901
        %v2904 = vmul.f32 %v2789, %v2901
        %v2908 = vrot.slane %v2902, 2
        %v2909 = vrot.slane %v2903, 2
        %v2910 = vsel %vm509, %v2908, %v2909
        %v2911 = vrot.slane %v2904, 2
        %v2912 = vsel %vm509, %v2909, %v2911
        %2913 = vrot.lane.b32.xlu0 %v2910, 127
        %v2914 = vpop.permute.xlu0 %2913
        %2915 = vrot.lane.b32.xlu0 %v2912, 127
        %v2916 = vpop.permute.xlu0 %2915
        %v2919 = vadd.f32 %v2898, %v2914
        %v2920 = vadd.f32 %v2899, %v2916
        %s2921 = sld [smem:[#allocation13 + $0x11]]
        %v2922 = vstv %s2921
        %v2923 = vmul.f32 %v2787, %v2922
        %v2924 = vmul.f32 %v2788, %v2922
        %v2925 = vmul.f32 %v2789, %v2922
        %v2929 = vrot.slane %v2923, 2
        %v2930 = vrot.slane %v2924, 2
        %v2931 = vsel %vm509, %v2929, %v2930
        %v2932 = vrot.slane %v2925, 2
        %v2933 = vsel %vm509, %v2930, %v2932
        %2934 = vrot.lane.b32.xlu0 %v2931, 126
        %v2935 = vpop.permute.xlu0 %2934
        %2936 = vrot.lane.b32.xlu0 %v2933, 126
        %v2937 = vpop.permute.xlu0 %2936
        %v2940 = vadd.f32 %v2919, %v2935
        %v2941 = vadd.f32 %v2920, %v2937
        %s2942 = sld [smem:[#allocation13 + $0x24]]
        %v2943 = vstv %s2942
        %v2944 = vmul.f32 %v2787, %v2943
        %v2945 = vmul.f32 %v2788, %v2943
        %v2946 = vadd.f32 %v2633, %v2944
        %v2947 = vadd.f32 %v2634, %v2945
        %s2948 = sld [smem:[#allocation13 + $0x25]]
        %v2949 = vstv %s2948
        %v2950 = vmul.f32 %v2787, %v2949
        %v2951 = vmul.f32 %v2788, %v2949
        %2954 = vrot.lane.b32.xlu0 %v2950, 127
        %v2955 = vpop.permute.xlu0 %2954
        %2956 = vrot.lane.b32.xlu0 %v2951, 127
        %v2957 = vpop.permute.xlu0 %2956
        %v2960 = vadd.f32 %v2946, %v2955
        %v2961 = vadd.f32 %v2947, %v2957
        %s2962 = sld [smem:[#allocation13 + $0x26]]
        %v2963 = vstv %s2962
        %v2964 = vmul.f32 %v2787, %v2963
        %v2965 = vmul.f32 %v2788, %v2963
        %2968 = vrot.lane.b32.xlu0 %v2964, 126
        %v2969 = vpop.permute.xlu0 %2968
        %2970 = vrot.lane.b32.xlu0 %v2965, 126
        %v2971 = vpop.permute.xlu0 %2970
        %v2974 = vadd.f32 %v2960, %v2969
        %v2975 = vadd.f32 %v2961, %v2971
        %s2976 = sld [smem:[#allocation13 + $0x27]]
        %v2977 = vstv %s2976
        %v2978 = vmul.f32 %v2787, %v2977
        %v2979 = vmul.f32 %v2788, %v2977
        %v2980 = vmul.f32 %v2789, %v2977
        %v2984 = vrot.slane %v2978, 1
        %v2985 = vrot.slane %v2979, 1
        %v2986 = vsel %vm449, %v2984, %v2985
        %v2987 = vrot.slane %v2980, 1
        %v2988 = vsel %vm449, %v2985, %v2987
        %v2991 = vadd.f32 %v2974, %v2986
        %v2992 = vadd.f32 %v2975, %v2988
        %s2993 = sld [smem:[#allocation13 + $0x28]]
        %v2994 = vstv %s2993
        %v2995 = vmul.f32 %v2787, %v2994
        %v2996 = vmul.f32 %v2788, %v2994
        %v2997 = vmul.f32 %v2789, %v2994
        %v3001 = vrot.slane %v2995, 1
        %v3002 = vrot.slane %v2996, 1
        %v3003 = vsel %vm449, %v3001, %v3002
        %v3004 = vrot.slane %v2997, 1
        %v3005 = vsel %vm449, %v3002, %v3004
        %3006 = vrot.lane.b32.xlu0 %v3003, 127
        %v3007 = vpop.permute.xlu0 %3006
        %3008 = vrot.lane.b32.xlu0 %v3005, 127
        %v3009 = vpop.permute.xlu0 %3008
        %v3012 = vadd.f32 %v2991, %v3007
        %v3013 = vadd.f32 %v2992, %v3009
        %s3014 = sld [smem:[#allocation13 + $0x29]]
        %v3015 = vstv %s3014
        %v3016 = vmul.f32 %v2787, %v3015
        %v3017 = vmul.f32 %v2788, %v3015
        %v3018 = vmul.f32 %v2789, %v3015
        %v3022 = vrot.slane %v3016, 1
        %v3023 = vrot.slane %v3017, 1
        %v3024 = vsel %vm449, %v3022, %v3023
        %v3025 = vrot.slane %v3018, 1
        %v3026 = vsel %vm449, %v3023, %v3025
        %3027 = vrot.lane.b32.xlu0 %v3024, 126
        %v3028 = vpop.permute.xlu0 %3027
        %3029 = vrot.lane.b32.xlu0 %v3026, 126
        %v3030 = vpop.permute.xlu0 %3029
        %v3033 = vadd.f32 %v3012, %v3028
        %v3034 = vadd.f32 %v3013, %v3030
        %s3035 = sld [smem:[#allocation13 + $0x2a]]
        %v3036 = vstv %s3035
        %v3037 = vmul.f32 %v2787, %v3036
        %v3038 = vmul.f32 %v2788, %v3036
        %v3039 = vmul.f32 %v2789, %v3036
        %v3043 = vrot.slane %v3037, 2
        %v3044 = vrot.slane %v3038, 2
        %v3045 = vsel %vm509, %v3043, %v3044
        %v3046 = vrot.slane %v3039, 2
        %v3047 = vsel %vm509, %v3044, %v3046
        %v3050 = vadd.f32 %v3033, %v3045
        %v3051 = vadd.f32 %v3034, %v3047
        %s3052 = sld [smem:[#allocation13 + $0x2b]]
        %v3053 = vstv %s3052
        %v3054 = vmul.f32 %v2787, %v3053
        %v3055 = vmul.f32 %v2788, %v3053
        %v3056 = vmul.f32 %v2789, %v3053
        %v3060 = vrot.slane %v3054, 2
        %v3061 = vrot.slane %v3055, 2
        %v3062 = vsel %vm509, %v3060, %v3061
        %v3063 = vrot.slane %v3056, 2
        %v3064 = vsel %vm509, %v3061, %v3063
        %3065 = vrot.lane.b32.xlu0 %v3062, 127
        %v3066 = vpop.permute.xlu0 %3065
        %3067 = vrot.lane.b32.xlu0 %v3064, 127
        %v3068 = vpop.permute.xlu0 %3067
        %v3071 = vadd.f32 %v3050, %v3066
        %v3072 = vadd.f32 %v3051, %v3068
        %s3073 = sld [smem:[#allocation13 + $0x2c]]
        %v3074 = vstv %s3073
        %v3075 = vmul.f32 %v2787, %v3074
        %v3076 = vmul.f32 %v2788, %v3074
        %v3077 = vmul.f32 %v2789, %v3074
        %v3081 = vrot.slane %v3075, 2
        %v3082 = vrot.slane %v3076, 2
        %v3083 = vsel %vm509, %v3081, %v3082
        %v3084 = vrot.slane %v3077, 2
        %v3085 = vsel %vm509, %v3082, %v3084
        %3086 = vrot.lane.b32.xlu0 %v3083, 126
        %v3087 = vpop.permute.xlu0 %3086
        %3088 = vrot.lane.b32.xlu0 %v3085, 126
        %v3089 = vpop.permute.xlu0 %3088
        %v3092 = vadd.f32 %v3071, %v3087
        %v3093 = vadd.f32 %v3072, %v3089
        %s3094 = sld [smem:[#allocation13 + $0x3f]]
        %v3095 = vstv %s3094
        %v3096 = vmul.f32 %v2787, %v3095
        %v3097 = vmul.f32 %v2788, %v3095
        %v3098 = vadd.f32 %v2785, %v3096
        %v3099 = vadd.f32 %v2786, %v3097
        %s3100 = sld [smem:[#allocation13 + $0x40]]
        %v3101 = vstv %s3100
        %v3102 = vmul.f32 %v2787, %v3101
        %v3103 = vmul.f32 %v2788, %v3101
        %3106 = vrot.lane.b32.xlu0 %v3102, 127
        %v3107 = vpop.permute.xlu0 %3106
        %3108 = vrot.lane.b32.xlu0 %v3103, 127
        %v3109 = vpop.permute.xlu0 %3108
        %v3112 = vadd.f32 %v3098, %v3107
        %v3113 = vadd.f32 %v3099, %v3109
        %s3114 = sld [smem:[#allocation13 + $0x41]]
        %v3115 = vstv %s3114
        %v3116 = vmul.f32 %v2787, %v3115
        %v3117 = vmul.f32 %v2788, %v3115
        %3120 = vrot.lane.b32.xlu0 %v3116, 126
        %v3121 = vpop.permute.xlu0 %3120
        %3122 = vrot.lane.b32.xlu0 %v3117, 126
        %v3123 = vpop.permute.xlu0 %3122
        %v3126 = vadd.f32 %v3112, %v3121
        %v3127 = vadd.f32 %v3113, %v3123
        %s3128 = sld [smem:[#allocation13 + $0x42]]
        %v3129 = vstv %s3128
        %v3130 = vmul.f32 %v2787, %v3129
        %v3131 = vmul.f32 %v2788, %v3129
        %v3132 = vmul.f32 %v2789, %v3129
        %v3136 = vrot.slane %v3130, 1
        %v3137 = vrot.slane %v3131, 1
        %v3138 = vsel %vm449, %v3136, %v3137
        %v3139 = vrot.slane %v3132, 1
        %v3140 = vsel %vm449, %v3137, %v3139
        %v3143 = vadd.f32 %v3126, %v3138
        %v3144 = vadd.f32 %v3127, %v3140
        %s3145 = sld [smem:[#allocation13 + $0x43]]
        %v3146 = vstv %s3145
        %v3147 = vmul.f32 %v2787, %v3146
        %v3148 = vmul.f32 %v2788, %v3146
        %v3149 = vmul.f32 %v2789, %v3146
        %v3153 = vrot.slane %v3147, 1
        %v3154 = vrot.slane %v3148, 1
        %v3155 = vsel %vm449, %v3153, %v3154
        %v3156 = vrot.slane %v3149, 1
        %v3157 = vsel %vm449, %v3154, %v3156
        %3158 = vrot.lane.b32.xlu0 %v3155, 127
        %v3159 = vpop.permute.xlu0 %3158
        %3160 = vrot.lane.b32.xlu0 %v3157, 127
        %v3161 = vpop.permute.xlu0 %3160
        %v3164 = vadd.f32 %v3143, %v3159
        %v3165 = vadd.f32 %v3144, %v3161
        %s3166 = sld [smem:[#allocation13 + $0x44]]
        %v3167 = vstv %s3166
        %v3168 = vmul.f32 %v2787, %v3167
        %v3169 = vmul.f32 %v2788, %v3167
        %v3170 = vmul.f32 %v2789, %v3167
        %v3174 = vrot.slane %v3168, 1
        %v3175 = vrot.slane %v3169, 1
        %v3176 = vsel %vm449, %v3174, %v3175
        %v3177 = vrot.slane %v3170, 1
        %v3178 = vsel %vm449, %v3175, %v3177
        %3179 = vrot.lane.b32.xlu0 %v3176, 126
        %v3180 = vpop.permute.xlu0 %3179
        %3181 = vrot.lane.b32.xlu0 %v3178, 126
        %v3182 = vpop.permute.xlu0 %3181
        %v3185 = vadd.f32 %v3164, %v3180
        %v3186 = vadd.f32 %v3165, %v3182
        %s3187 = sld [smem:[#allocation13 + $0x45]]
        %v3188 = vstv %s3187
        %v3189 = vmul.f32 %v2787, %v3188
        %v3190 = vmul.f32 %v2788, %v3188
        %v3191 = vmul.f32 %v2789, %v3188
        %v3195 = vrot.slane %v3189, 2
        %v3196 = vrot.slane %v3190, 2
        %v3197 = vsel %vm509, %v3195, %v3196
        %v3198 = vrot.slane %v3191, 2
        %v3199 = vsel %vm509, %v3196, %v3198
        %v3202 = vadd.f32 %v3185, %v3197
        %v3203 = vadd.f32 %v3186, %v3199
        %s3204 = sld [smem:[#allocation13 + $0x46]]
        %v3205 = vstv %s3204
        %v3206 = vmul.f32 %v2787, %v3205
        %v3207 = vmul.f32 %v2788, %v3205
        %v3208 = vmul.f32 %v2789, %v3205
        %v3212 = vrot.slane %v3206, 2
        %v3213 = vrot.slane %v3207, 2
        %v3214 = vsel %vm509, %v3212, %v3213
        %v3215 = vrot.slane %v3208, 2
        %v3216 = vsel %vm509, %v3213, %v3215
        %3217 = vrot.lane.b32.xlu0 %v3214, 127
        %v3218 = vpop.permute.xlu0 %3217
        %3219 = vrot.lane.b32.xlu0 %v3216, 127
        %v3220 = vpop.permute.xlu0 %3219
        %v3223 = vadd.f32 %v3202, %v3218
        %v3224 = vadd.f32 %v3203, %v3220
        %s3225 = sld [smem:[#allocation13 + $0x47]]
        %v3226 = vstv %s3225
        %v3227 = vmul.f32 %v2787, %v3226
        %v3228 = vmul.f32 %v2788, %v3226
        %v3229 = vmul.f32 %v2789, %v3226
        %v3233 = vrot.slane %v3227, 2
        %v3234 = vrot.slane %v3228, 2
        %v3235 = vsel %vm509, %v3233, %v3234
        %v3236 = vrot.slane %v3229, 2
        %v3237 = vsel %vm509, %v3234, %v3236
        %3238 = vrot.lane.b32.xlu0 %v3235, 126
        %v3239 = vpop.permute.xlu0 %3238
        %3240 = vrot.lane.b32.xlu0 %v3237, 126
        %v3241 = vpop.permute.xlu0 %3240
        %v3244 = vadd.f32 %v3223, %v3239
        %v3245 = vadd.f32 %v3224, %v3241
        %v3246 = vld [vmem:[%s900] sm:$0xff]
        %v3247 = vld [vmem:[%s900 + $0x8] sm:$0xff]
        %v3248 = vld [vmem:[%s900 + $0x10] sm:$0x3]
        %s3249 = sld [smem:[#allocation13 + $0x12]]
        %v3250 = vstv %s3249
        %v3251 = vmul.f32 %v3246, %v3250
        %v3252 = vmul.f32 %v3247, %v3250
        %v3253 = vadd.f32 %v2940, %v3251
        %v3254 = vadd.f32 %v2941, %v3252
        %s3255 = sld [smem:[#allocation13 + $0x13]]
        %v3256 = vstv %s3255
        %v3257 = vmul.f32 %v3246, %v3256
        %v3258 = vmul.f32 %v3247, %v3256
        %3261 = vrot.lane.b32.xlu0 %v3257, 127
        %v3262 = vpop.permute.xlu0 %3261
        %3263 = vrot.lane.b32.xlu0 %v3258, 127
        %v3264 = vpop.permute.xlu0 %3263
        %v3267 = vadd.f32 %v3253, %v3262
        %v3268 = vadd.f32 %v3254, %v3264
        %s3269 = sld [smem:[#allocation13 + $0x14]]
        %v3270 = vstv %s3269
        %v3271 = vmul.f32 %v3246, %v3270
        %v3272 = vmul.f32 %v3247, %v3270
        %3275 = vrot.lane.b32.xlu0 %v3271, 126
        %v3276 = vpop.permute.xlu0 %3275
        %3277 = vrot.lane.b32.xlu0 %v3272, 126
        %v3278 = vpop.permute.xlu0 %3277
        %v3281 = vadd.f32 %v3267, %v3276
        %v3282 = vadd.f32 %v3268, %v3278
        %s3283 = sld [smem:[#allocation13 + $0x15]]
        %v3284 = vstv %s3283
        %v3285 = vmul.f32 %v3246, %v3284
        %v3286 = vmul.f32 %v3247, %v3284
        %v3287 = vmul.f32 %v3248, %v3284
        %v3291 = vrot.slane %v3285, 1
        %v3292 = vrot.slane %v3286, 1
        %v3293 = vsel %vm449, %v3291, %v3292
        %v3294 = vrot.slane %v3287, 1
        %v3295 = vsel %vm449, %v3292, %v3294
        %v3298 = vadd.f32 %v3281, %v3293
        %v3299 = vadd.f32 %v3282, %v3295
        %s3300 = sld [smem:[#allocation13 + $0x16]]
        %v3301 = vstv %s3300
        %v3302 = vmul.f32 %v3246, %v3301
        %v3303 = vmul.f32 %v3247, %v3301
        %v3304 = vmul.f32 %v3248, %v3301
        %v3308 = vrot.slane %v3302, 1
        %v3309 = vrot.slane %v3303, 1
        %v3310 = vsel %vm449, %v3308, %v3309
        %v3311 = vrot.slane %v3304, 1
        %v3312 = vsel %vm449, %v3309, %v3311
        %3313 = vrot.lane.b32.xlu0 %v3310, 127
        %v3314 = vpop.permute.xlu0 %3313
        %3315 = vrot.lane.b32.xlu0 %v3312, 127
        %v3316 = vpop.permute.xlu0 %3315
        %v3319 = vadd.f32 %v3298, %v3314
        %v3320 = vadd.f32 %v3299, %v3316
        %s3321 = sld [smem:[#allocation13 + $0x17]]
        %v3322 = vstv %s3321
        %v3323 = vmul.f32 %v3246, %v3322
        %v3324 = vmul.f32 %v3247, %v3322
        %v3325 = vmul.f32 %v3248, %v3322
        %v3329 = vrot.slane %v3323, 1
        %v3330 = vrot.slane %v3324, 1
        %v3331 = vsel %vm449, %v3329, %v3330
        %v3332 = vrot.slane %v3325, 1
        %v3333 = vsel %vm449, %v3330, %v3332
        %3334 = vrot.lane.b32.xlu0 %v3331, 126
        %v3335 = vpop.permute.xlu0 %3334
        %3336 = vrot.lane.b32.xlu0 %v3333, 126
        %v3337 = vpop.permute.xlu0 %3336
        %v3340 = vadd.f32 %v3319, %v3335
        %v3341 = vadd.f32 %v3320, %v3337
        %s3342 = sld [smem:[#allocation13 + $0x18]]
        %v3343 = vstv %s3342
        %v3344 = vmul.f32 %v3246, %v3343
        %v3345 = vmul.f32 %v3247, %v3343
        %v3346 = vmul.f32 %v3248, %v3343
        %v3350 = vrot.slane %v3344, 2
        %v3351 = vrot.slane %v3345, 2
        %v3352 = vsel %vm509, %v3350, %v3351
        %v3353 = vrot.slane %v3346, 2
        %v3354 = vsel %vm509, %v3351, %v3353
        %v3357 = vadd.f32 %v3340, %v3352
        %v3358 = vadd.f32 %v3341, %v3354
        %s3359 = sld [smem:[#allocation13 + $0x19]]
        %v3360 = vstv %s3359
        %v3361 = vmul.f32 %v3246, %v3360
        %v3362 = vmul.f32 %v3247, %v3360
        %v3363 = vmul.f32 %v3248, %v3360
        %v3367 = vrot.slane %v3361, 2
        %v3368 = vrot.slane %v3362, 2
        %v3369 = vsel %vm509, %v3367, %v3368
        %v3370 = vrot.slane %v3363, 2
        %v3371 = vsel %vm509, %v3368, %v3370
        %3372 = vrot.lane.b32.xlu0 %v3369, 127
        %v3373 = vpop.permute.xlu0 %3372
        %3374 = vrot.lane.b32.xlu0 %v3371, 127
        %v3375 = vpop.permute.xlu0 %3374
        %v3378 = vadd.f32 %v3357, %v3373
        %v3379 = vadd.f32 %v3358, %v3375
        %s3380 = sld [smem:[#allocation13 + $0x1a]]
        %v3381 = vstv %s3380
        %v3382 = vmul.f32 %v3246, %v3381
        %v3383 = vmul.f32 %v3247, %v3381
        %v3384 = vmul.f32 %v3248, %v3381
        %v3388 = vrot.slane %v3382, 2
        %v3389 = vrot.slane %v3383, 2
        %v3390 = vsel %vm509, %v3388, %v3389
        %v3391 = vrot.slane %v3384, 2
        %v3392 = vsel %vm509, %v3389, %v3391
        %3393 = vrot.lane.b32.xlu0 %v3390, 126
        %v3394 = vpop.permute.xlu0 %3393
        %3395 = vrot.lane.b32.xlu0 %v3392, 126
        %v3396 = vpop.permute.xlu0 %3395
        %v3399 = vadd.f32 %v3378, %v3394
        %v3400 = vadd.f32 %v3379, %v3396
        %s3401 = sld [smem:[#allocation13 + $0x2d]]
        %v3402 = vstv %s3401
        %v3403 = vmul.f32 %v3246, %v3402
        %v3404 = vmul.f32 %v3247, %v3402
        %v3405 = vadd.f32 %v3092, %v3403
        %v3406 = vadd.f32 %v3093, %v3404
        %s3407 = sld [smem:[#allocation13 + $0x2e]]
        %v3408 = vstv %s3407
        %v3409 = vmul.f32 %v3246, %v3408
        %v3410 = vmul.f32 %v3247, %v3408
        %3413 = vrot.lane.b32.xlu0 %v3409, 127
        %v3414 = vpop.permute.xlu0 %3413
        %3415 = vrot.lane.b32.xlu0 %v3410, 127
        %v3416 = vpop.permute.xlu0 %3415
        %v3419 = vadd.f32 %v3405, %v3414
        %v3420 = vadd.f32 %v3406, %v3416
        %s3421 = sld [smem:[#allocation13 + $0x2f]]
        %v3422 = vstv %s3421
        %v3423 = vmul.f32 %v3246, %v3422
        %v3424 = vmul.f32 %v3247, %v3422
        %3427 = vrot.lane.b32.xlu0 %v3423, 126
        %v3428 = vpop.permute.xlu0 %3427
        %3429 = vrot.lane.b32.xlu0 %v3424, 126
        %v3430 = vpop.permute.xlu0 %3429
        %v3433 = vadd.f32 %v3419, %v3428
        %v3434 = vadd.f32 %v3420, %v3430
        %s3435 = sld [smem:[#allocation13 + $0x30]]
        %v3436 = vstv %s3435
        %v3437 = vmul.f32 %v3246, %v3436
        %v3438 = vmul.f32 %v3247, %v3436
        %v3439 = vmul.f32 %v3248, %v3436
        %v3443 = vrot.slane %v3437, 1
        %v3444 = vrot.slane %v3438, 1
        %v3445 = vsel %vm449, %v3443, %v3444
        %v3446 = vrot.slane %v3439, 1
        %v3447 = vsel %vm449, %v3444, %v3446
        %v3450 = vadd.f32 %v3433, %v3445
        %v3451 = vadd.f32 %v3434, %v3447
        %s3452 = sld [smem:[#allocation13 + $0x31]]
        %v3453 = vstv %s3452
        %v3454 = vmul.f32 %v3246, %v3453
        %v3455 = vmul.f32 %v3247, %v3453
        %v3456 = vmul.f32 %v3248, %v3453
        %v3460 = vrot.slane %v3454, 1
        %v3461 = vrot.slane %v3455, 1
        %v3462 = vsel %vm449, %v3460, %v3461
        %v3463 = vrot.slane %v3456, 1
        %v3464 = vsel %vm449, %v3461, %v3463
        %3465 = vrot.lane.b32.xlu0 %v3462, 127
        %v3466 = vpop.permute.xlu0 %3465
        %3467 = vrot.lane.b32.xlu0 %v3464, 127
        %v3468 = vpop.permute.xlu0 %3467
        %v3471 = vadd.f32 %v3450, %v3466
        %v3472 = vadd.f32 %v3451, %v3468
        %s3473 = sld [smem:[#allocation13 + $0x32]]
        %v3474 = vstv %s3473
        %v3475 = vmul.f32 %v3246, %v3474
        %v3476 = vmul.f32 %v3247, %v3474
        %v3477 = vmul.f32 %v3248, %v3474
        %v3481 = vrot.slane %v3475, 1
        %v3482 = vrot.slane %v3476, 1
        %v3483 = vsel %vm449, %v3481, %v3482
        %v3484 = vrot.slane %v3477, 1
        %v3485 = vsel %vm449, %v3482, %v3484
        %3486 = vrot.lane.b32.xlu0 %v3483, 126
        %v3487 = vpop.permute.xlu0 %3486
        %3488 = vrot.lane.b32.xlu0 %v3485, 126
        %v3489 = vpop.permute.xlu0 %3488
        %v3492 = vadd.f32 %v3471, %v3487
        %v3493 = vadd.f32 %v3472, %v3489
        %s3494 = sld [smem:[#allocation13 + $0x33]]
        %v3495 = vstv %s3494
        %v3496 = vmul.f32 %v3246, %v3495
        %v3497 = vmul.f32 %v3247, %v3495
        %v3498 = vmul.f32 %v3248, %v3495
        %v3502 = vrot.slane %v3496, 2
        %v3503 = vrot.slane %v3497, 2
        %v3504 = vsel %vm509, %v3502, %v3503
        %v3505 = vrot.slane %v3498, 2
        %v3506 = vsel %vm509, %v3503, %v3505
        %v3509 = vadd.f32 %v3492, %v3504
        %v3510 = vadd.f32 %v3493, %v3506
        %s3511 = sld [smem:[#allocation13 + $0x34]]
        %v3512 = vstv %s3511
        %v3513 = vmul.f32 %v3246, %v3512
        %v3514 = vmul.f32 %v3247, %v3512
        %v3515 = vmul.f32 %v3248, %v3512
        %v3519 = vrot.slane %v3513, 2
        %v3520 = vrot.slane %v3514, 2
        %v3521 = vsel %vm509, %v3519, %v3520
        %v3522 = vrot.slane %v3515, 2
        %v3523 = vsel %vm509, %v3520, %v3522
        %3524 = vrot.lane.b32.xlu0 %v3521, 127
        %v3525 = vpop.permute.xlu0 %3524
        %3526 = vrot.lane.b32.xlu0 %v3523, 127
        %v3527 = vpop.permute.xlu0 %3526
        %v3530 = vadd.f32 %v3509, %v3525
        %v3531 = vadd.f32 %v3510, %v3527
        %s3532 = sld [smem:[#allocation13 + $0x35]]
        %v3533 = vstv %s3532
        %v3534 = vmul.f32 %v3246, %v3533
        %v3535 = vmul.f32 %v3247, %v3533
        %v3536 = vmul.f32 %v3248, %v3533
        %v3540 = vrot.slane %v3534, 2
        %v3541 = vrot.slane %v3535, 2
        %v3542 = vsel %vm509, %v3540, %v3541
        %v3543 = vrot.slane %v3536, 2
        %v3544 = vsel %vm509, %v3541, %v3543
        %3545 = vrot.lane.b32.xlu0 %v3542, 126
        %v3546 = vpop.permute.xlu0 %3545
        %3547 = vrot.lane.b32.xlu0 %v3544, 126
        %v3548 = vpop.permute.xlu0 %3547
        %v3551 = vadd.f32 %v3530, %v3546
        %v3552 = vadd.f32 %v3531, %v3548
        %s3553 = sld [smem:[#allocation13 + $0x48]]
        %v3554 = vstv %s3553
        %v3555 = vmul.f32 %v3246, %v3554
        %v3556 = vmul.f32 %v3247, %v3554
        %v3557 = vadd.f32 %v3244, %v3555
        %v3558 = vadd.f32 %v3245, %v3556
        %s3559 = sld [smem:[#allocation13 + $0x49]]
        %v3560 = vstv %s3559
        %v3561 = vmul.f32 %v3246, %v3560
        %v3562 = vmul.f32 %v3247, %v3560
        %3565 = vrot.lane.b32.xlu0 %v3561, 127
        %v3566 = vpop.permute.xlu0 %3565
        %3567 = vrot.lane.b32.xlu0 %v3562, 127
        %v3568 = vpop.permute.xlu0 %3567
        %v3571 = vadd.f32 %v3557, %v3566
        %v3572 = vadd.f32 %v3558, %v3568
        %s3573 = sld [smem:[#allocation13 + $0x4a]]
        %v3574 = vstv %s3573
        %v3575 = vmul.f32 %v3246, %v3574
        %v3576 = vmul.f32 %v3247, %v3574
        %3579 = vrot.lane.b32.xlu0 %v3575, 126
        %v3580 = vpop.permute.xlu0 %3579
        %3581 = vrot.lane.b32.xlu0 %v3576, 126
        %v3582 = vpop.permute.xlu0 %3581
        %v3585 = vadd.f32 %v3571, %v3580
        %v3586 = vadd.f32 %v3572, %v3582
        %s3587 = sld [smem:[#allocation13 + $0x4b]]
        %v3588 = vstv %s3587
        %v3589 = vmul.f32 %v3246, %v3588
        %v3590 = vmul.f32 %v3247, %v3588
        %v3591 = vmul.f32 %v3248, %v3588
        %v3595 = vrot.slane %v3589, 1
        %v3596 = vrot.slane %v3590, 1
        %v3597 = vsel %vm449, %v3595, %v3596
        %v3598 = vrot.slane %v3591, 1
        %v3599 = vsel %vm449, %v3596, %v3598
        %v3602 = vadd.f32 %v3585, %v3597
        %v3603 = vadd.f32 %v3586, %v3599
        %s3604 = sld [smem:[#allocation13 + $0x4c]]
        %v3605 = vstv %s3604
        %v3606 = vmul.f32 %v3246, %v3605
        %v3607 = vmul.f32 %v3247, %v3605
        %v3608 = vmul.f32 %v3248, %v3605
        %v3612 = vrot.slane %v3606, 1
        %v3613 = vrot.slane %v3607, 1
        %v3614 = vsel %vm449, %v3612, %v3613
        %v3615 = vrot.slane %v3608, 1
        %v3616 = vsel %vm449, %v3613, %v3615
        %3617 = vrot.lane.b32.xlu0 %v3614, 127
        %v3618 = vpop.permute.xlu0 %3617
        %3619 = vrot.lane.b32.xlu0 %v3616, 127
        %v3620 = vpop.permute.xlu0 %3619
        %v3623 = vadd.f32 %v3602, %v3618
        %v3624 = vadd.f32 %v3603, %v3620
        %s3625 = sld [smem:[#allocation13 + $0x4d]]
        %v3626 = vstv %s3625
        %v3627 = vmul.f32 %v3246, %v3626
        %v3628 = vmul.f32 %v3247, %v3626
        %v3629 = vmul.f32 %v3248, %v3626
        %v3633 = vrot.slane %v3627, 1
        %v3634 = vrot.slane %v3628, 1
        %v3635 = vsel %vm449, %v3633, %v3634
        %v3636 = vrot.slane %v3629, 1
        %v3637 = vsel %vm449, %v3634, %v3636
        %3638 = vrot.lane.b32.xlu0 %v3635, 126
        %v3639 = vpop.permute.xlu0 %3638
        %3640 = vrot.lane.b32.xlu0 %v3637, 126
        %v3641 = vpop.permute.xlu0 %3640
        %v3644 = vadd.f32 %v3623, %v3639
        %v3645 = vadd.f32 %v3624, %v3641
        %s3646 = sld [smem:[#allocation13 + $0x4e]]
        %v3647 = vstv %s3646
        %v3648 = vmul.f32 %v3246, %v3647
        %v3649 = vmul.f32 %v3247, %v3647
        %v3650 = vmul.f32 %v3248, %v3647
        %v3654 = vrot.slane %v3648, 2
        %v3655 = vrot.slane %v3649, 2
        %v3656 = vsel %vm509, %v3654, %v3655
        %v3657 = vrot.slane %v3650, 2
        %v3658 = vsel %vm509, %v3655, %v3657
        %v3661 = vadd.f32 %v3644, %v3656
        %v3662 = vadd.f32 %v3645, %v3658
        %s3663 = sld [smem:[#allocation13 + $0x4f]]
        %v3664 = vstv %s3663
        %v3665 = vmul.f32 %v3246, %v3664
        %v3666 = vmul.f32 %v3247, %v3664
        %v3667 = vmul.f32 %v3248, %v3664
        %v3671 = vrot.slane %v3665, 2
        %v3672 = vrot.slane %v3666, 2
        %v3673 = vsel %vm509, %v3671, %v3672
        %v3674 = vrot.slane %v3667, 2
        %v3675 = vsel %vm509, %v3672, %v3674
        %3676 = vrot.lane.b32.xlu0 %v3673, 127
        %v3677 = vpop.permute.xlu0 %3676
        %3678 = vrot.lane.b32.xlu0 %v3675, 127
        %v3679 = vpop.permute.xlu0 %3678
        %v3682 = vadd.f32 %v3661, %v3677
        %v3683 = vadd.f32 %v3662, %v3679
        %s3684 = sld [smem:[#allocation13 + $0x50]]
        %v3685 = vstv %s3684
        %v3686 = vmul.f32 %v3246, %v3685
        %v3687 = vmul.f32 %v3247, %v3685
        %v3688 = vmul.f32 %v3248, %v3685
        %v3692 = vrot.slane %v3686, 2
        %v3693 = vrot.slane %v3687, 2
        %v3694 = vsel %vm509, %v3692, %v3693
        %v3695 = vrot.slane %v3688, 2
        %v3696 = vsel %vm509, %v3693, %v3695
        %3697 = vrot.lane.b32.xlu0 %v3694, 126
        %v3698 = vpop.permute.xlu0 %3697
        %3699 = vrot.lane.b32.xlu0 %v3696, 126
        %v3700 = vpop.permute.xlu0 %3699
        %v3703 = vadd.f32 %v3682, %v3698
        %v3704 = vadd.f32 %v3683, %v3700
        %vm3705 = vcmask 130048
        %3706 = vst.msk [vmem:[%s373] sm:$0xff] %vm3705, %v3399
        %3707 = vst.msk [vmem:[%s373 + $0x8] sm:$0xff] %vm3705, %v3400
        %s3708 = scalar_lea.vmem %s373, 16 [#allocation16]
        %3709 = vst.msk [vmem:[%s3708] sm:$0xff] %vm3705, %v3551
        %3710 = vst.msk [vmem:[%s3708 + $0x8] sm:$0xff] %vm3705, %v3552
        %s3711 = scalar_lea.vmem %s373, 32 [#allocation16]
        %3712 = vst.msk [vmem:[%s3711] sm:$0xff] %vm3705, %v3703
        %3713 = vst.msk [vmem:[%s3711 + $0x8] sm:$0xff] %vm3705, %v3704
        %s3714 = sand.u32 %s188, 1
        %s3715 = scalar_lea.sflag [#allocation5], %s3714
        %s3716 = sand.u32 %s188, 1
        %s3717 = smul.addr %s3716, 48
        %s3718 = scalar_lea.vmem [#allocation16], %s3717
        // Predicated region
        $region77: #{tpu_custom_call.1} parent=47 // pred_check
          %p3719 = pneg %p198
        $region78: #{tpu_custom_call.1} parent=47 // pred_check_branch
          %3721 = sbr.rel (%p3719) target = $region80
        $region79: #{tpu_custom_call.1} parent=47 // pred_region
          %s3723 = ssub.s32 768, 768
          %3724 = vsyncadd %s3715, %s3723
          %s3725 = smul.addr %s28, 6
          %s3726 = smul.addr %s3725, 128
          %s3727 = scalar_lea.hbm %s7, %s3726
          %s3728 = sshll.u32 %s3718, 4
          %s3729 = int_to_ptr.vmem [resolvable:$true] %s3728
          %3734 = dma.vmem_to_hbm [thread:$0]  %s3729, 768, %s3727, %s3715, 128, 128, 8
        $region80: #{tpu_custom_call.1} parent=47 // pred_fallthru
          _
      $region48: #{tpu_custom_call.1} parent=5 // pred_fallthru
        _
      %p3735 = scmp.le.s32.totalorder 2, %s23
      // Predicated region
      $region81: #{tpu_custom_call.1} parent=5 // pred_check
        %p3736 = pneg %p3735
      $region82: #{tpu_custom_call.1} parent=5 // pred_check_branch
        %3738 = sbr.rel (%p3736) target = $region84
      $region83: #{tpu_custom_call.1} parent=5 // pred_region
        %s3739 = ssub.s32 %s23, 2
        // Predicated region
        $region85: #{tpu_custom_call.1} parent=83 // pred_check
          %p3740 = pneg %p204
        $region86: #{tpu_custom_call.1} parent=83 // pred_check_branch
          %3742 = sbr.rel (%p3740) target = $region88
        $region87: #{tpu_custom_call.1} parent=83 // pred_region
          %s3743 = sand.u32 %s189, 1
          %s3744 = scalar_lea.sflag [#allocation5], %s3743
          %s3745 = sand.u32 %s189, 1
          %s3746 = smul.addr %s3745, 48
          %s3747 = scalar_lea.vmem [#allocation16], %s3746
          %3748 = dma.done %s3744, 768
        $region88: #{tpu_custom_call.1} parent=83 // pred_fallthru
          _
      $region84: #{tpu_custom_call.1} parent=5 // pred_fallthru
        _
    $region6: #{tpu_custom_call.1} parent=1 // loop_footer
      %s27 = sadd.s32 1, %s23
    $region7: #{tpu_custom_call.1} parent=1 // loop_footer_branch
      %22 = sbr.rel target = $region3
    $region8: #{tpu_custom_call.1} parent=1 // loop_exit
      _
    %3749 = vsyncpa [#allocation4], 1
    %s3750 = scalar_lea.sflag [#allocation4], 1
    %3751 = vsyncpa %s3750, 1
    %3752 = vsyncpa [#allocation5], 1
    %s3753 = scalar_lea.sflag [#allocation5], 1
    %3754 = vsyncpa %s3753, 1
    %3755 = vsyncpa [#allocation6], 1
    %s3756 = scalar_lea.sflag [#allocation6], 1
    %3757 = vsyncpa %s3756, 1
    %3758 = vsyncpa [#allocation9], 1
    %3759 = vsyncpa [#allocation12], 1
    %3760 = vsyncpa [#allocation15], 1

</llo_original>
